<compile_context>
chip_gen: v7x
topology: tpu7x:2x2x1
jax: 0.10.0
libtpu: 0.0.40
codegen_flags: <defaults>
</compile_context>

<pallas_src>
import jax
import jax.numpy as jnp
import numpy as np
from jax.experimental import pallas as pl
from jax.experimental.pallas import tpu as pltpu


def _round_up(x, m):
    return (x + m - 1) // m * m


# ----------------------------------------------------------------------------
# Fused kernel: in-kernel embedding gather -> per-branch (conv_a+ReLU ->
# conv_b+ReLU -> max-over-time) -> concat -> Linear -> sigmoid.
# ----------------------------------------------------------------------------
def _make_fused_kernel(filter_sizes_a, filter_sizes_b, TB, L, Ep):
    n_br = len(filter_sizes_a)

    def kernel(ids_ref, table_ref, *rest):
        br_refs = rest[:4 * n_br]
        fcw_ref, fcb_ref, out_ref, emb_vmem = rest[4 * n_br:]

        # ---- Fused embedding gather -------------------------------------
        # Token ids live in SMEM (scalar prefetch); the f32 table lives in
        # VMEM via a constant-index BlockSpec (DMA'd once).  Rows are f32 so
        # the dynamic-offset (1, Ep) loads/stores are plain 32-bit sublane
        # accesses; the tile is cast to bf16 exactly once below.
        base = pl.program_id(0) * (TB * L)

        @pl.loop(0, TB * L)
        def _(i):
            tok = ids_ref[base + i]
            emb_vmem[pl.ds(i, 1), :] = table_ref[pl.ds(tok, 1), :]

        emb = emb_vmem[...].reshape(TB, L, Ep).astype(jnp.bfloat16)

        # ---- Conv branches ----------------------------------------------
        pooled = []
        for bi in range(n_br):
            wa_ref, ba_ref, wb_ref, bb_ref = br_refs[4 * bi:4 * bi + 4]
            fs_a = filter_sizes_a[bi]
            fs_b = filter_sizes_b[bi]
            T1 = L - fs_a + 1
            T2 = T1 - fs_b + 1
            FaP = wa_ref.shape[2]
            FbP = wb_ref.shape[2]

            # conv-A: fs_a per-tap accumulating matmuls (bf16 operands,
            # fp32 accumulation), bias + ReLU once in fp32.
            acc_a = jnp.zeros((TB, T1, FaP), jnp.float32)
            for j in range(fs_a):
                acc_a = acc_a + jax.lax.dot_general(
                    emb[:, j:j + T1, :], wa_ref[j],
                    dimension_numbers=(((2,), (0,)), ((), ())),
                    preferred_element_type=jnp.float32)
            a = jnp.maximum(acc_a + ba_ref[...], 0.0).astype(jnp.bfloat16)

            # conv-B: kernel (fs_b, 1) over the channel axis -> same per-tap
            # accumulation trick.
            acc_c = jnp.zeros((TB, T2, FbP), jnp.float32)
            for j in range(fs_b):
                acc_c = acc_c + jax.lax.dot_general(
                    a[:, j:j + T2, :], wb_ref[j],
                    dimension_numbers=(((2,), (0,)), ((), ())),
                    preferred_element_type=jnp.float32)
            c = jnp.maximum(acc_c + bb_ref[...], 0.0)

            # max_pool1d over the full valid time axis.
            pooled.append(jnp.max(c, axis=1))            # (TB, FbP)

        # ---- Head: concat -> Linear (padded to 128 lanes) -> sigmoid ----
        # Dropout: eval-mode identity.
        feats = jnp.concatenate(pooled, axis=-1).astype(jnp.bfloat16)
        logits = jnp.dot(feats, fcw_ref[...],
                         preferred_element_type=jnp.float32) + fcb_ref[...]
        out_ref[...] = jax.nn.sigmoid(logits)            # (TB, 128), col 0 real

    return kernel


def multi_channel_cnn_forward(packed, x_tokens, filter_sizes_a, filter_sizes_b,
                              *, block_b=128):
    table = packed["table"]                              # (vocab, Ep) f32
    _, Ep = table.shape
    B, L = x_tokens.shape
    TB = min(B, block_b)
    assert B % TB == 0, "batch must be divisible by the batch tile"
    ids_flat = x_tokens.reshape(-1).astype(jnp.int32)    # scalar prefetch (SMEM)

    flat_params = []
    # index_maps receive (grid_i, ids_prefetch_ref); weights use constant blocks.
    in_specs = [pl.BlockSpec(table.shape, lambda i, ids: (0, 0))]
    for branch in packed["branches"]:
        for w in branch:
            flat_params.append(w)
            in_specs.append(
                pl.BlockSpec(w.shape, lambda i, ids, nd=w.ndim: (0,) * nd))
    for w in (packed["fc_w"], packed["fc_b"]):
        flat_params.append(w)
        in_specs.append(
            pl.BlockSpec(w.shape, lambda i, ids, nd=w.ndim: (0,) * nd))

    kernel = _make_fused_kernel(tuple(filter_sizes_a), tuple(filter_sizes_b),
                                TB, L, Ep)
    out = pl.pallas_call(
        kernel,
        out_shape=jax.ShapeDtypeStruct((B, 128), jnp.float32),
        grid_spec=pltpu.PrefetchScalarGridSpec(
            num_scalar_prefetch=1,
            grid=(B // TB,),
            in_specs=in_specs,
            out_specs=pl.BlockSpec((TB, 128), lambda i, ids: (i, 0)),
            scratch_shapes=[pltpu.VMEM((TB * L, Ep), jnp.float32)],
        ),
        compiler_params=pltpu.CompilerParams(
            dimension_semantics=("parallel",),
            vmem_limit_bytes=48 * 1024 * 1024,           # fits v7x's 64 MiB VMEM
        ),
    )(ids_flat, table, *flat_params)
    return out[:, :1]                                    # lane-dense store, slice col 0


# ----------------------------------------------------------------------------
# Parameter init (natural layout) and packing into kernel layout:
# taps kept separate as (fs, K, N) matrices, lane-padded, bf16 matmul operands.
# ----------------------------------------------------------------------------
def init_params(key, vocab_size, embedding_dim, n_filters_a, n_filters_b,
                filter_sizes_a, filter_sizes_b):
    n_br = len(filter_sizes_a)
    keys = jax.random.split(key, 3 + 4 * n_br)
    ki = iter(keys)
    params = {"embedding": jax.random.normal(
        next(ki), (vocab_size, embedding_dim), jnp.float32) * 0.1}
    branches = []
    for fs_a, fs_b in zip(filter_sizes_a, filter_sizes_b):
        wa = jax.random.normal(
            next(ki), (fs_a, embedding_dim, n_filters_a), jnp.float32) * 0.05
        ba = jax.random.normal(next(ki), (n_filters_a,), jnp.float32) * 0.05
        wb = jax.random.normal(
            next(ki), (fs_b, n_filters_a, n_filters_b), jnp.float32) * 0.05
        bb = jax.random.normal(next(ki), (n_filters_b,), jnp.float32) * 0.05
        branches.append((wa, ba, wb, bb))
    params["branches"] = branches
    D = n_br * n_filters_b
    params["fc_w"] = jax.random.normal(next(ki), (D, 1), jnp.float32) * 0.05
    params["fc_b"] = jax.random.normal(next(ki), (1,), jnp.float32) * 0.05
    return params


def pack_params(params):
    vocab, E = params["embedding"].shape
    Ep = _round_up(E, 128)
    packed = {}
    # f32 table: dynamic-offset row gathers are plain 32-bit accesses; the
    # kernel casts the gathered tile to bf16 once.
    packed["table"] = jnp.zeros((vocab, Ep), jnp.float32).at[:, :E].set(
        params["embedding"])

    branches = []
    Fb = params["branches"][0][3].shape[0]
    FbP = _round_up(Fb, 128)
    for (wa, ba, wb, bb) in params["branches"]:
        fs_a, _, Fa = wa.shape
        fs_b, _, Fb = wb.shape
        FaP = _round_up(Fa, 128)
        FbP = _round_up(Fb, 128)
        wa_p = jnp.zeros((fs_a, Ep, FaP), jnp.float32).at[:, :E, :Fa].set(wa)
        ba_p = jnp.zeros((1, FaP), jnp.float32).at[0, :Fa].set(ba)
        wb_p = jnp.zeros((fs_b, FaP, FbP), jnp.float32).at[:, :Fa, :Fb].set(wb)
        bb_p = jnp.zeros((1, FbP), jnp.float32).at[0, :Fb].set(bb)
        branches.append((wa_p.astype(jnp.bfloat16), ba_p,
                         wb_p.astype(jnp.bfloat16), bb_p))
    packed["branches"] = branches

    n_br = len(branches)
    OUTP = 128                                           # lane-dense head output
    fcw_p = jnp.zeros((n_br * FbP, OUTP), jnp.float32)
    for bi in range(n_br):
        fcw_p = fcw_p.at[bi * FbP:bi * FbP + Fb, 0].set(
            params["fc_w"][bi * Fb:(bi + 1) * Fb, 0])
    packed["fc_w"] = fcw_p.astype(jnp.bfloat16)
    packed["fc_b"] = jnp.zeros((1, OUTP), jnp.float32).at[0, 0].set(
        params["fc_b"][0])
    return packed


# ----------------------------------------------------------------------------
# Pure-JAX reference (natural, unpadded layout) mirroring the kernel's
# bf16-operand / fp32-accumulation numerics.  Same math as the PyTorch module.
# ----------------------------------------------------------------------------
def reference_forward(params, x_tokens):
    emb = params["embedding"][x_tokens].astype(jnp.bfloat16)   # (B, L, E)
    B, L, _ = emb.shape
    pooled = []
    for (wa, ba, wb, bb) in params["branches"]:
        fs_a, _, Fa = wa.shape
        fs_b, _, Fb = wb.shape
        T1 = L - fs_a + 1
        T2 = T1 - fs_b + 1
        a = jnp.zeros((B, T1, Fa), jnp.float32)
        for j in range(fs_a):
            a = a + jnp.einsum("ble,ef->blf", emb[:, j:j + T1, :],
                               wa[j].astype(jnp.bfloat16),
                               preferred_element_type=jnp.float32)
        a = jnp.maximum(a + ba[None, None, :], 0.0).astype(jnp.bfloat16)
        c = jnp.zeros((B, T2, Fb), jnp.float32)
        for j in range(fs_b):
            c = c + jnp.einsum("blf,fg->blg", a[:, j:j + T2, :],
                               wb[j].astype(jnp.bfloat16),
                               preferred_element_type=jnp.float32)
        c = jnp.maximum(c + bb[None, None, :], 0.0)
        pooled.append(jnp.max(c, axis=1))
    feats = jnp.concatenate(pooled, axis=1).astype(jnp.bfloat16)
    logits = jnp.dot(feats, params["fc_w"].astype(jnp.bfloat16),
                     preferred_element_type=jnp.float32) + params["fc_b"][None, :]
    return jax.nn.sigmoid(logits)


if __name__ == "__main__":
    # Small shapes consistent with the module (defaults scaled down).
    B, L = 2, 16
    vocab_size, embedding_dim = 50, 32
    n_filters_a, n_filters_b = 16, 32
    filter_sizes_a = [3, 4, 5]
    filter_sizes_b = [3, 4, 5]

    key = jax.random.PRNGKey(0)
    k_params, k_tokens = jax.random.split(key)
    params = init_params(k_params, vocab_size, embedding_dim,
                         n_filters_a, n_filters_b,
                         filter_sizes_a, filter_sizes_b)
    x_tokens = jax.random.randint(k_tokens, (B, L), 0, vocab_size, jnp.int32)

    packed = pack_params(params)
    out = multi_channel_cnn_forward(packed, x_tokens,
                                    filter_sizes_a, filter_sizes_b)
    out = jax.block_until_ready(out)

    ref = jax.block_until_ready(reference_forward(params, x_tokens))
    assert out.shape == (B, 1), out.shape
    np.testing.assert_allclose(np.asarray(out), np.asarray(ref),
                               rtol=2e-3, atol=2e-3)
    print("KERNEL_OK")
</pallas_src>

<mosaic_0001>
module attributes {stable_mosaic.version = 11 : i64} {
  func.func @kernel(%arg0: i32, %arg1: memref<32xi32, #tpu.memory_space<smem>>, %arg2: memref<50x128xf32, #tpu.memory_space<vmem>>, %arg3: memref<3x128x128xbf16, #tpu.memory_space<vmem>>, %arg4: memref<1x128xf32, #tpu.memory_space<vmem>>, %arg5: memref<3x128x128xbf16, #tpu.memory_space<vmem>>, %arg6: memref<1x128xf32, #tpu.memory_space<vmem>>, %arg7: memref<4x128x128xbf16, #tpu.memory_space<vmem>>, %arg8: memref<1x128xf32, #tpu.memory_space<vmem>>, %arg9: memref<4x128x128xbf16, #tpu.memory_space<vmem>>, %arg10: memref<1x128xf32, #tpu.memory_space<vmem>>, %arg11: memref<5x128x128xbf16, #tpu.memory_space<vmem>>, %arg12: memref<1x128xf32, #tpu.memory_space<vmem>>, %arg13: memref<5x128x128xbf16, #tpu.memory_space<vmem>>, %arg14: memref<1x128xf32, #tpu.memory_space<vmem>>, %arg15: memref<384x128xbf16, #tpu.memory_space<vmem>>, %arg16: memref<1x128xf32, #tpu.memory_space<vmem>>, %arg17: memref<2x128xf32, #tpu.memory_space<vmem>>, %arg18: memref<32x128xf32, #tpu.memory_space<vmem>>) attributes {dimension_semantics = [#tpu.dimension_semantics<parallel>], iteration_bounds = array<i64: 1>, scalar_prefetch = 1 : i64, scratch_operands = 1 : i64, tpu.core_type = #tpu.core_type<tc>, window_params = [{pipeline_mode = #tpu.pipeline_mode<synchronous>, transform_indices = @transform_0, window_bounds = array<i64: 50, 128>}, {pipeline_mode = #tpu.pipeline_mode<synchronous>, transform_indices = @transform_1, window_bounds = array<i64: 3, 128, 128>}, {pipeline_mode = #tpu.pipeline_mode<synchronous>, transform_indices = @transform_2, window_bounds = array<i64: 1, 128>}, {pipeline_mode = #tpu.pipeline_mode<synchronous>, transform_indices = @transform_3, window_bounds = array<i64: 3, 128, 128>}, {pipeline_mode = #tpu.pipeline_mode<synchronous>, transform_indices = @transform_4, window_bounds = array<i64: 1, 128>}, {pipeline_mode = #tpu.pipeline_mode<synchronous>, transform_indices = @transform_5, window_bounds = array<i64: 4, 128, 128>}, {pipeline_mode = #tpu.pipeline_mode<synchronous>, transform_indices = @transform_6, window_bounds = array<i64: 1, 128>}, {pipeline_mode = #tpu.pipeline_mode<synchronous>, transform_indices = @transform_7, window_bounds = array<i64: 4, 128, 128>}, {pipeline_mode = #tpu.pipeline_mode<synchronous>, transform_indices = @transform_8, window_bounds = array<i64: 1, 128>}, {pipeline_mode = #tpu.pipeline_mode<synchronous>, transform_indices = @transform_9, window_bounds = array<i64: 5, 128, 128>}, {pipeline_mode = #tpu.pipeline_mode<synchronous>, transform_indices = @transform_10, window_bounds = array<i64: 1, 128>}, {pipeline_mode = #tpu.pipeline_mode<synchronous>, transform_indices = @transform_11, window_bounds = array<i64: 5, 128, 128>}, {pipeline_mode = #tpu.pipeline_mode<synchronous>, transform_indices = @transform_12, window_bounds = array<i64: 1, 128>}, {pipeline_mode = #tpu.pipeline_mode<synchronous>, transform_indices = @transform_13, window_bounds = array<i64: 384, 128>}, {pipeline_mode = #tpu.pipeline_mode<synchronous>, transform_indices = @transform_14, window_bounds = array<i64: 1, 128>}, {transform_indices = @transform_15, window_bounds = array<i64: 2, 128>}]} {
    %c32_i32 = arith.constant 32 : i32
    %0 = arith.muli %arg0, %c32_i32 : i32
    %c0_i32 = arith.constant 0 : i32
    %c32_i32_0 = arith.constant 32 : i32
    %1 = arith.addi %c0_i32, %c32_i32_0 : i32
    %c1_i32 = arith.constant 1 : i32
    scf.for %arg19 = %c0_i32 to %1 step %c1_i32  : i32 {
      %c1_i32_129 = arith.constant 1 : i32
      %186 = arith.muli %arg19, %c1_i32_129 : i32
      %c0_i32_130 = arith.constant 0 : i32
      %187 = arith.addi %c0_i32_130, %186 : i32
      %188 = arith.addi %0, %187 : i32
      %189 = arith.index_cast %188 : i32 to index
      %190 = memref.load %arg1[%189] : memref<32xi32, #tpu.memory_space<smem>>
      %191 = arith.index_cast %190 : i32 to index
      %c0_131 = arith.constant 0 : index
      %192 = vector.load %arg2[%191, %c0_131] : memref<50x128xf32, #tpu.memory_space<vmem>>, vector<1x128xf32>
      %193 = arith.index_cast %187 : i32 to index
      %c0_132 = arith.constant 0 : index
      %194 = vector.load %arg18[%193, %c0_132] : memref<32x128xf32, #tpu.memory_space<vmem>>, vector<1x128xf32>
      tpu.vector_store %arg18[%193, %c0_132], %192 {strides = array<i32>} : memref<32x128xf32, #tpu.memory_space<vmem>>, vector<1x128xf32>,
    }
    %c32_i32_1 = arith.constant 32 : i32
    %c0 = arith.constant 0 : index
    %c0_2 = arith.constant 0 : index
    %2 = vector.load %arg18[%c0, %c0_2] : memref<32x128xf32, #tpu.memory_space<vmem>>, vector<32x128xf32>
    %3 = vector.shape_cast %2 : vector<32x128xf32> to vector<2x16x128xf32>
    %4 = arith.truncf %3 : vector<2x16x128xf32> to vector<2x16x128xbf16>
    %cst = arith.constant 0.000000e+00 : f32
    %5 = vector.broadcast %cst : f32 to vector<2x14x128xf32>
    %6 = vector.extract_strided_slice %4 {offsets = [0, 0, 0], sizes = [2, 14, 128], strides = [1, 1, 1]} : vector<2x16x128xbf16> to vector<2x14x128xbf16>
    %c0_3 = arith.constant 0 : index
    %c0_4 = arith.constant 0 : index
    %c0_5 = arith.constant 0 : index
    %7 = vector.load %arg3[%c0_3, %c0_4, %c0_5] : memref<3x128x128xbf16, #tpu.memory_space<vmem>>, vector<1x128x128xbf16>
    %8 = vector.shape_cast %7 : vector<1x128x128xbf16> to vector<128x128xbf16>
    %cst_6 = arith.constant dense<0.000000e+00> : vector<2x14x128xf32>
    %9 = tpu.matmul %6, %8, %cst_6 {dimension_numbers = #tpu.dot_dimension_numbers<[2], [0], [0, 1], [1], [0, 0, 0, 1, 1, 1], [], []>} : vector<2x14x128xbf16>, vector<128x128xbf16>, vector<2x14x128xf32> -> vector<2x14x128xf32>
    %10 = arith.addf %5, %9 : vector<2x14x128xf32>
    %11 = vector.extract_strided_slice %4 {offsets = [0, 1, 0], sizes = [2, 14, 128], strides = [1, 1, 1]} : vector<2x16x128xbf16> to vector<2x14x128xbf16>
    %c1 = arith.constant 1 : index
    %c0_7 = arith.constant 0 : index
    %c0_8 = arith.constant 0 : index
    %12 = vector.load %arg3[%c1, %c0_7, %c0_8] : memref<3x128x128xbf16, #tpu.memory_space<vmem>>, vector<1x128x128xbf16>
    %13 = vector.shape_cast %12 : vector<1x128x128xbf16> to vector<128x128xbf16>
    %cst_9 = arith.constant dense<0.000000e+00> : vector<2x14x128xf32>
    %14 = tpu.matmul %11, %13, %cst_9 {dimension_numbers = #tpu.dot_dimension_numbers<[2], [0], [0, 1], [1], [0, 0, 0, 1, 1, 1], [], []>} : vector<2x14x128xbf16>, vector<128x128xbf16>, vector<2x14x128xf32> -> vector<2x14x128xf32>
    %15 = arith.addf %10, %14 : vector<2x14x128xf32>
    %16 = vector.extract_strided_slice %4 {offsets = [0, 2, 0], sizes = [2, 14, 128], strides = [1, 1, 1]} : vector<2x16x128xbf16> to vector<2x14x128xbf16>
    %c2 = arith.constant 2 : index
    %c0_10 = arith.constant 0 : index
    %c0_11 = arith.constant 0 : index
    %17 = vector.load %arg3[%c2, %c0_10, %c0_11] : memref<3x128x128xbf16, #tpu.memory_space<vmem>>, vector<1x128x128xbf16>
    %18 = vector.shape_cast %17 : vector<1x128x128xbf16> to vector<128x128xbf16>
    %cst_12 = arith.constant dense<0.000000e+00> : vector<2x14x128xf32>
    %19 = tpu.matmul %16, %18, %cst_12 {dimension_numbers = #tpu.dot_dimension_numbers<[2], [0], [0, 1], [1], [0, 0, 0, 1, 1, 1], [], []>} : vector<2x14x128xbf16>, vector<128x128xbf16>, vector<2x14x128xf32> -> vector<2x14x128xf32>
    %20 = arith.addf %15, %19 : vector<2x14x128xf32>
    %c0_13 = arith.constant 0 : index
    %c0_14 = arith.constant 0 : index
    %21 = vector.load %arg4[%c0_13, %c0_14] : memref<1x128xf32, #tpu.memory_space<vmem>>, vector<1x128xf32>
    %22 = vector.shape_cast %21 : vector<1x128xf32> to vector<1x1x128xf32>
    %23 = vector.broadcast %22 : vector<1x1x128xf32> to vector<2x14x128xf32>
    %24 = arith.addf %20, %23 : vector<2x14x128xf32>
    %cst_15 = arith.constant 0.000000e+00 : f32
    %25 = vector.broadcast %cst_15 : f32 to vector<2x14x128xf32>
    %26 = arith.maximumf %24, %25 : vector<2x14x128xf32>
    %27 = arith.truncf %26 : vector<2x14x128xf32> to vector<2x14x128xbf16>
    %cst_16 = arith.constant 0.000000e+00 : f32
    %28 = vector.broadcast %cst_16 : f32 to vector<2x12x128xf32>
    %29 = vector.extract_strided_slice %27 {offsets = [0, 0, 0], sizes = [2, 12, 128], strides = [1, 1, 1]} : vector<2x14x128xbf16> to vector<2x12x128xbf16>
    %c0_17 = arith.constant 0 : index
    %c0_18 = arith.constant 0 : index
    %c0_19 = arith.constant 0 : index
    %30 = vector.load %arg5[%c0_17, %c0_18, %c0_19] : memref<3x128x128xbf16, #tpu.memory_space<vmem>>, vector<1x128x128xbf16>
    %31 = vector.shape_cast %30 : vector<1x128x128xbf16> to vector<128x128xbf16>
    %cst_20 = arith.constant dense<0.000000e+00> : vector<2x12x128xf32>
    %32 = tpu.matmul %29, %31, %cst_20 {dimension_numbers = #tpu.dot_dimension_numbers<[2], [0], [0, 1], [1], [0, 0, 0, 1, 1, 1], [], []>} : vector<2x12x128xbf16>, vector<128x128xbf16>, vector<2x12x128xf32> -> vector<2x12x128xf32>
    %33 = arith.addf %28, %32 : vector<2x12x128xf32>
    %34 = vector.extract_strided_slice %27 {offsets = [0, 1, 0], sizes = [2, 12, 128], strides = [1, 1, 1]} : vector<2x14x128xbf16> to vector<2x12x128xbf16>
    %c1_21 = arith.constant 1 : index
    %c0_22 = arith.constant 0 : index
    %c0_23 = arith.constant 0 : index
    %35 = vector.load %arg5[%c1_21, %c0_22, %c0_23] : memref<3x128x128xbf16, #tpu.memory_space<vmem>>, vector<1x128x128xbf16>
    %36 = vector.shape_cast %35 : vector<1x128x128xbf16> to vector<128x128xbf16>
    %cst_24 = arith.constant dense<0.000000e+00> : vector<2x12x128xf32>
    %37 = tpu.matmul %34, %36, %cst_24 {dimension_numbers = #tpu.dot_dimension_numbers<[2], [0], [0, 1], [1], [0, 0, 0, 1, 1, 1], [], []>} : vector<2x12x128xbf16>, vector<128x128xbf16>, vector<2x12x128xf32> -> vector<2x12x128xf32>
    %38 = arith.addf %33, %37 : vector<2x12x128xf32>
    %39 = vector.extract_strided_slice %27 {offsets = [0, 2, 0], sizes = [2, 12, 128], strides = [1, 1, 1]} : vector<2x14x128xbf16> to vector<2x12x128xbf16>
    %c2_25 = arith.constant 2 : index
    %c0_26 = arith.constant 0 : index
    %c0_27 = arith.constant 0 : index
    %40 = vector.load %arg5[%c2_25, %c0_26, %c0_27] : memref<3x128x128xbf16, #tpu.memory_space<vmem>>, vector<1x128x128xbf16>
    %41 = vector.shape_cast %40 : vector<1x128x128xbf16> to vector<128x128xbf16>
    %cst_28 = arith.constant dense<0.000000e+00> : vector<2x12x128xf32>
    %42 = tpu.matmul %39, %41, %cst_28 {dimension_numbers = #tpu.dot_dimension_numbers<[2], [0], [0, 1], [1], [0, 0, 0, 1, 1, 1], [], []>} : vector<2x12x128xbf16>, vector<128x128xbf16>, vector<2x12x128xf32> -> vector<2x12x128xf32>
    %43 = arith.addf %38, %42 : vector<2x12x128xf32>
    %c0_29 = arith.constant 0 : index
    %c0_30 = arith.constant 0 : index
    %44 = vector.load %arg6[%c0_29, %c0_30] : memref<1x128xf32, #tpu.memory_space<vmem>>, vector<1x128xf32>
    %45 = vector.shape_cast %44 : vector<1x128xf32> to vector<1x1x128xf32>
    %46 = vector.broadcast %45 : vector<1x1x128xf32> to vector<2x12x128xf32>
    %47 = arith.addf %43, %46 : vector<2x12x128xf32>
    %cst_31 = arith.constant 0.000000e+00 : f32
    %48 = vector.broadcast %cst_31 : f32 to vector<2x12x128xf32>
    %49 = arith.maximumf %47, %48 : vector<2x12x128xf32>
    %cst_32 = arith.constant dense<0xFF800000> : vector<2x128xf32>
    %50 = vector.multi_reduction <maximumf>, %49, %cst_32 [1] : vector<2x12x128xf32> to vector<2x128xf32>
    %cst_33 = arith.constant 0.000000e+00 : f32
    %51 = vector.broadcast %cst_33 : f32 to vector<2x13x128xf32>
    %52 = vector.extract_strided_slice %4 {offsets = [0, 0, 0], sizes = [2, 13, 128], strides = [1, 1, 1]} : vector<2x16x128xbf16> to vector<2x13x128xbf16>
    %c0_34 = arith.constant 0 : index
    %c0_35 = arith.constant 0 : index
    %c0_36 = arith.constant 0 : index
    %53 = vector.load %arg7[%c0_34, %c0_35, %c0_36] : memref<4x128x128xbf16, #tpu.memory_space<vmem>>, vector<1x128x128xbf16>
    %54 = vector.shape_cast %53 : vector<1x128x128xbf16> to vector<128x128xbf16>
    %cst_37 = arith.constant dense<0.000000e+00> : vector<2x13x128xf32>
    %55 = tpu.matmul %52, %54, %cst_37 {dimension_numbers = #tpu.dot_dimension_numbers<[2], [0], [0, 1], [1], [0, 0, 0, 1, 1, 1], [], []>} : vector<2x13x128xbf16>, vector<128x128xbf16>, vector<2x13x128xf32> -> vector<2x13x128xf32>
    %56 = arith.addf %51, %55 : vector<2x13x128xf32>
    %57 = vector.extract_strided_slice %4 {offsets = [0, 1, 0], sizes = [2, 13, 128], strides = [1, 1, 1]} : vector<2x16x128xbf16> to vector<2x13x128xbf16>
    %c1_38 = arith.constant 1 : index
    %c0_39 = arith.constant 0 : index
    %c0_40 = arith.constant 0 : index
    %58 = vector.load %arg7[%c1_38, %c0_39, %c0_40] : memref<4x128x128xbf16, #tpu.memory_space<vmem>>, vector<1x128x128xbf16>
    %59 = vector.shape_cast %58 : vector<1x128x128xbf16> to vector<128x128xbf16>
    %cst_41 = arith.constant dense<0.000000e+00> : vector<2x13x128xf32>
    %60 = tpu.matmul %57, %59, %cst_41 {dimension_numbers = #tpu.dot_dimension_numbers<[2], [0], [0, 1], [1], [0, 0, 0, 1, 1, 1], [], []>} : vector<2x13x128xbf16>, vector<128x128xbf16>, vector<2x13x128xf32> -> vector<2x13x128xf32>
    %61 = arith.addf %56, %60 : vector<2x13x128xf32>
    %62 = vector.extract_strided_slice %4 {offsets = [0, 2, 0], sizes = [2, 13, 128], strides = [1, 1, 1]} : vector<2x16x128xbf16> to vector<2x13x128xbf16>
    %c2_42 = arith.constant 2 : index
    %c0_43 = arith.constant 0 : index
    %c0_44 = arith.constant 0 : index
    %63 = vector.load %arg7[%c2_42, %c0_43, %c0_44] : memref<4x128x128xbf16, #tpu.memory_space<vmem>>, vector<1x128x128xbf16>
    %64 = vector.shape_cast %63 : vector<1x128x128xbf16> to vector<128x128xbf16>
    %cst_45 = arith.constant dense<0.000000e+00> : vector<2x13x128xf32>
    %65 = tpu.matmul %62, %64, %cst_45 {dimension_numbers = #tpu.dot_dimension_numbers<[2], [0], [0, 1], [1], [0, 0, 0, 1, 1, 1], [], []>} : vector<2x13x128xbf16>, vector<128x128xbf16>, vector<2x13x128xf32> -> vector<2x13x128xf32>
    %66 = arith.addf %61, %65 : vector<2x13x128xf32>
    %67 = vector.extract_strided_slice %4 {offsets = [0, 3, 0], sizes = [2, 13, 128], strides = [1, 1, 1]} : vector<2x16x128xbf16> to vector<2x13x128xbf16>
    %c3 = arith.constant 3 : index
    %c0_46 = arith.constant 0 : index
    %c0_47 = arith.constant 0 : index
    %68 = vector.load %arg7[%c3, %c0_46, %c0_47] : memref<4x128x128xbf16, #tpu.memory_space<vmem>>, vector<1x128x128xbf16>
    %69 = vector.shape_cast %68 : vector<1x128x128xbf16> to vector<128x128xbf16>
    %cst_48 = arith.constant dense<0.000000e+00> : vector<2x13x128xf32>
    %70 = tpu.matmul %67, %69, %cst_48 {dimension_numbers = #tpu.dot_dimension_numbers<[2], [0], [0, 1], [1], [0, 0, 0, 1, 1, 1], [], []>} : vector<2x13x128xbf16>, vector<128x128xbf16>, vector<2x13x128xf32> -> vector<2x13x128xf32>
    %71 = arith.addf %66, %70 : vector<2x13x128xf32>
    %c0_49 = arith.constant 0 : index
    %c0_50 = arith.constant 0 : index
    %72 = vector.load %arg8[%c0_49, %c0_50] : memref<1x128xf32, #tpu.memory_space<vmem>>, vector<1x128xf32>
    %73 = vector.shape_cast %72 : vector<1x128xf32> to vector<1x1x128xf32>
    %74 = vector.broadcast %73 : vector<1x1x128xf32> to vector<2x13x128xf32>
    %75 = arith.addf %71, %74 : vector<2x13x128xf32>
    %cst_51 = arith.constant 0.000000e+00 : f32
    %76 = vector.broadcast %cst_51 : f32 to vector<2x13x128xf32>
    %77 = arith.maximumf %75, %76 : vector<2x13x128xf32>
    %78 = arith.truncf %77 : vector<2x13x128xf32> to vector<2x13x128xbf16>
    %cst_52 = arith.constant 0.000000e+00 : f32
    %79 = vector.broadcast %cst_52 : f32 to vector<2x10x128xf32>
    %80 = vector.extract_strided_slice %78 {offsets = [0, 0, 0], sizes = [2, 10, 128], strides = [1, 1, 1]} : vector<2x13x128xbf16> to vector<2x10x128xbf16>
    %c0_53 = arith.constant 0 : index
    %c0_54 = arith.constant 0 : index
    %c0_55 = arith.constant 0 : index
    %81 = vector.load %arg9[%c0_53, %c0_54, %c0_55] : memref<4x128x128xbf16, #tpu.memory_space<vmem>>, vector<1x128x128xbf16>
    %82 = vector.shape_cast %81 : vector<1x128x128xbf16> to vector<128x128xbf16>
    %cst_56 = arith.constant dense<0.000000e+00> : vector<2x10x128xf32>
    %83 = tpu.matmul %80, %82, %cst_56 {dimension_numbers = #tpu.dot_dimension_numbers<[2], [0], [0, 1], [1], [0, 0, 0, 1, 1, 1], [], []>} : vector<2x10x128xbf16>, vector<128x128xbf16>, vector<2x10x128xf32> -> vector<2x10x128xf32>
    %84 = arith.addf %79, %83 : vector<2x10x128xf32>
    %85 = vector.extract_strided_slice %78 {offsets = [0, 1, 0], sizes = [2, 10, 128], strides = [1, 1, 1]} : vector<2x13x128xbf16> to vector<2x10x128xbf16>
    %c1_57 = arith.constant 1 : index
    %c0_58 = arith.constant 0 : index
    %c0_59 = arith.constant 0 : index
    %86 = vector.load %arg9[%c1_57, %c0_58, %c0_59] : memref<4x128x128xbf16, #tpu.memory_space<vmem>>, vector<1x128x128xbf16>
    %87 = vector.shape_cast %86 : vector<1x128x128xbf16> to vector<128x128xbf16>
    %cst_60 = arith.constant dense<0.000000e+00> : vector<2x10x128xf32>
    %88 = tpu.matmul %85, %87, %cst_60 {dimension_numbers = #tpu.dot_dimension_numbers<[2], [0], [0, 1], [1], [0, 0, 0, 1, 1, 1], [], []>} : vector<2x10x128xbf16>, vector<128x128xbf16>, vector<2x10x128xf32> -> vector<2x10x128xf32>
    %89 = arith.addf %84, %88 : vector<2x10x128xf32>
    %90 = vector.extract_strided_slice %78 {offsets = [0, 2, 0], sizes = [2, 10, 128], strides = [1, 1, 1]} : vector<2x13x128xbf16> to vector<2x10x128xbf16>
    %c2_61 = arith.constant 2 : index
    %c0_62 = arith.constant 0 : index
    %c0_63 = arith.constant 0 : index
    %91 = vector.load %arg9[%c2_61, %c0_62, %c0_63] : memref<4x128x128xbf16, #tpu.memory_space<vmem>>, vector<1x128x128xbf16>
    %92 = vector.shape_cast %91 : vector<1x128x128xbf16> to vector<128x128xbf16>
    %cst_64 = arith.constant dense<0.000000e+00> : vector<2x10x128xf32>
    %93 = tpu.matmul %90, %92, %cst_64 {dimension_numbers = #tpu.dot_dimension_numbers<[2], [0], [0, 1], [1], [0, 0, 0, 1, 1, 1], [], []>} : vector<2x10x128xbf16>, vector<128x128xbf16>, vector<2x10x128xf32> -> vector<2x10x128xf32>
    %94 = arith.addf %89, %93 : vector<2x10x128xf32>
    %95 = vector.extract_strided_slice %78 {offsets = [0, 3, 0], sizes = [2, 10, 128], strides = [1, 1, 1]} : vector<2x13x128xbf16> to vector<2x10x128xbf16>
    %c3_65 = arith.constant 3 : index
    %c0_66 = arith.constant 0 : index
    %c0_67 = arith.constant 0 : index
    %96 = vector.load %arg9[%c3_65, %c0_66, %c0_67] : memref<4x128x128xbf16, #tpu.memory_space<vmem>>, vector<1x128x128xbf16>
    %97 = vector.shape_cast %96 : vector<1x128x128xbf16> to vector<128x128xbf16>
    %cst_68 = arith.constant dense<0.000000e+00> : vector<2x10x128xf32>
    %98 = tpu.matmul %95, %97, %cst_68 {dimension_numbers = #tpu.dot_dimension_numbers<[2], [0], [0, 1], [1], [0, 0, 0, 1, 1, 1], [], []>} : vector<2x10x128xbf16>, vector<128x128xbf16>, vector<2x10x128xf32> -> vector<2x10x128xf32>
    %99 = arith.addf %94, %98 : vector<2x10x128xf32>
    %c0_69 = arith.constant 0 : index
    %c0_70 = arith.constant 0 : index
    %100 = vector.load %arg10[%c0_69, %c0_70] : memref<1x128xf32, #tpu.memory_space<vmem>>, vector<1x128xf32>
    %101 = vector.shape_cast %100 : vector<1x128xf32> to vector<1x1x128xf32>
    %102 = vector.broadcast %101 : vector<1x1x128xf32> to vector<2x10x128xf32>
    %103 = arith.addf %99, %102 : vector<2x10x128xf32>
    %cst_71 = arith.constant 0.000000e+00 : f32
    %104 = vector.broadcast %cst_71 : f32 to vector<2x10x128xf32>
    %105 = arith.maximumf %103, %104 : vector<2x10x128xf32>
    %cst_72 = arith.constant dense<0xFF800000> : vector<2x128xf32>
    %106 = vector.multi_reduction <maximumf>, %105, %cst_72 [1] : vector<2x10x128xf32> to vector<2x128xf32>
    %cst_73 = arith.constant 0.000000e+00 : f32
    %107 = vector.broadcast %cst_73 : f32 to vector<2x12x128xf32>
    %108 = vector.extract_strided_slice %4 {offsets = [0, 0, 0], sizes = [2, 12, 128], strides = [1, 1, 1]} : vector<2x16x128xbf16> to vector<2x12x128xbf16>
    %c0_74 = arith.constant 0 : index
    %c0_75 = arith.constant 0 : index
    %c0_76 = arith.constant 0 : index
    %109 = vector.load %arg11[%c0_74, %c0_75, %c0_76] : memref<5x128x128xbf16, #tpu.memory_space<vmem>>, vector<1x128x128xbf16>
    %110 = vector.shape_cast %109 : vector<1x128x128xbf16> to vector<128x128xbf16>
    %cst_77 = arith.constant dense<0.000000e+00> : vector<2x12x128xf32>
    %111 = tpu.matmul %108, %110, %cst_77 {dimension_numbers = #tpu.dot_dimension_numbers<[2], [0], [0, 1], [1], [0, 0, 0, 1, 1, 1], [], []>} : vector<2x12x128xbf16>, vector<128x128xbf16>, vector<2x12x128xf32> -> vector<2x12x128xf32>
    %112 = arith.addf %107, %111 : vector<2x12x128xf32>
    %113 = vector.extract_strided_slice %4 {offsets = [0, 1, 0], sizes = [2, 12, 128], strides = [1, 1, 1]} : vector<2x16x128xbf16> to vector<2x12x128xbf16>
    %c1_78 = arith.constant 1 : index
    %c0_79 = arith.constant 0 : index
    %c0_80 = arith.constant 0 : index
    %114 = vector.load %arg11[%c1_78, %c0_79, %c0_80] : memref<5x128x128xbf16, #tpu.memory_space<vmem>>, vector<1x128x128xbf16>
    %115 = vector.shape_cast %114 : vector<1x128x128xbf16> to vector<128x128xbf16>
    %cst_81 = arith.constant dense<0.000000e+00> : vector<2x12x128xf32>
    %116 = tpu.matmul %113, %115, %cst_81 {dimension_numbers = #tpu.dot_dimension_numbers<[2], [0], [0, 1], [1], [0, 0, 0, 1, 1, 1], [], []>} : vector<2x12x128xbf16>, vector<128x128xbf16>, vector<2x12x128xf32> -> vector<2x12x128xf32>
    %117 = arith.addf %112, %116 : vector<2x12x128xf32>
    %118 = vector.extract_strided_slice %4 {offsets = [0, 2, 0], sizes = [2, 12, 128], strides = [1, 1, 1]} : vector<2x16x128xbf16> to vector<2x12x128xbf16>
    %c2_82 = arith.constant 2 : index
    %c0_83 = arith.constant 0 : index
    %c0_84 = arith.constant 0 : index
    %119 = vector.load %arg11[%c2_82, %c0_83, %c0_84] : memref<5x128x128xbf16, #tpu.memory_space<vmem>>, vector<1x128x128xbf16>
    %120 = vector.shape_cast %119 : vector<1x128x128xbf16> to vector<128x128xbf16>
    %cst_85 = arith.constant dense<0.000000e+00> : vector<2x12x128xf32>
    %121 = tpu.matmul %118, %120, %cst_85 {dimension_numbers = #tpu.dot_dimension_numbers<[2], [0], [0, 1], [1], [0, 0, 0, 1, 1, 1], [], []>} : vector<2x12x128xbf16>, vector<128x128xbf16>, vector<2x12x128xf32> -> vector<2x12x128xf32>
    %122 = arith.addf %117, %121 : vector<2x12x128xf32>
    %123 = vector.extract_strided_slice %4 {offsets = [0, 3, 0], sizes = [2, 12, 128], strides = [1, 1, 1]} : vector<2x16x128xbf16> to vector<2x12x128xbf16>
    %c3_86 = arith.constant 3 : index
    %c0_87 = arith.constant 0 : index
    %c0_88 = arith.constant 0 : index
    %124 = vector.load %arg11[%c3_86, %c0_87, %c0_88] : memref<5x128x128xbf16, #tpu.memory_space<vmem>>, vector<1x128x128xbf16>
    %125 = vector.shape_cast %124 : vector<1x128x128xbf16> to vector<128x128xbf16>
    %cst_89 = arith.constant dense<0.000000e+00> : vector<2x12x128xf32>
    %126 = tpu.matmul %123, %125, %cst_89 {dimension_numbers = #tpu.dot_dimension_numbers<[2], [0], [0, 1], [1], [0, 0, 0, 1, 1, 1], [], []>} : vector<2x12x128xbf16>, vector<128x128xbf16>, vector<2x12x128xf32> -> vector<2x12x128xf32>
    %127 = arith.addf %122, %126 : vector<2x12x128xf32>
    %128 = vector.extract_strided_slice %4 {offsets = [0, 4, 0], sizes = [2, 12, 128], strides = [1, 1, 1]} : vector<2x16x128xbf16> to vector<2x12x128xbf16>
    %c4 = arith.constant 4 : index
    %c0_90 = arith.constant 0 : index
    %c0_91 = arith.constant 0 : index
    %129 = vector.load %arg11[%c4, %c0_90, %c0_91] : memref<5x128x128xbf16, #tpu.memory_space<vmem>>, vector<1x128x128xbf16>
    %130 = vector.shape_cast %129 : vector<1x128x128xbf16> to vector<128x128xbf16>
    %cst_92 = arith.constant dense<0.000000e+00> : vector<2x12x128xf32>
    %131 = tpu.matmul %128, %130, %cst_92 {dimension_numbers = #tpu.dot_dimension_numbers<[2], [0], [0, 1], [1], [0, 0, 0, 1, 1, 1], [], []>} : vector<2x12x128xbf16>, vector<128x128xbf16>, vector<2x12x128xf32> -> vector<2x12x128xf32>
    %132 = arith.addf %127, %131 : vector<2x12x128xf32>
    %c0_93 = arith.constant 0 : index
    %c0_94 = arith.constant 0 : index
    %133 = vector.load %arg12[%c0_93, %c0_94] : memref<1x128xf32, #tpu.memory_space<vmem>>, vector<1x128xf32>
    %134 = vector.shape_cast %133 : vector<1x128xf32> to vector<1x1x128xf32>
    %135 = vector.broadcast %134 : vector<1x1x128xf32> to vector<2x12x128xf32>
    %136 = arith.addf %132, %135 : vector<2x12x128xf32>
    %cst_95 = arith.constant 0.000000e+00 : f32
    %137 = vector.broadcast %cst_95 : f32 to vector<2x12x128xf32>
    %138 = arith.maximumf %136, %137 : vector<2x12x128xf32>
    %139 = arith.truncf %138 : vector<2x12x128xf32> to vector<2x12x128xbf16>
    %cst_96 = arith.constant 0.000000e+00 : f32
    %140 = vector.broadcast %cst_96 : f32 to vector<2x8x128xf32>
    %141 = vector.extract_strided_slice %139 {offsets = [0, 0, 0], sizes = [2, 8, 128], strides = [1, 1, 1]} : vector<2x12x128xbf16> to vector<2x8x128xbf16>
    %c0_97 = arith.constant 0 : index
    %c0_98 = arith.constant 0 : index
    %c0_99 = arith.constant 0 : index
    %142 = vector.load %arg13[%c0_97, %c0_98, %c0_99] : memref<5x128x128xbf16, #tpu.memory_space<vmem>>, vector<1x128x128xbf16>
    %143 = vector.shape_cast %142 : vector<1x128x128xbf16> to vector<128x128xbf16>
    %cst_100 = arith.constant dense<0.000000e+00> : vector<2x8x128xf32>
    %144 = tpu.matmul %141, %143, %cst_100 {dimension_numbers = #tpu.dot_dimension_numbers<[2], [0], [0, 1], [1], [0, 0, 0, 1, 1, 1], [], []>} : vector<2x8x128xbf16>, vector<128x128xbf16>, vector<2x8x128xf32> -> vector<2x8x128xf32>
    %145 = arith.addf %140, %144 : vector<2x8x128xf32>
    %146 = vector.extract_strided_slice %139 {offsets = [0, 1, 0], sizes = [2, 8, 128], strides = [1, 1, 1]} : vector<2x12x128xbf16> to vector<2x8x128xbf16>
    %c1_101 = arith.constant 1 : index
    %c0_102 = arith.constant 0 : index
    %c0_103 = arith.constant 0 : index
    %147 = vector.load %arg13[%c1_101, %c0_102, %c0_103] : memref<5x128x128xbf16, #tpu.memory_space<vmem>>, vector<1x128x128xbf16>
    %148 = vector.shape_cast %147 : vector<1x128x128xbf16> to vector<128x128xbf16>
    %cst_104 = arith.constant dense<0.000000e+00> : vector<2x8x128xf32>
    %149 = tpu.matmul %146, %148, %cst_104 {dimension_numbers = #tpu.dot_dimension_numbers<[2], [0], [0, 1], [1], [0, 0, 0, 1, 1, 1], [], []>} : vector<2x8x128xbf16>, vector<128x128xbf16>, vector<2x8x128xf32> -> vector<2x8x128xf32>
    %150 = arith.addf %145, %149 : vector<2x8x128xf32>
    %151 = vector.extract_strided_slice %139 {offsets = [0, 2, 0], sizes = [2, 8, 128], strides = [1, 1, 1]} : vector<2x12x128xbf16> to vector<2x8x128xbf16>
    %c2_105 = arith.constant 2 : index
    %c0_106 = arith.constant 0 : index
    %c0_107 = arith.constant 0 : index
    %152 = vector.load %arg13[%c2_105, %c0_106, %c0_107] : memref<5x128x128xbf16, #tpu.memory_space<vmem>>, vector<1x128x128xbf16>
    %153 = vector.shape_cast %152 : vector<1x128x128xbf16> to vector<128x128xbf16>
    %cst_108 = arith.constant dense<0.000000e+00> : vector<2x8x128xf32>
    %154 = tpu.matmul %151, %153, %cst_108 {dimension_numbers = #tpu.dot_dimension_numbers<[2], [0], [0, 1], [1], [0, 0, 0, 1, 1, 1], [], []>} : vector<2x8x128xbf16>, vector<128x128xbf16>, vector<2x8x128xf32> -> vector<2x8x128xf32>
    %155 = arith.addf %150, %154 : vector<2x8x128xf32>
    %156 = vector.extract_strided_slice %139 {offsets = [0, 3, 0], sizes = [2, 8, 128], strides = [1, 1, 1]} : vector<2x12x128xbf16> to vector<2x8x128xbf16>
    %c3_109 = arith.constant 3 : index
    %c0_110 = arith.constant 0 : index
    %c0_111 = arith.constant 0 : index
    %157 = vector.load %arg13[%c3_109, %c0_110, %c0_111] : memref<5x128x128xbf16, #tpu.memory_space<vmem>>, vector<1x128x128xbf16>
    %158 = vector.shape_cast %157 : vector<1x128x128xbf16> to vector<128x128xbf16>
    %cst_112 = arith.constant dense<0.000000e+00> : vector<2x8x128xf32>
    %159 = tpu.matmul %156, %158, %cst_112 {dimension_numbers = #tpu.dot_dimension_numbers<[2], [0], [0, 1], [1], [0, 0, 0, 1, 1, 1], [], []>} : vector<2x8x128xbf16>, vector<128x128xbf16>, vector<2x8x128xf32> -> vector<2x8x128xf32>
    %160 = arith.addf %155, %159 : vector<2x8x128xf32>
    %161 = vector.extract_strided_slice %139 {offsets = [0, 4, 0], sizes = [2, 8, 128], strides = [1, 1, 1]} : vector<2x12x128xbf16> to vector<2x8x128xbf16>
    %c4_113 = arith.constant 4 : index
    %c0_114 = arith.constant 0 : index
    %c0_115 = arith.constant 0 : index
    %162 = vector.load %arg13[%c4_113, %c0_114, %c0_115] : memref<5x128x128xbf16, #tpu.memory_space<vmem>>, vector<1x128x128xbf16>
    %163 = vector.shape_cast %162 : vector<1x128x128xbf16> to vector<128x128xbf16>
    %cst_116 = arith.constant dense<0.000000e+00> : vector<2x8x128xf32>
    %164 = tpu.matmul %161, %163, %cst_116 {dimension_numbers = #tpu.dot_dimension_numbers<[2], [0], [0, 1], [1], [0, 0, 0, 1, 1, 1], [], []>} : vector<2x8x128xbf16>, vector<128x128xbf16>, vector<2x8x128xf32> -> vector<2x8x128xf32>
    %165 = arith.addf %160, %164 : vector<2x8x128xf32>
    %c0_117 = arith.constant 0 : index
    %c0_118 = arith.constant 0 : index
    %166 = vector.load %arg14[%c0_117, %c0_118] : memref<1x128xf32, #tpu.memory_space<vmem>>, vector<1x128xf32>
    %167 = vector.shape_cast %166 : vector<1x128xf32> to vector<1x1x128xf32>
    %168 = vector.broadcast %167 : vector<1x1x128xf32> to vector<2x8x128xf32>
    %169 = arith.addf %165, %168 : vector<2x8x128xf32>
    %cst_119 = arith.constant 0.000000e+00 : f32
    %170 = vector.broadcast %cst_119 : f32 to vector<2x8x128xf32>
    %171 = arith.maximumf %169, %170 : vector<2x8x128xf32>
    %cst_120 = arith.constant dense<0xFF800000> : vector<2x128xf32>
    %172 = vector.multi_reduction <maximumf>, %171, %cst_120 [1] : vector<2x8x128xf32> to vector<2x128xf32>
    %173 = tpu.concatenate %50, %106, %172 in 1 : vector<2x128xf32>, vector<2x128xf32>, vector<2x128xf32> -> vector<2x384xf32>
    %174 = arith.truncf %173 : vector<2x384xf32> to vector<2x384xbf16>
    %c0_121 = arith.constant 0 : index
    %c0_122 = arith.constant 0 : index
    %175 = vector.load %arg15[%c0_121, %c0_122] : memref<384x128xbf16, #tpu.memory_space<vmem>>, vector<384x128xbf16>
    %cst_123 = arith.constant dense<0.000000e+00> : vector<2x128xf32>
    %176 = tpu.matmul %174, %175, %cst_123 {dimension_numbers = #tpu.dot_dimension_numbers<[1], [0], [0], [1], [0, 0, 1, 1], [], []>} : vector<2x384xbf16>, vector<384x128xbf16>, vector<2x128xf32> -> vector<2x128xf32>
    %c0_124 = arith.constant 0 : index
    %c0_125 = arith.constant 0 : index
    %177 = vector.load %arg16[%c0_124, %c0_125] : memref<1x128xf32, #tpu.memory_space<vmem>>, vector<1x128xf32>
    %178 = vector.broadcast %177 : vector<1x128xf32> to vector<2x128xf32>
    %179 = arith.addf %176, %178 : vector<2x128xf32>
    %180 = arith.negf %179 : vector<2x128xf32>
    %181 = math.exp %180 : vector<2x128xf32>
    %cst_126 = arith.constant 1.000000e+00 : f32
    %182 = vector.broadcast %cst_126 : f32 to vector<2x128xf32>
    %183 = arith.addf %182, %181 : vector<2x128xf32>
    %184 = arith.divf %182, %183 : vector<2x128xf32>
    %c0_127 = arith.constant 0 : index
    %c0_128 = arith.constant 0 : index
    %185 = vector.load %arg17[%c0_127, %c0_128] : memref<2x128xf32, #tpu.memory_space<vmem>>, vector<2x128xf32>
    tpu.vector_store %arg17[%c0_127, %c0_128], %184 {strides = array<i32>} : memref<2x128xf32, #tpu.memory_space<vmem>>, vector<2x128xf32>,
    return
  }
  func.func @transform_0(%arg0: i32, %arg1: memref<32xi32, #tpu.memory_space<smem>>) -> (i32, i32) {
    %c0_i32 = arith.constant 0 : i32
    %c0_i32_0 = arith.constant 0 : i32
    %c0_i32_1 = arith.constant 0 : i32
    return %c0_i32, %c0_i32_0 : i32, i32
  }
  func.func @transform_1(%arg0: i32, %arg1: memref<32xi32, #tpu.memory_space<smem>>) -> (i32, i32, i32) {
    %c0_i32 = arith.constant 0 : i32
    %c0_i32_0 = arith.constant 0 : i32
    %c0_i32_1 = arith.constant 0 : i32
    %c0_i32_2 = arith.constant 0 : i32
    return %c0_i32, %c0_i32_0, %c0_i32_1 : i32, i32, i32
  }
  func.func @transform_2(%arg0: i32, %arg1: memref<32xi32, #tpu.memory_space<smem>>) -> (i32, i32) {
    %c0_i32 = arith.constant 0 : i32
    %c0_i32_0 = arith.constant 0 : i32
    %c0_i32_1 = arith.constant 0 : i32
    return %c0_i32, %c0_i32_0 : i32, i32
  }
  func.func @transform_3(%arg0: i32, %arg1: memref<32xi32, #tpu.memory_space<smem>>) -> (i32, i32, i32) {
    %c0_i32 = arith.constant 0 : i32
    %c0_i32_0 = arith.constant 0 : i32
    %c0_i32_1 = arith.constant 0 : i32
    %c0_i32_2 = arith.constant 0 : i32
    return %c0_i32, %c0_i32_0, %c0_i32_1 : i32, i32, i32
  }
  func.func @transform_4(%arg0: i32, %arg1: memref<32xi32, #tpu.memory_space<smem>>) -> (i32, i32) {
    %c0_i32 = arith.constant 0 : i32
    %c0_i32_0 = arith.constant 0 : i32
    %c0_i32_1 = arith.constant 0 : i32
    return %c0_i32, %c0_i32_0 : i32, i32
  }
  func.func @transform_5(%arg0: i32, %arg1: memref<32xi32, #tpu.memory_space<smem>>) -> (i32, i32, i32) {
    %c0_i32 = arith.constant 0 : i32
    %c0_i32_0 = arith.constant 0 : i32
    %c0_i32_1 = arith.constant 0 : i32
    %c0_i32_2 = arith.constant 0 : i32
    return %c0_i32, %c0_i32_0, %c0_i32_1 : i32, i32, i32
  }
  func.func @transform_6(%arg0: i32, %arg1: memref<32xi32, #tpu.memory_space<smem>>) -> (i32, i32) {
    %c0_i32 = arith.constant 0 : i32
    %c0_i32_0 = arith.constant 0 : i32
    %c0_i32_1 = arith.constant 0 : i32
    return %c0_i32, %c0_i32_0 : i32, i32
  }
  func.func @transform_7(%arg0: i32, %arg1: memref<32xi32, #tpu.memory_space<smem>>) -> (i32, i32, i32) {
    %c0_i32 = arith.constant 0 : i32
    %c0_i32_0 = arith.constant 0 : i32
    %c0_i32_1 = arith.constant 0 : i32
    %c0_i32_2 = arith.constant 0 : i32
    return %c0_i32, %c0_i32_0, %c0_i32_1 : i32, i32, i32
  }
  func.func @transform_8(%arg0: i32, %arg1: memref<32xi32, #tpu.memory_space<smem>>) -> (i32, i32) {
    %c0_i32 = arith.constant 0 : i32
    %c0_i32_0 = arith.constant 0 : i32
    %c0_i32_1 = arith.constant 0 : i32
    return %c0_i32, %c0_i32_0 : i32, i32
  }
  func.func @transform_9(%arg0: i32, %arg1: memref<32xi32, #tpu.memory_space<smem>>) -> (i32, i32, i32) {
    %c0_i32 = arith.constant 0 : i32
    %c0_i32_0 = arith.constant 0 : i32
    %c0_i32_1 = arith.constant 0 : i32
    %c0_i32_2 = arith.constant 0 : i32
    return %c0_i32, %c0_i32_0, %c0_i32_1 : i32, i32, i32
  }
  func.func @transform_10(%arg0: i32, %arg1: memref<32xi32, #tpu.memory_space<smem>>) -> (i32, i32) {
    %c0_i32 = arith.constant 0 : i32
    %c0_i32_0 = arith.constant 0 : i32
    %c0_i32_1 = arith.constant 0 : i32
    return %c0_i32, %c0_i32_0 : i32, i32
  }
  func.func @transform_11(%arg0: i32, %arg1: memref<32xi32, #tpu.memory_space<smem>>) -> (i32, i32, i32) {
    %c0_i32 = arith.constant 0 : i32
    %c0_i32_0 = arith.constant 0 : i32
    %c0_i32_1 = arith.constant 0 : i32
    %c0_i32_2 = arith.constant 0 : i32
    return %c0_i32, %c0_i32_0, %c0_i32_1 : i32, i32, i32
  }
  func.func @transform_12(%arg0: i32, %arg1: memref<32xi32, #tpu.memory_space<smem>>) -> (i32, i32) {
    %c0_i32 = arith.constant 0 : i32
    %c0_i32_0 = arith.constant 0 : i32
    %c0_i32_1 = arith.constant 0 : i32
    return %c0_i32, %c0_i32_0 : i32, i32
  }
  func.func @transform_13(%arg0: i32, %arg1: memref<32xi32, #tpu.memory_space<smem>>) -> (i32, i32) {
    %c0_i32 = arith.constant 0 : i32
    %c0_i32_0 = arith.constant 0 : i32
    %c0_i32_1 = arith.constant 0 : i32
    return %c0_i32, %c0_i32_0 : i32, i32
  }
  func.func @transform_14(%arg0: i32, %arg1: memref<32xi32, #tpu.memory_space<smem>>) -> (i32, i32) {
    %c0_i32 = arith.constant 0 : i32
    %c0_i32_0 = arith.constant 0 : i32
    %c0_i32_1 = arith.constant 0 : i32
    return %c0_i32, %c0_i32_0 : i32, i32
  }
  func.func @transform_15(%arg0: i32, %arg1: memref<32xi32, #tpu.memory_space<smem>>) -> (i32, i32) {
    %c0_i32 = arith.constant 0 : i32
    %c0_i32_0 = arith.constant 0 : i32
    return %arg0, %c0_i32 : i32, i32
  }
}

</mosaic_0001>

<llo_original>
// kernel: tpu_custom_call.1
$region0: #{tpu_custom_call.1}
  #allocation0 [shape = 'u32[]', space=smem, size = 0x4, offset = 0x4, fixed_abs, tag = 'smem constant byte address 0x4 - core index']
  #allocation1 [shape = 'u32[144,128]{1,0:T(1,128)}', space=vmem, size = 0x12000, scoped, tag = 'internal scratch']
  #allocation2 [shape = 'f32[32,128]{1,0:T(8,128)}', space=vmem, size = 0x4000, scoped, tag = 'scratch operand']
  #allocation3 [shape = 's32[1]{0}', space=sflag, size = 0x4, scoped, tag = 'scoped memory for tpu_custom_call.1']
  #allocation4 [shape = 'u8[512]{0}', space=smem, size = 0x200, scoped, tag = 'prefetched SMEM operand 0']
  %s0 = inlined_call_operand.hbm [shape: s32[32], index: 0, kind: input, shape index: {}]
  %s1 = inlined_call_operand.hbm [shape: f32[50,128], index: 1, kind: input, shape index: {}]
  %s2 = inlined_call_operand.hbm [shape: bf16[3,128,128], index: 2, kind: input, shape index: {}]
  %s3 = inlined_call_operand.vmem [shape: f32[1,128], index: 3, kind: input, shape index: {}]
  %s4 = inlined_call_operand.hbm [shape: bf16[3,128,128], index: 4, kind: input, shape index: {}]
  %s5 = inlined_call_operand.vmem [shape: f32[1,128], index: 5, kind: input, shape index: {}]
  %s6 = inlined_call_operand.hbm [shape: bf16[4,128,128], index: 6, kind: input, shape index: {}]
  %s7 = inlined_call_operand.vmem [shape: f32[1,128], index: 7, kind: input, shape index: {}]
  %s8 = inlined_call_operand.hbm [shape: bf16[4,128,128], index: 8, kind: input, shape index: {}]
  %s9 = inlined_call_operand.vmem [shape: f32[1,128], index: 9, kind: input, shape index: {}]
  %s10 = inlined_call_operand.hbm [shape: bf16[5,128,128], index: 10, kind: input, shape index: {}]
  %s11 = inlined_call_operand.vmem [shape: f32[1,128], index: 11, kind: input, shape index: {}]
  %s12 = inlined_call_operand.hbm [shape: bf16[5,128,128], index: 12, kind: input, shape index: {}]
  %s13 = inlined_call_operand.vmem [shape: f32[1,128], index: 13, kind: input, shape index: {}]
  %s14 = inlined_call_operand.hbm [shape: bf16[384,128], index: 14, kind: input, shape index: {}]
  %s15 = inlined_call_operand.vmem [shape: f32[1,128], index: 15, kind: input, shape index: {}]
  %s16 = inlined_call_operand.hbm [shape: f32[2,128], index: 16, kind: output, shape index: {}]
  %s17 = sld [smem:[#allocation0]]
  $region109: #{tpu_custom_call.1} parent=0
    _
  %s19 = ssub.s32 1, %s17
  %s20 = scalar_select 0, %s19, %s17
  %22 = dma.hbm_to_smem %s0, 16, [#allocation4], [#allocation3]
  %23 = dma.done [#allocation3], 16
  %24 = sfence
  $region1: #{tpu_custom_call.1} parent=0
    #allocation5 [shape = 'u8[28672]{0}', space=vmem, size = 0x7000, scoped, tag = 'input window, operand 1, single buffered']
    #allocation6 [shape = 's32[1]{0}', space=sflag, size = 0x4, scoped, tag = 'scoped memory for tpu_custom_call.1']
    #allocation7 [shape = 's32[1]{0}', space=sflag, size = 0x4, scoped, tag = 'scoped memory for tpu_custom_call.1']
    #allocation8 [shape = 'u8[98304]{0}', space=vmem, size = 0x18000, scoped, tag = 'input window, operand 2, single buffered']
    #allocation9 [shape = 's32[1]{0}', space=sflag, size = 0x4, scoped, tag = 'scoped memory for tpu_custom_call.1']
    #allocation10 [shape = 'u8[98304]{0}', space=vmem, size = 0x18000, scoped, tag = 'input window, operand 4, single buffered']
    #allocation11 [shape = 'u8[131072]{0}', space=vmem, size = 0x20000, scoped, tag = 'input window, operand 6, single buffered']
    #allocation12 [shape = 's32[1]{0}', space=sflag, size = 0x4, scoped, tag = 'scoped memory for tpu_custom_call.1']
    #allocation13 [shape = 'u8[131072]{0}', space=vmem, size = 0x20000, scoped, tag = 'input window, operand 8, single buffered']
    #allocation14 [shape = 'u8[163840]{0}', space=vmem, size = 0x28000, scoped, tag = 'input window, operand 10, single buffered']
    #allocation15 [shape = 's32[1]{0}', space=sflag, size = 0x4, scoped, tag = 'scoped memory for tpu_custom_call.1']
    #allocation16 [shape = 'u8[163840]{0}', space=vmem, size = 0x28000, scoped, tag = 'input window, operand 12, single buffered']
    #allocation17 [shape = 'u8[98304]{0}', space=vmem, size = 0x18000, scoped, tag = 'input window, operand 14, single buffered']
    #allocation18 [shape = 's32[1]{0}', space=sflag, size = 0x4, scoped, tag = 'scoped memory for tpu_custom_call.1']
    #allocation19 [shape = 'u8[1024]{0}', space=vmem, size = 0x400, scoped, tag = 'output window, operand 0, single buffered']
    %25 = vsyncpa [#allocation6], 0
    %26 = vsyncpa [#allocation9], 0
    %27 = vsyncpa [#allocation12], 0
    %28 = vsyncpa [#allocation15], 0
    %29 = vsyncpa [#allocation18], 0
    %30 = vsyncpa [#allocation7], 0
    // Predicated region
    $region2: #{tpu_custom_call.1} parent=1 // pred_check
      _
    $region3: #{tpu_custom_call.1} parent=1 // pred_check_branch
      %32 = sbr.rel (0) target = $region5
    $region4: #{tpu_custom_call.1} parent=1 // pred_region
      %s34 = ssub.s32 896, 896
      %35 = vsyncadd [#allocation6], %s34
      %s36 = sshll.u32 [#allocation5], 4
      %s37 = int_to_ptr.vmem [resolvable:$true] %s36
      %42 = dma.hbm_to_vmem [thread:$0]  %s1, 896, %s37, [#allocation6], 128, 128, 8
    $region5: #{tpu_custom_call.1} parent=1 // pred_fallthru
      _
    // Predicated region
    $region6: #{tpu_custom_call.1} parent=1 // pred_check
      _
    $region7: #{tpu_custom_call.1} parent=1 // pred_check_branch
      %44 = sbr.rel (0) target = $region9
    $region8: #{tpu_custom_call.1} parent=1 // pred_region
      %s46 = ssub.s32 3072, 3072
      %47 = vsyncadd [#allocation9], %s46
      %s48 = sshll.u32 [#allocation8], 4
      %s49 = int_to_ptr.vmem [resolvable:$true] %s48
      %54 = dma.hbm_to_vmem [thread:$0]  %s2, 3072, %s49, [#allocation9], 64, 64, 4
    $region9: #{tpu_custom_call.1} parent=1 // pred_fallthru
      _
    // Predicated region
    $region10: #{tpu_custom_call.1} parent=1 // pred_check
      _
    $region11: #{tpu_custom_call.1} parent=1 // pred_check_branch
      %56 = sbr.rel (0) target = $region13
    $region12: #{tpu_custom_call.1} parent=1 // pred_region
      _
    $region13: #{tpu_custom_call.1} parent=1 // pred_fallthru
      _
    // Predicated region
    $region14: #{tpu_custom_call.1} parent=1 // pred_check
      _
    $region15: #{tpu_custom_call.1} parent=1 // pred_check_branch
      %58 = sbr.rel (0) target = $region17
    $region16: #{tpu_custom_call.1} parent=1 // pred_region
      %s60 = ssub.s32 3072, 3072
      %61 = vsyncadd [#allocation9], %s60
      %s62 = sshll.u32 [#allocation10], 4
      %s63 = int_to_ptr.vmem [resolvable:$true] %s62
      %68 = dma.hbm_to_vmem [thread:$0]  %s4, 3072, %s63, [#allocation9], 64, 64, 4
    $region17: #{tpu_custom_call.1} parent=1 // pred_fallthru
      _
    // Predicated region
    $region18: #{tpu_custom_call.1} parent=1 // pred_check
      _
    $region19: #{tpu_custom_call.1} parent=1 // pred_check_branch
      %70 = sbr.rel (0) target = $region21
    $region20: #{tpu_custom_call.1} parent=1 // pred_region
      _
    $region21: #{tpu_custom_call.1} parent=1 // pred_fallthru
      _
    // Predicated region
    $region22: #{tpu_custom_call.1} parent=1 // pred_check
      _
    $region23: #{tpu_custom_call.1} parent=1 // pred_check_branch
      %72 = sbr.rel (0) target = $region25
    $region24: #{tpu_custom_call.1} parent=1 // pred_region
      %s74 = ssub.s32 4096, 4096
      %75 = vsyncadd [#allocation12], %s74
      %s76 = sshll.u32 [#allocation11], 4
      %s77 = int_to_ptr.vmem [resolvable:$true] %s76
      %82 = dma.hbm_to_vmem [thread:$0]  %s6, 4096, %s77, [#allocation12], 64, 64, 4
    $region25: #{tpu_custom_call.1} parent=1 // pred_fallthru
      _
    // Predicated region
    $region26: #{tpu_custom_call.1} parent=1 // pred_check
      _
    $region27: #{tpu_custom_call.1} parent=1 // pred_check_branch
      %84 = sbr.rel (0) target = $region29
    $region28: #{tpu_custom_call.1} parent=1 // pred_region
      _
    $region29: #{tpu_custom_call.1} parent=1 // pred_fallthru
      _
    // Predicated region
    $region30: #{tpu_custom_call.1} parent=1 // pred_check
      _
    $region31: #{tpu_custom_call.1} parent=1 // pred_check_branch
      %86 = sbr.rel (0) target = $region33
    $region32: #{tpu_custom_call.1} parent=1 // pred_region
      %s88 = ssub.s32 4096, 4096
      %89 = vsyncadd [#allocation12], %s88
      %s90 = sshll.u32 [#allocation13], 4
      %s91 = int_to_ptr.vmem [resolvable:$true] %s90
      %96 = dma.hbm_to_vmem [thread:$0]  %s8, 4096, %s91, [#allocation12], 64, 64, 4
    $region33: #{tpu_custom_call.1} parent=1 // pred_fallthru
      _
    // Predicated region
    $region34: #{tpu_custom_call.1} parent=1 // pred_check
      _
    $region35: #{tpu_custom_call.1} parent=1 // pred_check_branch
      %98 = sbr.rel (0) target = $region37
    $region36: #{tpu_custom_call.1} parent=1 // pred_region
      _
    $region37: #{tpu_custom_call.1} parent=1 // pred_fallthru
      _
    // Predicated region
    $region38: #{tpu_custom_call.1} parent=1 // pred_check
      _
    $region39: #{tpu_custom_call.1} parent=1 // pred_check_branch
      %100 = sbr.rel (0) target = $region41
    $region40: #{tpu_custom_call.1} parent=1 // pred_region
      %s102 = ssub.s32 5120, 5120
      %103 = vsyncadd [#allocation15], %s102
      %s104 = sshll.u32 [#allocation14], 4
      %s105 = int_to_ptr.vmem [resolvable:$true] %s104
      %110 = dma.hbm_to_vmem [thread:$0]  %s10, 5120, %s105, [#allocation15], 64, 64, 4
    $region41: #{tpu_custom_call.1} parent=1 // pred_fallthru
      _
    // Predicated region
    $region42: #{tpu_custom_call.1} parent=1 // pred_check
      _
    $region43: #{tpu_custom_call.1} parent=1 // pred_check_branch
      %112 = sbr.rel (0) target = $region45
    $region44: #{tpu_custom_call.1} parent=1 // pred_region
      _
    $region45: #{tpu_custom_call.1} parent=1 // pred_fallthru
      _
    // Predicated region
    $region46: #{tpu_custom_call.1} parent=1 // pred_check
      _
    $region47: #{tpu_custom_call.1} parent=1 // pred_check_branch
      %114 = sbr.rel (0) target = $region49
    $region48: #{tpu_custom_call.1} parent=1 // pred_region
      %s116 = ssub.s32 5120, 5120
      %117 = vsyncadd [#allocation15], %s116
      %s118 = sshll.u32 [#allocation16], 4
      %s119 = int_to_ptr.vmem [resolvable:$true] %s118
      %124 = dma.hbm_to_vmem [thread:$0]  %s12, 5120, %s119, [#allocation15], 64, 64, 4
    $region49: #{tpu_custom_call.1} parent=1 // pred_fallthru
      _
    // Predicated region
    $region50: #{tpu_custom_call.1} parent=1 // pred_check
      _
    $region51: #{tpu_custom_call.1} parent=1 // pred_check_branch
      %126 = sbr.rel (0) target = $region53
    $region52: #{tpu_custom_call.1} parent=1 // pred_region
      _
    $region53: #{tpu_custom_call.1} parent=1 // pred_fallthru
      _
    // Predicated region
    $region54: #{tpu_custom_call.1} parent=1 // pred_check
      _
    $region55: #{tpu_custom_call.1} parent=1 // pred_check_branch
      %128 = sbr.rel (0) target = $region57
    $region56: #{tpu_custom_call.1} parent=1 // pred_region
      %s130 = ssub.s32 3072, 3072
      %131 = vsyncadd [#allocation18], %s130
      %s132 = sshll.u32 [#allocation17], 4
      %s133 = int_to_ptr.vmem [resolvable:$true] %s132
      %138 = dma.hbm_to_vmem [thread:$0]  %s14, 3072, %s133, [#allocation18], 64, 64, 4
    $region57: #{tpu_custom_call.1} parent=1 // pred_fallthru
      _
    // Predicated region
    $region58: #{tpu_custom_call.1} parent=1 // pred_check
      _
    $region59: #{tpu_custom_call.1} parent=1 // pred_check_branch
      %140 = sbr.rel (0) target = $region61
    $region60: #{tpu_custom_call.1} parent=1 // pred_region
      _
    $region61: #{tpu_custom_call.1} parent=1 // pred_fallthru
      _
    // Predicated region
    $region62: #{tpu_custom_call.1} parent=1 // pred_check
      _
    $region63: #{tpu_custom_call.1} parent=1 // pred_check_branch
      %142 = sbr.rel (0) target = $region65
    $region64: #{tpu_custom_call.1} parent=1 // pred_region
      %143 = dma.done [#allocation6], 896
    $region65: #{tpu_custom_call.1} parent=1 // pred_fallthru
      _
    // Predicated region
    $region66: #{tpu_custom_call.1} parent=1 // pred_check
      _
    $region67: #{tpu_custom_call.1} parent=1 // pred_check_branch
      %145 = sbr.rel (0) target = $region69
    $region68: #{tpu_custom_call.1} parent=1 // pred_region
      %146 = dma.done [#allocation9], 3072
    $region69: #{tpu_custom_call.1} parent=1 // pred_fallthru
      _
    // Predicated region
    $region70: #{tpu_custom_call.1} parent=1 // pred_check
      _
    $region71: #{tpu_custom_call.1} parent=1 // pred_check_branch
      %148 = sbr.rel (0) target = $region73
    $region72: #{tpu_custom_call.1} parent=1 // pred_region
      %149 = dma.done [#allocation9], 3072
    $region73: #{tpu_custom_call.1} parent=1 // pred_fallthru
      _
    // Predicated region
    $region74: #{tpu_custom_call.1} parent=1 // pred_check
      _
    $region75: #{tpu_custom_call.1} parent=1 // pred_check_branch
      %151 = sbr.rel (0) target = $region77
    $region76: #{tpu_custom_call.1} parent=1 // pred_region
      %152 = dma.done [#allocation12], 4096
    $region77: #{tpu_custom_call.1} parent=1 // pred_fallthru
      _
    // Predicated region
    $region78: #{tpu_custom_call.1} parent=1 // pred_check
      _
    $region79: #{tpu_custom_call.1} parent=1 // pred_check_branch
      %154 = sbr.rel (0) target = $region81
    $region80: #{tpu_custom_call.1} parent=1 // pred_region
      %155 = dma.done [#allocation12], 4096
    $region81: #{tpu_custom_call.1} parent=1 // pred_fallthru
      _
    // Predicated region
    $region82: #{tpu_custom_call.1} parent=1 // pred_check
      _
    $region83: #{tpu_custom_call.1} parent=1 // pred_check_branch
      %157 = sbr.rel (0) target = $region85
    $region84: #{tpu_custom_call.1} parent=1 // pred_region
      %158 = dma.done [#allocation15], 5120
    $region85: #{tpu_custom_call.1} parent=1 // pred_fallthru
      _
    // Predicated region
    $region86: #{tpu_custom_call.1} parent=1 // pred_check
      _
    $region87: #{tpu_custom_call.1} parent=1 // pred_check_branch
      %160 = sbr.rel (0) target = $region89
    $region88: #{tpu_custom_call.1} parent=1 // pred_region
      %161 = dma.done [#allocation15], 5120
    $region89: #{tpu_custom_call.1} parent=1 // pred_fallthru
      _
    // Predicated region
    $region90: #{tpu_custom_call.1} parent=1 // pred_check
      _
    $region91: #{tpu_custom_call.1} parent=1 // pred_check_branch
      %163 = sbr.rel (0) target = $region93
    $region92: #{tpu_custom_call.1} parent=1 // pred_region
      %164 = dma.done [#allocation18], 3072
    $region93: #{tpu_custom_call.1} parent=1 // pred_fallthru
      _
    %s166 = smul.u32 0, 32
    loop: start=0, step=1, limit=32
    $region94: #{tpu_custom_call.1} parent=1 // loop_pre_header
      _
    $region95: #{tpu_custom_call.1} parent=1 // loop_header
      %s168 = sphi 0, %s172
      %p169 = scmp.ge.s32.totalorder %s168, 32
    $region96: #{tpu_custom_call.1} parent=1 // loop_header_branch
      %171 = sbr.rel (%p169) target = $region100
    $region97: #{tpu_custom_call.1} parent=1 // loop_body
      %s173 = sadd.s32 %s166, %s168
      %s174 = sld [smem:[#allocation4 + %s173]]
      %s175 = scalar_lea.vmem [#allocation5], %s174
      %v176 = vld [vmem:[%s175] sm:$0x1]
      %s177 = scalar_lea.vmem [#allocation2], %s168
      %178 = vst [vmem:[%s177] sm:$0x1] %v176
    $region98: #{tpu_custom_call.1} parent=1 // loop_footer
      %s172 = sadd.s32 1, %s168
    $region99: #{tpu_custom_call.1} parent=1 // loop_footer_branch
      %167 = sbr.rel target = $region95
    $region100: #{tpu_custom_call.1} parent=1 // loop_exit
      _
    %v179 = vld [vmem:[#allocation2] sm:$0xff]
    %v180 = vld [vmem:[#allocation2 + $0x8] sm:$0xff]
    %v181 = vld [vmem:[#allocation2 + $0x10] sm:$0xff]
    %v182 = vld [vmem:[#allocation2 + $0x18] sm:$0xff]
    %v183 = vpack.c.bf16 %v180, %v179
    %v184 = vpack.c.bf16 %v182, %v181
    %v185 = vld [vmem:[#allocation8] sm:$0xf]
    %v186 = vld [vmem:[#allocation8 + $0x4] sm:$0xf]
    %v187 = vld [vmem:[#allocation8 + $0x8] sm:$0xf]
    %v188 = vld [vmem:[#allocation8 + $0xc] sm:$0xf]
    %v189 = vld [vmem:[#allocation8 + $0x10] sm:$0xf]
    %v190 = vld [vmem:[#allocation8 + $0x14] sm:$0xf]
    %v191 = vld [vmem:[#allocation8 + $0x18] sm:$0xf]
    %v192 = vld [vmem:[#allocation8 + $0x1c] sm:$0xf]
    %v193 = vld [vmem:[#allocation8 + $0x20] sm:$0xf]
    %v194 = vld [vmem:[#allocation8 + $0x24] sm:$0xf]
    %v195 = vld [vmem:[#allocation8 + $0x28] sm:$0xf]
    %v196 = vld [vmem:[#allocation8 + $0x2c] sm:$0xf]
    %v197 = vld [vmem:[#allocation8 + $0x30] sm:$0xf]
    %v198 = vld [vmem:[#allocation8 + $0x34] sm:$0xf]
    %v199 = vld [vmem:[#allocation8 + $0x38] sm:$0xf]
    %v200 = vld [vmem:[#allocation8 + $0x3c] sm:$0xf]
    %s201 = scalar_lea.vmem [#allocation8], 64
    %v202 = vld [vmem:[%s201] sm:$0xf]
    %v203 = vld [vmem:[%s201 + $0x4] sm:$0xf]
    %v204 = vld [vmem:[%s201 + $0x8] sm:$0xf]
    %v205 = vld [vmem:[%s201 + $0xc] sm:$0xf]
    %v206 = vld [vmem:[%s201 + $0x10] sm:$0xf]
    %v207 = vld [vmem:[%s201 + $0x14] sm:$0xf]
    %v208 = vld [vmem:[%s201 + $0x18] sm:$0xf]
    %v209 = vld [vmem:[%s201 + $0x1c] sm:$0xf]
    %v210 = vld [vmem:[%s201 + $0x20] sm:$0xf]
    %v211 = vld [vmem:[%s201 + $0x24] sm:$0xf]
    %v212 = vld [vmem:[%s201 + $0x28] sm:$0xf]
    %v213 = vld [vmem:[%s201 + $0x2c] sm:$0xf]
    %v214 = vld [vmem:[%s201 + $0x30] sm:$0xf]
    %v215 = vld [vmem:[%s201 + $0x34] sm:$0xf]
    %v216 = vld [vmem:[%s201 + $0x38] sm:$0xf]
    %v217 = vld [vmem:[%s201 + $0x3c] sm:$0xf]
    %v220 = vcombine.high %v183, %v183
    %v222 = vunpack.c.l.s4 1966171168
    %v223 = vunpack.c.0.s8 %v222
    %v224 = vlaneseq
    %v225 = vshrl.u32 %v224, 7
    %v226 = vsub.s32 %v223, %v225
    %v227 = vrot.slane %v183, %v226
    %v229 = vunpack.c.l.s4 1966171168
    %v230 = vunpack.c.0.s8 %v229
    %v231 = vlaneseq
    %v232 = vshrl.u32 %v231, 7
    %v233 = vsub.s32 %v230, %v232
    %v234 = vrot.slane %v220, %v233
    %v235 = vcombine.high %v227, %v227
    %v236 = vcombine.high %v234, %v234
    %v238 = vunpack.c.l.s4 1966171168
    %v239 = vunpack.c.0.s8 %v238
    %v240 = vlaneseq
    %v241 = vshrl.u32 %v240, 7
    %v242 = vsub.s32 %v239, %v241
    %v243 = vrot.slane %v227, %v242
    %v245 = vunpack.c.l.s4 1966171168
    %v246 = vunpack.c.0.s8 %v245
    %v247 = vlaneseq
    %v248 = vshrl.u32 %v247, 7
    %v249 = vsub.s32 %v246, %v248
    %v250 = vrot.slane %v234, %v249
    %v252 = vunpack.c.l.s4 1966171168
    %v253 = vunpack.c.0.s8 %v252
    %v254 = vlaneseq
    %v255 = vshrl.u32 %v254, 7
    %v256 = vsub.s32 %v253, %v255
    %v257 = vrot.slane %v235, %v256
    %v259 = vunpack.c.l.s4 1966171168
    %v260 = vunpack.c.0.s8 %v259
    %v261 = vlaneseq
    %v262 = vshrl.u32 %v261, 7
    %v263 = vsub.s32 %v260, %v262
    %v264 = vrot.slane %v236, %v263
    %v265 = vcombine.high %v243, %v243
    %v266 = vcombine.high %v250, %v250
    %v267 = vcombine.high %v257, %v257
    %v268 = vcombine.high %v264, %v264
    %v269 = vcombine.high %v184, %v184
    %v271 = vunpack.c.l.s4 1966171168
    %v272 = vunpack.c.0.s8 %v271
    %v273 = vlaneseq
    %v274 = vshrl.u32 %v273, 7
    %v275 = vsub.s32 %v272, %v274
    %v276 = vrot.slane %v184, %v275
    %v278 = vunpack.c.l.s4 1966171168
    %v279 = vunpack.c.0.s8 %v278
    %v280 = vlaneseq
    %v281 = vshrl.u32 %v280, 7
    %v282 = vsub.s32 %v279, %v281
    %v283 = vrot.slane %v269, %v282
    %v284 = vcombine.high %v276, %v276
    %v285 = vcombine.high %v283, %v283
    %v287 = vunpack.c.l.s4 1966171168
    %v288 = vunpack.c.0.s8 %v287
    %v289 = vlaneseq
    %v290 = vshrl.u32 %v289, 7
    %v291 = vsub.s32 %v288, %v290
    %v292 = vrot.slane %v276, %v291
    %v294 = vunpack.c.l.s4 1966171168
    %v295 = vunpack.c.0.s8 %v294
    %v296 = vlaneseq
    %v297 = vshrl.u32 %v296, 7
    %v298 = vsub.s32 %v295, %v297
    %v299 = vrot.slane %v283, %v298
    %v301 = vunpack.c.l.s4 1966171168
    %v302 = vunpack.c.0.s8 %v301
    %v303 = vlaneseq
    %v304 = vshrl.u32 %v303, 7
    %v305 = vsub.s32 %v302, %v304
    %v306 = vrot.slane %v284, %v305
    %v308 = vunpack.c.l.s4 1966171168
    %v309 = vunpack.c.0.s8 %v308
    %v310 = vlaneseq
    %v311 = vshrl.u32 %v310, 7
    %v312 = vsub.s32 %v309, %v311
    %v313 = vrot.slane %v285, %v312
    %v314 = vcombine.high %v292, %v292
    %v315 = vcombine.high %v299, %v299
    %v316 = vcombine.high %v306, %v306
    %v317 = vcombine.high %v313, %v313
    %vm318 = vsmask.f32 256
    %vm319 = vsmask.f32 1284
    %vm320 = vmor %vm318, %vm319
    %vm321 = vsmask.f32 2312
    %vm322 = vmor %vm320, %vm321
    %vm323 = vsmask.f32 3340
    %vm324 = vmor %vm322, %vm323
    %vm325 = vsmask.f32 4368
    %vm326 = vmor %vm324, %vm325
    %vm327 = vsmask.f32 5396
    %vm328 = vmor %vm326, %vm327
    %vm329 = vsmask.f32 6424
    %vm330 = vmor %vm328, %vm329
    %vm331 = vsmask.f32 7452
    %vm332 = vmor %vm330, %vm331
    %v334 = vshrl.u32 %v243, 16
    %v336 = vrot.slane %v334, 7
    %v337 = vrot.slane %v336, 1
    %v339 = vshll.u32 %v257, 16
    %v341 = vsel %vm332, %v337, %v339
    %v342 = vshrl.u32 %v257, 16
    %v344 = vrot.slane %v342, 7
    %v345 = vrot.slane %v344, 1
    %v347 = vshll.u32 %v265, 16
    %v349 = vsel %vm332, %v345, %v347
    %v350 = vshrl.u32 %v265, 16
    %v352 = vrot.slane %v350, 7
    %v353 = vrot.slane %v352, 1
    %v355 = vshll.u32 %v267, 16
    %v357 = vsel %vm332, %v353, %v355
    %v358 = vshrl.u32 %v267, 16
    %v360 = vrot.slane %v358, 7
    %v361 = vrot.slane %v360, 1
    %v363 = vshll.u32 %v250, 16
    %v365 = vsel %vm332, %v361, %v363
    %v366 = vshrl.u32 %v250, 16
    %v368 = vrot.slane %v366, 7
    %v369 = vrot.slane %v368, 1
    %v371 = vshll.u32 %v264, 16
    %v373 = vsel %vm332, %v369, %v371
    %v374 = vshrl.u32 %v264, 16
    %v376 = vrot.slane %v374, 7
    %v377 = vrot.slane %v376, 1
    %v379 = vshll.u32 %v266, 16
    %v381 = vsel %vm332, %v377, %v379
    %v382 = vshrl.u32 %v266, 16
    %v384 = vrot.slane %v382, 7
    %v385 = vrot.slane %v384, 1
    %v387 = vshll.u32 %v268, 16
    %v389 = vsel %vm332, %v385, %v387
    %v391 = vshrl.u32 %v292, 16
    %v393 = vrot.slane %v391, 7
    %v394 = vrot.slane %v393, 1
    %v396 = vshll.u32 %v306, 16
    %v398 = vsel %vm332, %v394, %v396
    %v399 = vshrl.u32 %v306, 16
    %v401 = vrot.slane %v399, 7
    %v402 = vrot.slane %v401, 1
    %v404 = vshll.u32 %v314, 16
    %v406 = vsel %vm332, %v402, %v404
    %v407 = vshrl.u32 %v314, 16
    %v409 = vrot.slane %v407, 7
    %v410 = vrot.slane %v409, 1
    %v412 = vshll.u32 %v316, 16
    %v414 = vsel %vm332, %v410, %v412
    %v415 = vshrl.u32 %v316, 16
    %v417 = vrot.slane %v415, 7
    %v418 = vrot.slane %v417, 1
    %v420 = vshll.u32 %v299, 16
    %v422 = vsel %vm332, %v418, %v420
    %v423 = vshrl.u32 %v299, 16
    %v425 = vrot.slane %v423, 7
    %v426 = vrot.slane %v425, 1
    %v428 = vshll.u32 %v313, 16
    %v430 = vsel %vm332, %v426, %v428
    %v431 = vshrl.u32 %v313, 16
    %v433 = vrot.slane %v431, 7
    %v434 = vrot.slane %v433, 1
    %v436 = vshll.u32 %v315, 16
    %v438 = vsel %vm332, %v434, %v436
    %v439 = vshrl.u32 %v315, 16
    %v441 = vrot.slane %v439, 7
    %v442 = vrot.slane %v441, 1
    %v444 = vshll.u32 %v317, 16
    %v446 = vsel %vm332, %v442, %v444
    %v447 = vcombine.low %v341, %v349
    %v448 = vcombine.low %v357, %v365
    %v449 = vcombine.low %v373, %v381
    %v450 = vcombine.low %v389, %v398
    %v452 = vunpack.c.l.s4 1966171168
    %v453 = vunpack.c.0.s8 %v452
    %v454 = vlaneseq
    %v455 = vshrl.u32 %v454, 7
    %v456 = vsub.s32 %v453, %v455
    %v457 = vrot.slane %v447, %v456
    %v459 = vunpack.c.l.s4 1966171168
    %v460 = vunpack.c.0.s8 %v459
    %v461 = vlaneseq
    %v462 = vshrl.u32 %v461, 7
    %v463 = vsub.s32 %v460, %v462
    %v464 = vrot.slane %v448, %v463
    %v466 = vunpack.c.l.s4 1966171168
    %v467 = vunpack.c.0.s8 %v466
    %v468 = vlaneseq
    %v469 = vshrl.u32 %v468, 7
    %v470 = vsub.s32 %v467, %v469
    %v471 = vrot.slane %v449, %v470
    %v473 = vunpack.c.l.s4 1966171168
    %v474 = vunpack.c.0.s8 %v473
    %v475 = vlaneseq
    %v476 = vshrl.u32 %v475, 7
    %v477 = vsub.s32 %v474, %v476
    %v478 = vrot.slane %v450, %v477
    %v479 = vcombine.low %v457, %v464
    %v480 = vcombine.low %v471, %v478
    %v482 = vunpack.c.l.s4 1966171168
    %v483 = vunpack.c.0.s8 %v482
    %v484 = vlaneseq
    %v485 = vshrl.u32 %v484, 7
    %v486 = vsub.s32 %v483, %v485
    %v487 = vrot.slane %v479, %v486
    %v489 = vunpack.c.l.s4 1966171168
    %v490 = vunpack.c.0.s8 %v489
    %v491 = vlaneseq
    %v492 = vshrl.u32 %v491, 7
    %v493 = vsub.s32 %v490, %v492
    %v494 = vrot.slane %v480, %v493
    %v495 = vcombine.low %v487, %v494
    %v496 = vcombine.low %v406, %v414
    %v497 = vcombine.low %v422, %v430
    %v498 = vcombine.low %v438, %v446
    %v500 = vunpack.c.l.s4 1966171168
    %v501 = vunpack.c.0.s8 %v500
    %v502 = vlaneseq
    %v503 = vshrl.u32 %v502, 7
    %v504 = vsub.s32 %v501, %v503
    %v505 = vrot.slane %v496, %v504
    %v507 = vunpack.c.l.s4 1966171168
    %v508 = vunpack.c.0.s8 %v507
    %v509 = vlaneseq
    %v510 = vshrl.u32 %v509, 7
    %v511 = vsub.s32 %v508, %v510
    %v512 = vrot.slane %v497, %v511
    %v514 = vunpack.c.l.s4 1966171168
    %v515 = vunpack.c.0.s8 %v514
    %v516 = vlaneseq
    %v517 = vshrl.u32 %v516, 7
    %v518 = vsub.s32 %v515, %v517
    %v519 = vrot.slane %v498, %v518
    %v520 = vcombine.low %v505, %v512
    %v522 = vunpack.c.l.s4 1966171168
    %v523 = vunpack.c.0.s8 %v522
    %v524 = vlaneseq
    %v525 = vshrl.u32 %v524, 7
    %v526 = vsub.s32 %v523, %v525
    %v527 = vrot.slane %v520, %v526
    %v529 = vunpack.c.l.s4 1966171168
    %v530 = vunpack.c.0.s8 %v529
    %v531 = vlaneseq
    %v532 = vshrl.u32 %v531, 7
    %v533 = vsub.s32 %v530, %v532
    %v534 = vrot.slane %v519, %v533
    %v535 = vcombine.low %v527, %v534
    %v554 = vunpack.c.l.b16 %v202
    %v555 = vunpack.c.l.b16 %v203
    %v556 = vunpack.c.l.b16 %v204
    %v557 = vunpack.c.l.b16 %v205
    %v558 = vunpack.c.l.b16 %v206
    %v559 = vunpack.c.l.b16 %v207
    %v560 = vunpack.c.l.b16 %v208
    %v561 = vunpack.c.l.b16 %v209
    %v562 = vunpack.c.l.b16 %v210
    %v563 = vunpack.c.l.b16 %v211
    %v564 = vunpack.c.l.b16 %v212
    %v565 = vunpack.c.l.b16 %v213
    %v566 = vunpack.c.l.b16 %v214
    %v567 = vunpack.c.l.b16 %v215
    %v568 = vunpack.c.l.b16 %v216
    %v569 = vunpack.c.l.b16 %v217
    %v570 = vpack.c.b16 %v555, %v554
    %v571 = vpack.c.b16 %v557, %v556
    %v572 = vpack.c.b16 %v559, %v558
    %v573 = vpack.c.b16 %v561, %v560
    %v574 = vpack.c.b16 %v563, %v562
    %v575 = vpack.c.b16 %v565, %v564
    %v576 = vpack.c.b16 %v567, %v566
    %v577 = vpack.c.b16 %v569, %v568
    %586 = vmatprep.subr.bf16.mxu0 0
    %587 = vmatpush1.bf16.msra.mxu0 %v570
    %588 = vmatprep.subr.bf16.mxu0 0
    %589 = vmatpush1.bf16.msra.mxu0 %v571
    %590 = vmatprep.subr.bf16.mxu0 0
    %591 = vmatpush1.bf16.msra.mxu0 %v572
    %592 = vmatprep.subr.bf16.mxu0 0
    %593 = vmatpush1.bf16.msra.mxu0 %v573
    %594 = vmatprep.subr.bf16.mxu0 0
    %595 = vmatpush1.bf16.msra.mxu0 %v574
    %596 = vmatprep.subr.bf16.mxu0 0
    %597 = vmatpush1.bf16.msra.mxu0 %v575
    %598 = vmatprep.subr.bf16.mxu0 0
    %599 = vmatpush1.bf16.msra.mxu0 %v576
    %600 = vmatprep.subr.bf16.mxu0 0
    %601 = vmatpush1.bf16.msra.mxu0 %v577
    %602 = vmatprep.subr.bf16.mxu0 0
    %603 = vmatpush1.bf16.msra.mxu0 0
    %604 = vmatprep.subr.bf16.mxu0 0
    %605 = vmatpush1.bf16.msra.mxu0 0
    %606 = vmatprep.subr.bf16.mxu0 0
    %607 = vmatpush1.bf16.msra.mxu0 0
    %608 = vmatprep.subr.bf16.mxu0 0
    %609 = vmatpush1.bf16.msra.mxu0 0
    %610 = vmatprep.subr.bf16.mxu0 0
    %611 = vmatpush1.bf16.msra.mxu0 0
    %612 = vmatprep.subr.bf16.mxu0 0
    %613 = vmatpush1.bf16.msra.mxu0 0
    %614 = vmatprep.subr.bf16.mxu0 0
    %615 = vmatpush1.bf16.msra.mxu0 0
    %616 = vmatprep.subr.bf16.mxu0 0
    %617 = vmatpush1.bf16.msra.mxu0 0
    %618 = vmatprep.mubr.bf16.mxu0 0
    %619 = vmatmul.mubr.bf16.gmra.mrb[0].mxu0 %v495
    %v620 = vpop.f32.mrb[0].mxu0
    %v621 = vadd.f32 0.0, %v620
    %v622 = vpop.f32.mrb[0].mxu0
    %v623 = vpop.f32.mrb[0].mxu0
    %v624 = vadd.f32 0.0, %v623
    %v625 = vpop.f32.mrb[0].mxu0
    %626 = vmatprep.mubr.bf16.mxu0 0
    %627 = vmatmul.mubr.bf16.gmra.mrb[0].mxu0 %v535
    %v628 = vpop.f32.mrb[0].mxu0
    %v629 = vadd.f32 0.0, %v628
    %v630 = vpop.f32.mrb[0].mxu0
    %v631 = vpop.f32.mrb[0].mxu0
    %v632 = vadd.f32 0.0, %v631
    %v633 = vpop.f32.mrb[0].mxu0
    %634 = vdwg.mxu0
    %v635 = vcombine.low %v243, %v257
    %v636 = vcombine.low %v265, %v267
    %v637 = vcombine.low %v250, %v264
    %v638 = vcombine.low %v266, %v292
    %v640 = vunpack.c.l.s4 1966171168
    %v641 = vunpack.c.0.s8 %v640
    %v642 = vlaneseq
    %v643 = vshrl.u32 %v642, 7
    %v644 = vsub.s32 %v641, %v643
    %v645 = vrot.slane %v635, %v644
    %v647 = vunpack.c.l.s4 1966171168
    %v648 = vunpack.c.0.s8 %v647
    %v649 = vlaneseq
    %v650 = vshrl.u32 %v649, 7
    %v651 = vsub.s32 %v648, %v650
    %v652 = vrot.slane %v636, %v651
    %v654 = vunpack.c.l.s4 1966171168
    %v655 = vunpack.c.0.s8 %v654
    %v656 = vlaneseq
    %v657 = vshrl.u32 %v656, 7
    %v658 = vsub.s32 %v655, %v657
    %v659 = vrot.slane %v637, %v658
    %v661 = vunpack.c.l.s4 1966171168
    %v662 = vunpack.c.0.s8 %v661
    %v663 = vlaneseq
    %v664 = vshrl.u32 %v663, 7
    %v665 = vsub.s32 %v662, %v664
    %v666 = vrot.slane %v638, %v665
    %v667 = vcombine.low %v645, %v652
    %v668 = vcombine.low %v659, %v666
    %v670 = vunpack.c.l.s4 1966171168
    %v671 = vunpack.c.0.s8 %v670
    %v672 = vlaneseq
    %v673 = vshrl.u32 %v672, 7
    %v674 = vsub.s32 %v671, %v673
    %v675 = vrot.slane %v667, %v674
    %v677 = vunpack.c.l.s4 1966171168
    %v678 = vunpack.c.0.s8 %v677
    %v679 = vlaneseq
    %v680 = vshrl.u32 %v679, 7
    %v681 = vsub.s32 %v678, %v680
    %v682 = vrot.slane %v668, %v681
    %v683 = vcombine.low %v675, %v682
    %v684 = vcombine.low %v306, %v314
    %v685 = vcombine.low %v316, %v299
    %v686 = vcombine.low %v313, %v315
    %v688 = vunpack.c.l.s4 1966171168
    %v689 = vunpack.c.0.s8 %v688
    %v690 = vlaneseq
    %v691 = vshrl.u32 %v690, 7
    %v692 = vsub.s32 %v689, %v691
    %v693 = vrot.slane %v684, %v692
    %v695 = vunpack.c.l.s4 1966171168
    %v696 = vunpack.c.0.s8 %v695
    %v697 = vlaneseq
    %v698 = vshrl.u32 %v697, 7
    %v699 = vsub.s32 %v696, %v698
    %v700 = vrot.slane %v685, %v699
    %v702 = vunpack.c.l.s4 1966171168
    %v703 = vunpack.c.0.s8 %v702
    %v704 = vlaneseq
    %v705 = vshrl.u32 %v704, 7
    %v706 = vsub.s32 %v703, %v705
    %v707 = vrot.slane %v686, %v706
    %v708 = vcombine.low %v693, %v700
    %v710 = vunpack.c.l.s4 1966171168
    %v711 = vunpack.c.0.s8 %v710
    %v712 = vlaneseq
    %v713 = vshrl.u32 %v712, 7
    %v714 = vsub.s32 %v711, %v713
    %v715 = vrot.slane %v708, %v714
    %v717 = vunpack.c.l.s4 1966171168
    %v718 = vunpack.c.0.s8 %v717
    %v719 = vlaneseq
    %v720 = vshrl.u32 %v719, 7
    %v721 = vsub.s32 %v718, %v720
    %v722 = vrot.slane %v707, %v721
    %v723 = vcombine.low %v715, %v722
    %v742 = vunpack.c.l.b16 %v185
    %v743 = vunpack.c.l.b16 %v186
    %v744 = vunpack.c.l.b16 %v187
    %v745 = vunpack.c.l.b16 %v188
    %v746 = vunpack.c.l.b16 %v189
    %v747 = vunpack.c.l.b16 %v190
    %v748 = vunpack.c.l.b16 %v191
    %v749 = vunpack.c.l.b16 %v192
    %v750 = vunpack.c.l.b16 %v193
    %v751 = vunpack.c.l.b16 %v194
    %v752 = vunpack.c.l.b16 %v195
    %v753 = vunpack.c.l.b16 %v196
    %v754 = vunpack.c.l.b16 %v197
    %v755 = vunpack.c.l.b16 %v198
    %v756 = vunpack.c.l.b16 %v199
    %v757 = vunpack.c.l.b16 %v200
    %v758 = vpack.c.b16 %v743, %v742
    %v759 = vpack.c.b16 %v745, %v744
    %v760 = vpack.c.b16 %v747, %v746
    %v761 = vpack.c.b16 %v749, %v748
    %v762 = vpack.c.b16 %v751, %v750
    %v763 = vpack.c.b16 %v753, %v752
    %v764 = vpack.c.b16 %v755, %v754
    %v765 = vpack.c.b16 %v757, %v756
    %774 = vmatprep.subr.bf16.mxu0 0
    %775 = vmatpush1.bf16.msra.mxu0 %v758
    %776 = vmatprep.subr.bf16.mxu0 0
    %777 = vmatpush1.bf16.msra.mxu0 %v759
    %778 = vmatprep.subr.bf16.mxu0 0
    %779 = vmatpush1.bf16.msra.mxu0 %v760
    %780 = vmatprep.subr.bf16.mxu0 0
    %781 = vmatpush1.bf16.msra.mxu0 %v761
    %782 = vmatprep.subr.bf16.mxu0 0
    %783 = vmatpush1.bf16.msra.mxu0 %v762
    %784 = vmatprep.subr.bf16.mxu0 0
    %785 = vmatpush1.bf16.msra.mxu0 %v763
    %786 = vmatprep.subr.bf16.mxu0 0
    %787 = vmatpush1.bf16.msra.mxu0 %v764
    %788 = vmatprep.subr.bf16.mxu0 0
    %789 = vmatpush1.bf16.msra.mxu0 %v765
    %790 = vmatprep.subr.bf16.mxu0 0
    %791 = vmatpush1.bf16.msra.mxu0 0
    %792 = vmatprep.subr.bf16.mxu0 0
    %793 = vmatpush1.bf16.msra.mxu0 0
    %794 = vmatprep.subr.bf16.mxu0 0
    %795 = vmatpush1.bf16.msra.mxu0 0
    %796 = vmatprep.subr.bf16.mxu0 0
    %797 = vmatpush1.bf16.msra.mxu0 0
    %798 = vmatprep.subr.bf16.mxu0 0
    %799 = vmatpush1.bf16.msra.mxu0 0
    %800 = vmatprep.subr.bf16.mxu0 0
    %801 = vmatpush1.bf16.msra.mxu0 0
    %802 = vmatprep.subr.bf16.mxu0 0
    %803 = vmatpush1.bf16.msra.mxu0 0
    %804 = vmatprep.subr.bf16.mxu0 0
    %805 = vmatpush1.bf16.msra.mxu0 0
    %806 = vmatprep.mubr.bf16.mxu0 0
    %807 = vmatmul.mubr.bf16.gmra.mrb[0].mxu0 %v683
    %v808 = vpop.f32.mrb[0].mxu0
    %v809 = vadd.f32 %v621, %v808
    %v810 = vpop.f32.mrb[0].mxu0
    %v811 = vpop.f32.mrb[0].mxu0
    %v812 = vadd.f32 %v624, %v811
    %v813 = vpop.f32.mrb[0].mxu0
    %814 = vmatprep.mubr.bf16.mxu0 0
    %815 = vmatmul.mubr.bf16.gmra.mrb[0].mxu0 %v723
    %v816 = vpop.f32.mrb[0].mxu0
    %v817 = vadd.f32 %v629, %v816
    %v818 = vpop.f32.mrb[0].mxu0
    %v819 = vpop.f32.mrb[0].mxu0
    %v820 = vadd.f32 %v632, %v819
    %v821 = vpop.f32.mrb[0].mxu0
    %822 = vdwg.mxu0
    %v827 = vcombine.high %v809, %v809
    %v829 = vunpack.c.l.s4 1983009808
    %v830 = vunpack.c.0.s8 %v829
    %v831 = vlaneseq
    %v832 = vshrl.u32 %v831, 7
    %v833 = vsub.s32 %v830, %v832
    %v834 = vrot.slane %v809, %v833
    %v836 = vunpack.c.l.s4 1983009808
    %v837 = vunpack.c.0.s8 %v836
    %v838 = vlaneseq
    %v839 = vshrl.u32 %v838, 7
    %v840 = vsub.s32 %v837, %v839
    %v841 = vrot.slane %v827, %v840
    %v842 = vcombine.high %v834, %v834
    %v843 = vcombine.high %v841, %v841
    %v844 = vcombine.high %v812, %v812
    %v846 = vunpack.c.l.s4 1983009808
    %v847 = vunpack.c.0.s8 %v846
    %v848 = vlaneseq
    %v849 = vshrl.u32 %v848, 7
    %v850 = vsub.s32 %v847, %v849
    %v851 = vrot.slane %v812, %v850
    %v853 = vunpack.c.l.s4 1983009808
    %v854 = vunpack.c.0.s8 %v853
    %v855 = vlaneseq
    %v856 = vshrl.u32 %v855, 7
    %v857 = vsub.s32 %v854, %v856
    %v858 = vrot.slane %v844, %v857
    %v859 = vcombine.high %v851, %v851
    %v860 = vcombine.high %v858, %v858
    %v861 = vcombine.high %v817, %v817
    %v863 = vunpack.c.l.s4 1983009808
    %v864 = vunpack.c.0.s8 %v863
    %v865 = vlaneseq
    %v866 = vshrl.u32 %v865, 7
    %v867 = vsub.s32 %v864, %v866
    %v868 = vrot.slane %v817, %v867
    %v870 = vunpack.c.l.s4 1983009808
    %v871 = vunpack.c.0.s8 %v870
    %v872 = vlaneseq
    %v873 = vshrl.u32 %v872, 7
    %v874 = vsub.s32 %v871, %v873
    %v875 = vrot.slane %v861, %v874
    %v876 = vcombine.high %v868, %v868
    %v877 = vcombine.high %v875, %v875
    %v879 = vunpack.c.l.s4 1983009808
    %v880 = vunpack.c.0.s8 %v879
    %v881 = vlaneseq
    %v882 = vshrl.u32 %v881, 7
    %v883 = vsub.s32 %v880, %v882
    %v884 = vrot.slane %v820, %v883
    %v885 = vcombine.high %v884, %v884
    %s900 = scalar_lea.vmem [#allocation8], 128
    %v901 = vld [vmem:[%s900] sm:$0xf]
    %v902 = vld [vmem:[%s900 + $0x4] sm:$0xf]
    %v903 = vld [vmem:[%s900 + $0x8] sm:$0xf]
    %v904 = vld [vmem:[%s900 + $0xc] sm:$0xf]
    %v905 = vld [vmem:[%s900 + $0x10] sm:$0xf]
    %v906 = vld [vmem:[%s900 + $0x14] sm:$0xf]
    %v907 = vld [vmem:[%s900 + $0x18] sm:$0xf]
    %v908 = vld [vmem:[%s900 + $0x1c] sm:$0xf]
    %v909 = vld [vmem:[%s900 + $0x20] sm:$0xf]
    %v910 = vld [vmem:[%s900 + $0x24] sm:$0xf]
    %v911 = vld [vmem:[%s900 + $0x28] sm:$0xf]
    %v912 = vld [vmem:[%s900 + $0x2c] sm:$0xf]
    %v913 = vld [vmem:[%s900 + $0x30] sm:$0xf]
    %v914 = vld [vmem:[%s900 + $0x34] sm:$0xf]
    %v915 = vld [vmem:[%s900 + $0x38] sm:$0xf]
    %v916 = vld [vmem:[%s900 + $0x3c] sm:$0xf]
    %v917 = vcombine.low %v257, %v265
    %v918 = vcombine.low %v267, %v250
    %v919 = vcombine.low %v264, %v266
    %v920 = vcombine.low %v268, %v306
    %v922 = vunpack.c.l.s4 1966171168
    %v923 = vunpack.c.0.s8 %v922
    %v924 = vlaneseq
    %v925 = vshrl.u32 %v924, 7
    %v926 = vsub.s32 %v923, %v925
    %v927 = vrot.slane %v917, %v926
    %v929 = vunpack.c.l.s4 1966171168
    %v930 = vunpack.c.0.s8 %v929
    %v931 = vlaneseq
    %v932 = vshrl.u32 %v931, 7
    %v933 = vsub.s32 %v930, %v932
    %v934 = vrot.slane %v918, %v933
    %v936 = vunpack.c.l.s4 1966171168
    %v937 = vunpack.c.0.s8 %v936
    %v938 = vlaneseq
    %v939 = vshrl.u32 %v938, 7
    %v940 = vsub.s32 %v937, %v939
    %v941 = vrot.slane %v919, %v940
    %v943 = vunpack.c.l.s4 1966171168
    %v944 = vunpack.c.0.s8 %v943
    %v945 = vlaneseq
    %v946 = vshrl.u32 %v945, 7
    %v947 = vsub.s32 %v944, %v946
    %v948 = vrot.slane %v920, %v947
    %v949 = vcombine.low %v927, %v934
    %v950 = vcombine.low %v941, %v948
    %v952 = vunpack.c.l.s4 1966171168
    %v953 = vunpack.c.0.s8 %v952
    %v954 = vlaneseq
    %v955 = vshrl.u32 %v954, 7
    %v956 = vsub.s32 %v953, %v955
    %v957 = vrot.slane %v949, %v956
    %v959 = vunpack.c.l.s4 1966171168
    %v960 = vunpack.c.0.s8 %v959
    %v961 = vlaneseq
    %v962 = vshrl.u32 %v961, 7
    %v963 = vsub.s32 %v960, %v962
    %v964 = vrot.slane %v950, %v963
    %v965 = vcombine.low %v957, %v964
    %v966 = vcombine.low %v314, %v316
    %v967 = vcombine.low %v299, %v313
    %v968 = vcombine.low %v315, %v317
    %v970 = vunpack.c.l.s4 1966171168
    %v971 = vunpack.c.0.s8 %v970
    %v972 = vlaneseq
    %v973 = vshrl.u32 %v972, 7
    %v974 = vsub.s32 %v971, %v973
    %v975 = vrot.slane %v966, %v974
    %v977 = vunpack.c.l.s4 1966171168
    %v978 = vunpack.c.0.s8 %v977
    %v979 = vlaneseq
    %v980 = vshrl.u32 %v979, 7
    %v981 = vsub.s32 %v978, %v980
    %v982 = vrot.slane %v967, %v981
    %v984 = vunpack.c.l.s4 1966171168
    %v985 = vunpack.c.0.s8 %v984
    %v986 = vlaneseq
    %v987 = vshrl.u32 %v986, 7
    %v988 = vsub.s32 %v985, %v987
    %v989 = vrot.slane %v968, %v988
    %v990 = vcombine.low %v975, %v982
    %v992 = vunpack.c.l.s4 1966171168
    %v993 = vunpack.c.0.s8 %v992
    %v994 = vlaneseq
    %v995 = vshrl.u32 %v994, 7
    %v996 = vsub.s32 %v993, %v995
    %v997 = vrot.slane %v990, %v996
    %v999 = vunpack.c.l.s4 1966171168
    %v1000 = vunpack.c.0.s8 %v999
    %v1001 = vlaneseq
    %v1002 = vshrl.u32 %v1001, 7
    %v1003 = vsub.s32 %v1000, %v1002
    %v1004 = vrot.slane %v989, %v1003
    %v1005 = vcombine.low %v997, %v1004
    %v1024 = vunpack.c.l.b16 %v901
    %v1025 = vunpack.c.l.b16 %v902
    %v1026 = vunpack.c.l.b16 %v903
    %v1027 = vunpack.c.l.b16 %v904
    %v1028 = vunpack.c.l.b16 %v905
    %v1029 = vunpack.c.l.b16 %v906
    %v1030 = vunpack.c.l.b16 %v907
    %v1031 = vunpack.c.l.b16 %v908
    %v1032 = vunpack.c.l.b16 %v909
    %v1033 = vunpack.c.l.b16 %v910
    %v1034 = vunpack.c.l.b16 %v911
    %v1035 = vunpack.c.l.b16 %v912
    %v1036 = vunpack.c.l.b16 %v913
    %v1037 = vunpack.c.l.b16 %v914
    %v1038 = vunpack.c.l.b16 %v915
    %v1039 = vunpack.c.l.b16 %v916
    %v1040 = vpack.c.b16 %v1025, %v1024
    %v1041 = vpack.c.b16 %v1027, %v1026
    %v1042 = vpack.c.b16 %v1029, %v1028
    %v1043 = vpack.c.b16 %v1031, %v1030
    %v1044 = vpack.c.b16 %v1033, %v1032
    %v1045 = vpack.c.b16 %v1035, %v1034
    %v1046 = vpack.c.b16 %v1037, %v1036
    %v1047 = vpack.c.b16 %v1039, %v1038
    %1056 = vmatprep.subr.bf16.mxu0 0
    %1057 = vmatpush1.bf16.msra.mxu0 %v1040
    %1058 = vmatprep.subr.bf16.mxu0 0
    %1059 = vmatpush1.bf16.msra.mxu0 %v1041
    %1060 = vmatprep.subr.bf16.mxu0 0
    %1061 = vmatpush1.bf16.msra.mxu0 %v1042
    %1062 = vmatprep.subr.bf16.mxu0 0
    %1063 = vmatpush1.bf16.msra.mxu0 %v1043
    %1064 = vmatprep.subr.bf16.mxu0 0
    %1065 = vmatpush1.bf16.msra.mxu0 %v1044
    %1066 = vmatprep.subr.bf16.mxu0 0
    %1067 = vmatpush1.bf16.msra.mxu0 %v1045
    %1068 = vmatprep.subr.bf16.mxu0 0
    %1069 = vmatpush1.bf16.msra.mxu0 %v1046
    %1070 = vmatprep.subr.bf16.mxu0 0
    %1071 = vmatpush1.bf16.msra.mxu0 %v1047
    %1072 = vmatprep.subr.bf16.mxu0 0
    %1073 = vmatpush1.bf16.msra.mxu0 0
    %1074 = vmatprep.subr.bf16.mxu0 0
    %1075 = vmatpush1.bf16.msra.mxu0 0
    %1076 = vmatprep.subr.bf16.mxu0 0
    %1077 = vmatpush1.bf16.msra.mxu0 0
    %1078 = vmatprep.subr.bf16.mxu0 0
    %1079 = vmatpush1.bf16.msra.mxu0 0
    %1080 = vmatprep.subr.bf16.mxu0 0
    %1081 = vmatpush1.bf16.msra.mxu0 0
    %1082 = vmatprep.subr.bf16.mxu0 0
    %1083 = vmatpush1.bf16.msra.mxu0 0
    %1084 = vmatprep.subr.bf16.mxu0 0
    %1085 = vmatpush1.bf16.msra.mxu0 0
    %1086 = vmatprep.subr.bf16.mxu0 0
    %1087 = vmatpush1.bf16.msra.mxu0 0
    %1088 = vmatprep.mubr.bf16.mxu0 0
    %1089 = vmatmul.mubr.bf16.gmra.mrb[0].mxu0 %v965
    %v1090 = vpop.f32.mrb[0].mxu0
    %v1091 = vadd.f32 0.0, %v1090
    %v1092 = vpop.f32.mrb[0].mxu0
    %v1093 = vpop.f32.mrb[0].mxu0
    %v1094 = vadd.f32 0.0, %v1093
    %v1095 = vpop.f32.mrb[0].mxu0
    %1096 = vmatprep.mubr.bf16.mxu0 0
    %1097 = vmatmul.mubr.bf16.gmra.mrb[0].mxu0 %v1005
    %v1098 = vpop.f32.mrb[0].mxu0
    %v1099 = vadd.f32 0.0, %v1098
    %v1100 = vpop.f32.mrb[0].mxu0
    %v1101 = vpop.f32.mrb[0].mxu0
    %v1102 = vadd.f32 0.0, %v1101
    %v1103 = vpop.f32.mrb[0].mxu0
    %1104 = vdwg.mxu0
    %v1109 = vcombine.high %v1091, %v1091
    %v1111 = vunpack.c.l.s4 1983009808
    %v1112 = vunpack.c.0.s8 %v1111
    %v1113 = vlaneseq
    %v1114 = vshrl.u32 %v1113, 7
    %v1115 = vsub.s32 %v1112, %v1114
    %v1116 = vrot.slane %v1091, %v1115
    %v1118 = vunpack.c.l.s4 1983009808
    %v1119 = vunpack.c.0.s8 %v1118
    %v1120 = vlaneseq
    %v1121 = vshrl.u32 %v1120, 7
    %v1122 = vsub.s32 %v1119, %v1121
    %v1123 = vrot.slane %v1109, %v1122
    %v1124 = vcombine.high %v1116, %v1116
    %v1125 = vcombine.high %v1123, %v1123
    %v1126 = vcombine.high %v1094, %v1094
    %v1128 = vunpack.c.l.s4 1983009808
    %v1129 = vunpack.c.0.s8 %v1128
    %v1130 = vlaneseq
    %v1131 = vshrl.u32 %v1130, 7
    %v1132 = vsub.s32 %v1129, %v1131
    %v1133 = vrot.slane %v1094, %v1132
    %v1135 = vunpack.c.l.s4 1983009808
    %v1136 = vunpack.c.0.s8 %v1135
    %v1137 = vlaneseq
    %v1138 = vshrl.u32 %v1137, 7
    %v1139 = vsub.s32 %v1136, %v1138
    %v1140 = vrot.slane %v1126, %v1139
    %v1141 = vcombine.high %v1133, %v1133
    %v1142 = vcombine.high %v1140, %v1140
    %v1143 = vcombine.high %v1099, %v1099
    %v1145 = vunpack.c.l.s4 1983009808
    %v1146 = vunpack.c.0.s8 %v1145
    %v1147 = vlaneseq
    %v1148 = vshrl.u32 %v1147, 7
    %v1149 = vsub.s32 %v1146, %v1148
    %v1150 = vrot.slane %v1099, %v1149
    %v1152 = vunpack.c.l.s4 1983009808
    %v1153 = vunpack.c.0.s8 %v1152
    %v1154 = vlaneseq
    %v1155 = vshrl.u32 %v1154, 7
    %v1156 = vsub.s32 %v1153, %v1155
    %v1157 = vrot.slane %v1143, %v1156
    %v1158 = vcombine.high %v1150, %v1150
    %v1159 = vcombine.high %v1157, %v1157
    %v1161 = vunpack.c.l.s4 1983009808
    %v1162 = vunpack.c.0.s8 %v1161
    %v1163 = vlaneseq
    %v1164 = vshrl.u32 %v1163, 7
    %v1165 = vsub.s32 %v1162, %v1164
    %v1166 = vrot.slane %v1102, %v1165
    %v1167 = vcombine.high %v1166, %v1166
    %v1182 = vadd.f32 %v834, %v1116
    %v1183 = vadd.f32 %v842, %v1124
    %v1184 = vadd.f32 %v841, %v1123
    %v1185 = vadd.f32 %v843, %v1125
    %v1186 = vadd.f32 %v851, %v1133
    %v1187 = vadd.f32 %v859, %v1141
    %v1188 = vadd.f32 %v858, %v1140
    %v1189 = vadd.f32 %v860, %v1142
    %v1190 = vadd.f32 %v868, %v1150
    %v1191 = vadd.f32 %v876, %v1158
    %v1192 = vadd.f32 %v875, %v1157
    %v1193 = vadd.f32 %v877, %v1159
    %v1194 = vadd.f32 %v884, %v1166
    %v1195 = vadd.f32 %v885, %v1167
    %v1196 = vld [vmem:[%s3] sm:$0x1]
    %v1198 = vlaneseq
    %v1199 = vshrl.u32 %v1198, 7
    %v1200 = vsub.s32 0, %v1199
    %v1201 = vrot.slane %v1196, %v1200
    %v1202 = vcombine.high %v1201, %v1201
    %v1204 = vunpack.c.l.s4 1983009808
    %v1205 = vunpack.c.0.s8 %v1204
    %v1206 = vlaneseq
    %v1207 = vshrl.u32 %v1206, 7
    %v1208 = vsub.s32 %v1205, %v1207
    %v1209 = vrot.slane %v1201, %v1208
    %v1211 = vunpack.c.l.s4 1983009808
    %v1212 = vunpack.c.0.s8 %v1211
    %v1213 = vlaneseq
    %v1214 = vshrl.u32 %v1213, 7
    %v1215 = vsub.s32 %v1212, %v1214
    %v1216 = vrot.slane %v1202, %v1215
    %v1217 = vcombine.high %v1209, %v1209
    %v1218 = vcombine.high %v1216, %v1216
    %v1223 = vadd.f32 %v1182, %v1209
    %v1224 = vadd.f32 %v1183, %v1217
    %v1225 = vadd.f32 %v1184, %v1216
    %v1226 = vadd.f32 %v1185, %v1218
    %v1227 = vadd.f32 %v1186, %v1209
    %v1228 = vadd.f32 %v1187, %v1217
    %v1229 = vadd.f32 %v1188, %v1216
    %v1230 = vadd.f32 %v1189, %v1209
    %v1231 = vadd.f32 %v1190, %v1217
    %v1232 = vadd.f32 %v1191, %v1216
    %v1233 = vadd.f32 %v1192, %v1218
    %v1234 = vadd.f32 %v1193, %v1209
    %v1235 = vadd.f32 %v1194, %v1217
    %v1236 = vadd.f32 %v1195, %v1216
    %v1237 = vmax.f32 %v1223, 0.0
    %v1238 = vmax.f32 %v1224, 0.0
    %v1239 = vmax.f32 %v1225, 0.0
    %v1240 = vmax.f32 %v1226, 0.0
    %v1241 = vmax.f32 %v1227, 0.0
    %v1242 = vmax.f32 %v1228, 0.0
    %v1243 = vmax.f32 %v1229, 0.0
    %v1244 = vmax.f32 %v1230, 0.0
    %v1245 = vmax.f32 %v1231, 0.0
    %v1246 = vmax.f32 %v1232, 0.0
    %v1247 = vmax.f32 %v1233, 0.0
    %v1248 = vmax.f32 %v1234, 0.0
    %v1249 = vmax.f32 %v1235, 0.0
    %v1250 = vmax.f32 %v1236, 0.0
    %v1265 = vcombine.low %v1237, %v1238
    %v1266 = vcombine.low %v1239, %v1240
    %v1268 = vunpack.c.l.s4 1983009808
    %v1269 = vunpack.c.0.s8 %v1268
    %v1270 = vlaneseq
    %v1271 = vshrl.u32 %v1270, 7
    %v1272 = vsub.s32 %v1269, %v1271
    %v1273 = vrot.slane %v1265, %v1272
    %v1275 = vunpack.c.l.s4 1983009808
    %v1276 = vunpack.c.0.s8 %v1275
    %v1277 = vlaneseq
    %v1278 = vshrl.u32 %v1277, 7
    %v1279 = vsub.s32 %v1276, %v1278
    %v1280 = vrot.slane %v1266, %v1279
    %v1281 = vcombine.low %v1273, %v1280
    %v1282 = vcombine.low %v1241, %v1242
    %v1284 = vunpack.c.l.s4 1983009808
    %v1285 = vunpack.c.0.s8 %v1284
    %v1286 = vlaneseq
    %v1287 = vshrl.u32 %v1286, 7
    %v1288 = vsub.s32 %v1285, %v1287
    %v1289 = vrot.slane %v1282, %v1288
    %v1291 = vunpack.c.l.s4 1983009808
    %v1292 = vunpack.c.0.s8 %v1291
    %v1293 = vlaneseq
    %v1294 = vshrl.u32 %v1293, 7
    %v1295 = vsub.s32 %v1292, %v1294
    %v1296 = vrot.slane %v1243, %v1295
    %v1297 = vcombine.low %v1289, %v1296
    %v1298 = vcombine.low %v1244, %v1245
    %v1299 = vcombine.low %v1246, %v1247
    %v1301 = vunpack.c.l.s4 1983009808
    %v1302 = vunpack.c.0.s8 %v1301
    %v1303 = vlaneseq
    %v1304 = vshrl.u32 %v1303, 7
    %v1305 = vsub.s32 %v1302, %v1304
    %v1306 = vrot.slane %v1298, %v1305
    %v1308 = vunpack.c.l.s4 1983009808
    %v1309 = vunpack.c.0.s8 %v1308
    %v1310 = vlaneseq
    %v1311 = vshrl.u32 %v1310, 7
    %v1312 = vsub.s32 %v1309, %v1311
    %v1313 = vrot.slane %v1299, %v1312
    %v1314 = vcombine.low %v1306, %v1313
    %v1315 = vcombine.low %v1248, %v1249
    %v1317 = vunpack.c.l.s4 1983009808
    %v1318 = vunpack.c.0.s8 %v1317
    %v1319 = vlaneseq
    %v1320 = vshrl.u32 %v1319, 7
    %v1321 = vsub.s32 %v1318, %v1320
    %v1322 = vrot.slane %v1315, %v1321
    %v1324 = vunpack.c.l.s4 1983009808
    %v1325 = vunpack.c.0.s8 %v1324
    %v1326 = vlaneseq
    %v1327 = vshrl.u32 %v1326, 7
    %v1328 = vsub.s32 %v1325, %v1327
    %v1329 = vrot.slane %v1250, %v1328
    %v1330 = vcombine.low %v1322, %v1329
    %v1335 = vpack.c.bf16 %v1297, %v1281
    %v1336 = vpack.c.bf16 %v1330, %v1314
    %v1337 = vld [vmem:[#allocation10] sm:$0xf]
    %v1338 = vld [vmem:[#allocation10 + $0x4] sm:$0xf]
    %v1339 = vld [vmem:[#allocation10 + $0x8] sm:$0xf]
    %v1340 = vld [vmem:[#allocation10 + $0xc] sm:$0xf]
    %v1341 = vld [vmem:[#allocation10 + $0x10] sm:$0xf]
    %v1342 = vld [vmem:[#allocation10 + $0x14] sm:$0xf]
    %v1343 = vld [vmem:[#allocation10 + $0x18] sm:$0xf]
    %v1344 = vld [vmem:[#allocation10 + $0x1c] sm:$0xf]
    %v1345 = vld [vmem:[#allocation10 + $0x20] sm:$0xf]
    %v1346 = vld [vmem:[#allocation10 + $0x24] sm:$0xf]
    %v1347 = vld [vmem:[#allocation10 + $0x28] sm:$0xf]
    %v1348 = vld [vmem:[#allocation10 + $0x2c] sm:$0xf]
    %v1349 = vld [vmem:[#allocation10 + $0x30] sm:$0xf]
    %v1350 = vld [vmem:[#allocation10 + $0x34] sm:$0xf]
    %v1351 = vld [vmem:[#allocation10 + $0x38] sm:$0xf]
    %v1352 = vld [vmem:[#allocation10 + $0x3c] sm:$0xf]
    %s1353 = scalar_lea.vmem [#allocation10], 64
    %v1354 = vld [vmem:[%s1353] sm:$0xf]
    %v1355 = vld [vmem:[%s1353 + $0x4] sm:$0xf]
    %v1356 = vld [vmem:[%s1353 + $0x8] sm:$0xf]
    %v1357 = vld [vmem:[%s1353 + $0xc] sm:$0xf]
    %v1358 = vld [vmem:[%s1353 + $0x10] sm:$0xf]
    %v1359 = vld [vmem:[%s1353 + $0x14] sm:$0xf]
    %v1360 = vld [vmem:[%s1353 + $0x18] sm:$0xf]
    %v1361 = vld [vmem:[%s1353 + $0x1c] sm:$0xf]
    %v1362 = vld [vmem:[%s1353 + $0x20] sm:$0xf]
    %v1363 = vld [vmem:[%s1353 + $0x24] sm:$0xf]
    %v1364 = vld [vmem:[%s1353 + $0x28] sm:$0xf]
    %v1365 = vld [vmem:[%s1353 + $0x2c] sm:$0xf]
    %v1366 = vld [vmem:[%s1353 + $0x30] sm:$0xf]
    %v1367 = vld [vmem:[%s1353 + $0x34] sm:$0xf]
    %v1368 = vld [vmem:[%s1353 + $0x38] sm:$0xf]
    %v1369 = vld [vmem:[%s1353 + $0x3c] sm:$0xf]
    %v1372 = vcombine.high %v1335, %v1335
    %v1374 = vunpack.c.l.s4 1983009808
    %v1375 = vunpack.c.0.s8 %v1374
    %v1376 = vlaneseq
    %v1377 = vshrl.u32 %v1376, 7
    %v1378 = vsub.s32 %v1375, %v1377
    %v1379 = vrot.slane %v1335, %v1378
    %v1381 = vunpack.c.l.s4 1983009808
    %v1382 = vunpack.c.0.s8 %v1381
    %v1383 = vlaneseq
    %v1384 = vshrl.u32 %v1383, 7
    %v1385 = vsub.s32 %v1382, %v1384
    %v1386 = vrot.slane %v1372, %v1385
    %v1387 = vcombine.high %v1379, %v1379
    %v1388 = vcombine.high %v1386, %v1386
    %v1389 = vcombine.high %v1336, %v1336
    %v1391 = vunpack.c.l.s4 1983009808
    %v1392 = vunpack.c.0.s8 %v1391
    %v1393 = vlaneseq
    %v1394 = vshrl.u32 %v1393, 7
    %v1395 = vsub.s32 %v1392, %v1394
    %v1396 = vrot.slane %v1336, %v1395
    %v1398 = vunpack.c.l.s4 1983009808
    %v1399 = vunpack.c.0.s8 %v1398
    %v1400 = vlaneseq
    %v1401 = vshrl.u32 %v1400, 7
    %v1402 = vsub.s32 %v1399, %v1401
    %v1403 = vrot.slane %v1389, %v1402
    %v1404 = vcombine.high %v1396, %v1396
    %v1405 = vcombine.high %v1403, %v1403
    %vm1406 = vsmask.f32 1280
    %vm1407 = vsmask.f32 3336
    %vm1408 = vmor %vm1406, %vm1407
    %vm1409 = vsmask.f32 5392
    %vm1410 = vmor %vm1408, %vm1409
    %vm1411 = vsmask.f32 7448
    %vm1412 = vmor %vm1410, %vm1411
    %v1414 = vshrl.u32 %v1379, 16
    %v1416 = vrot.slane %v1414, 6
    %v1417 = vshll.u32 %v1379, 16
    %v1419 = vrot.slane %v1417, 7
    %v1420 = vor.u32 %v1416, %v1419
    %v1421 = vrot.slane %v1420, 2
    %v1423 = vshll.u32 %v1387, 16
    %v1425 = vrot.slane %v1423, 7
    %v1426 = vsel %vm1412, %v1421, %v1425
    %v1427 = vshrl.u32 %v1387, 16
    %v1429 = vrot.slane %v1427, 6
    %v1430 = vor.u32 %v1429, %v1425
    %v1431 = vrot.slane %v1430, 2
    %v1433 = vshll.u32 %v1386, 16
    %v1435 = vrot.slane %v1433, 7
    %v1436 = vsel %vm1412, %v1431, %v1435
    %v1437 = vshrl.u32 %v1386, 16
    %v1439 = vrot.slane %v1437, 6
    %v1440 = vor.u32 %v1439, %v1435
    %v1441 = vrot.slane %v1440, 2
    %v1443 = vshll.u32 %v1388, 16
    %v1445 = vrot.slane %v1443, 7
    %v1446 = vsel %vm1412, %v1441, %v1445
    %v1448 = vshrl.u32 %v1396, 16
    %v1450 = vrot.slane %v1448, 6
    %v1451 = vshll.u32 %v1396, 16
    %v1453 = vrot.slane %v1451, 7
    %v1454 = vor.u32 %v1450, %v1453
    %v1455 = vrot.slane %v1454, 2
    %v1457 = vshll.u32 %v1404, 16
    %v1459 = vrot.slane %v1457, 7
    %v1460 = vsel %vm1412, %v1455, %v1459
    %v1461 = vshrl.u32 %v1404, 16
    %v1463 = vrot.slane %v1461, 6
    %v1464 = vor.u32 %v1463, %v1459
    %v1465 = vrot.slane %v1464, 2
    %v1467 = vshll.u32 %v1403, 16
    %v1469 = vrot.slane %v1467, 7
    %v1470 = vsel %vm1412, %v1465, %v1469
    %v1471 = vshrl.u32 %v1403, 16
    %v1473 = vrot.slane %v1471, 6
    %v1474 = vor.u32 %v1473, %v1469
    %v1475 = vrot.slane %v1474, 2
    %v1477 = vshll.u32 %v1405, 16
    %v1479 = vrot.slane %v1477, 7
    %v1480 = vsel %vm1412, %v1475, %v1479
    %v1481 = vcombine.low %v1426, %v1436
    %v1482 = vcombine.low %v1446, %v1460
    %v1484 = vunpack.c.l.s4 1983009808
    %v1485 = vunpack.c.0.s8 %v1484
    %v1486 = vlaneseq
    %v1487 = vshrl.u32 %v1486, 7
    %v1488 = vsub.s32 %v1485, %v1487
    %v1489 = vrot.slane %v1481, %v1488
    %v1491 = vunpack.c.l.s4 1983009808
    %v1492 = vunpack.c.0.s8 %v1491
    %v1493 = vlaneseq
    %v1494 = vshrl.u32 %v1493, 7
    %v1495 = vsub.s32 %v1492, %v1494
    %v1496 = vrot.slane %v1482, %v1495
    %v1497 = vcombine.low %v1489, %v1496
    %v1498 = vcombine.low %v1470, %v1480
    %v1500 = vunpack.c.l.s4 1983009808
    %v1501 = vunpack.c.0.s8 %v1500
    %v1502 = vlaneseq
    %v1503 = vshrl.u32 %v1502, 7
    %v1504 = vsub.s32 %v1501, %v1503
    %v1505 = vrot.slane %v1498, %v1504
    %v1524 = vunpack.c.l.b16 %v1354
    %v1525 = vunpack.c.l.b16 %v1355
    %v1526 = vunpack.c.l.b16 %v1356
    %v1527 = vunpack.c.l.b16 %v1357
    %v1528 = vunpack.c.l.b16 %v1358
    %v1529 = vunpack.c.l.b16 %v1359
    %v1530 = vunpack.c.l.b16 %v1360
    %v1531 = vunpack.c.l.b16 %v1361
    %v1532 = vunpack.c.l.b16 %v1362
    %v1533 = vunpack.c.l.b16 %v1363
    %v1534 = vunpack.c.l.b16 %v1364
    %v1535 = vunpack.c.l.b16 %v1365
    %v1536 = vunpack.c.l.b16 %v1366
    %v1537 = vunpack.c.l.b16 %v1367
    %v1538 = vunpack.c.l.b16 %v1368
    %v1539 = vunpack.c.l.b16 %v1369
    %v1540 = vpack.c.b16 %v1525, %v1524
    %v1541 = vpack.c.b16 %v1527, %v1526
    %v1542 = vpack.c.b16 %v1529, %v1528
    %v1543 = vpack.c.b16 %v1531, %v1530
    %v1544 = vpack.c.b16 %v1533, %v1532
    %v1545 = vpack.c.b16 %v1535, %v1534
    %v1546 = vpack.c.b16 %v1537, %v1536
    %v1547 = vpack.c.b16 %v1539, %v1538
    %1556 = vmatprep.subr.bf16.mxu0 0
    %1557 = vmatpush1.bf16.msra.mxu0 %v1540
    %1558 = vmatprep.subr.bf16.mxu0 0
    %1559 = vmatpush1.bf16.msra.mxu0 %v1541
    %1560 = vmatprep.subr.bf16.mxu0 0
    %1561 = vmatpush1.bf16.msra.mxu0 %v1542
    %1562 = vmatprep.subr.bf16.mxu0 0
    %1563 = vmatpush1.bf16.msra.mxu0 %v1543
    %1564 = vmatprep.subr.bf16.mxu0 0
    %1565 = vmatpush1.bf16.msra.mxu0 %v1544
    %1566 = vmatprep.subr.bf16.mxu0 0
    %1567 = vmatpush1.bf16.msra.mxu0 %v1545
    %1568 = vmatprep.subr.bf16.mxu0 0
    %1569 = vmatpush1.bf16.msra.mxu0 %v1546
    %1570 = vmatprep.subr.bf16.mxu0 0
    %1571 = vmatpush1.bf16.msra.mxu0 %v1547
    %1572 = vmatprep.subr.bf16.mxu0 0
    %1573 = vmatpush1.bf16.msra.mxu0 0
    %1574 = vmatprep.subr.bf16.mxu0 0
    %1575 = vmatpush1.bf16.msra.mxu0 0
    %1576 = vmatprep.subr.bf16.mxu0 0
    %1577 = vmatpush1.bf16.msra.mxu0 0
    %1578 = vmatprep.subr.bf16.mxu0 0
    %1579 = vmatpush1.bf16.msra.mxu0 0
    %1580 = vmatprep.subr.bf16.mxu0 0
    %1581 = vmatpush1.bf16.msra.mxu0 0
    %1582 = vmatprep.subr.bf16.mxu0 0
    %1583 = vmatpush1.bf16.msra.mxu0 0
    %1584 = vmatprep.subr.bf16.mxu0 0
    %1585 = vmatpush1.bf16.msra.mxu0 0
    %1586 = vmatprep.subr.bf16.mxu0 0
    %1587 = vmatpush1.bf16.msra.mxu0 0
    %1588 = vmatprep.mubr.bf16.mxu0 0
    %1589 = vmatmul.mubr.bf16.gmra.mrb[0].mxu0 %v1497
    %v1590 = vpop.f32.mrb[0].mxu0
    %v1591 = vadd.f32 0.0, %v1590
    %v1592 = vpop.f32.mrb[0].mxu0
    %v1593 = vpop.f32.mrb[0].mxu0
    %v1594 = vadd.f32 0.0, %v1593
    %v1595 = vpop.f32.mrb[0].mxu0
    %1596 = vmatprep.mubr.bf16.mxu0 0
    %1597 = vmatmul.mubr.bf16.gmra.mrb[0].mxu0 %v1505
    %v1598 = vpop.f32.mrb[0].mxu0
    %v1599 = vadd.f32 0.0, %v1598
    %v1600 = vpop.f32.mrb[0].mxu0
    %v1601 = vpop.f32.mrb[0].mxu0
    %v1602 = vpop.f32.mrb[0].mxu0
    %1603 = vdwg.mxu0
    %v1604 = vcombine.low %v1379, %v1387
    %v1605 = vcombine.low %v1386, %v1396
    %v1607 = vunpack.c.l.s4 1983009808
    %v1608 = vunpack.c.0.s8 %v1607
    %v1609 = vlaneseq
    %v1610 = vshrl.u32 %v1609, 7
    %v1611 = vsub.s32 %v1608, %v1610
    %v1612 = vrot.slane %v1604, %v1611
    %v1614 = vunpack.c.l.s4 1983009808
    %v1615 = vunpack.c.0.s8 %v1614
    %v1616 = vlaneseq
    %v1617 = vshrl.u32 %v1616, 7
    %v1618 = vsub.s32 %v1615, %v1617
    %v1619 = vrot.slane %v1605, %v1618
    %v1620 = vcombine.low %v1612, %v1619
    %v1621 = vcombine.low %v1404, %v1403
    %v1623 = vunpack.c.l.s4 1983009808
    %v1624 = vunpack.c.0.s8 %v1623
    %v1625 = vlaneseq
    %v1626 = vshrl.u32 %v1625, 7
    %v1627 = vsub.s32 %v1624, %v1626
    %v1628 = vrot.slane %v1621, %v1627
    %v1647 = vunpack.c.l.b16 %v1337
    %v1648 = vunpack.c.l.b16 %v1338
    %v1649 = vunpack.c.l.b16 %v1339
    %v1650 = vunpack.c.l.b16 %v1340
    %v1651 = vunpack.c.l.b16 %v1341
    %v1652 = vunpack.c.l.b16 %v1342
    %v1653 = vunpack.c.l.b16 %v1343
    %v1654 = vunpack.c.l.b16 %v1344
    %v1655 = vunpack.c.l.b16 %v1345
    %v1656 = vunpack.c.l.b16 %v1346
    %v1657 = vunpack.c.l.b16 %v1347
    %v1658 = vunpack.c.l.b16 %v1348
    %v1659 = vunpack.c.l.b16 %v1349
    %v1660 = vunpack.c.l.b16 %v1350
    %v1661 = vunpack.c.l.b16 %v1351
    %v1662 = vunpack.c.l.b16 %v1352
    %v1663 = vpack.c.b16 %v1648, %v1647
    %v1664 = vpack.c.b16 %v1650, %v1649
    %v1665 = vpack.c.b16 %v1652, %v1651
    %v1666 = vpack.c.b16 %v1654, %v1653
    %v1667 = vpack.c.b16 %v1656, %v1655
    %v1668 = vpack.c.b16 %v1658, %v1657
    %v1669 = vpack.c.b16 %v1660, %v1659
    %v1670 = vpack.c.b16 %v1662, %v1661
    %1679 = vmatprep.subr.bf16.mxu0 0
    %1680 = vmatpush1.bf16.msra.mxu0 %v1663
    %1681 = vmatprep.subr.bf16.mxu0 0
    %1682 = vmatpush1.bf16.msra.mxu0 %v1664
    %1683 = vmatprep.subr.bf16.mxu0 0
    %1684 = vmatpush1.bf16.msra.mxu0 %v1665
    %1685 = vmatprep.subr.bf16.mxu0 0
    %1686 = vmatpush1.bf16.msra.mxu0 %v1666
    %1687 = vmatprep.subr.bf16.mxu0 0
    %1688 = vmatpush1.bf16.msra.mxu0 %v1667
    %1689 = vmatprep.subr.bf16.mxu0 0
    %1690 = vmatpush1.bf16.msra.mxu0 %v1668
    %1691 = vmatprep.subr.bf16.mxu0 0
    %1692 = vmatpush1.bf16.msra.mxu0 %v1669
    %1693 = vmatprep.subr.bf16.mxu0 0
    %1694 = vmatpush1.bf16.msra.mxu0 %v1670
    %1695 = vmatprep.subr.bf16.mxu0 0
    %1696 = vmatpush1.bf16.msra.mxu0 0
    %1697 = vmatprep.subr.bf16.mxu0 0
    %1698 = vmatpush1.bf16.msra.mxu0 0
    %1699 = vmatprep.subr.bf16.mxu0 0
    %1700 = vmatpush1.bf16.msra.mxu0 0
    %1701 = vmatprep.subr.bf16.mxu0 0
    %1702 = vmatpush1.bf16.msra.mxu0 0
    %1703 = vmatprep.subr.bf16.mxu0 0
    %1704 = vmatpush1.bf16.msra.mxu0 0
    %1705 = vmatprep.subr.bf16.mxu0 0
    %1706 = vmatpush1.bf16.msra.mxu0 0
    %1707 = vmatprep.subr.bf16.mxu0 0
    %1708 = vmatpush1.bf16.msra.mxu0 0
    %1709 = vmatprep.subr.bf16.mxu0 0
    %1710 = vmatpush1.bf16.msra.mxu0 0
    %1711 = vmatprep.mubr.bf16.mxu0 0
    %1712 = vmatmul.mubr.bf16.gmra.mrb[0].mxu0 %v1620
    %v1713 = vpop.f32.mrb[0].mxu0
    %v1714 = vadd.f32 %v1591, %v1713
    %v1715 = vpop.f32.mrb[0].mxu0
    %v1716 = vpop.f32.mrb[0].mxu0
    %v1717 = vadd.f32 %v1594, %v1716
    %v1718 = vpop.f32.mrb[0].mxu0
    %1719 = vmatprep.mubr.bf16.mxu0 0
    %1720 = vmatmul.mubr.bf16.gmra.mrb[0].mxu0 %v1628
    %v1721 = vpop.f32.mrb[0].mxu0
    %v1722 = vadd.f32 %v1599, %v1721
    %v1723 = vpop.f32.mrb[0].mxu0
    %v1724 = vpop.f32.mrb[0].mxu0
    %v1725 = vpop.f32.mrb[0].mxu0
    %1726 = vdwg.mxu0
    %v1730 = vcombine.high %v1714, %v1714
    %v1731 = vcombine.high %v1717, %v1717
    %v1732 = vcombine.high %v1722, %v1722
    %s1736 = scalar_lea.vmem [#allocation10], 128
    %v1737 = vld [vmem:[%s1736] sm:$0xf]
    %v1738 = vld [vmem:[%s1736 + $0x4] sm:$0xf]
    %v1739 = vld [vmem:[%s1736 + $0x8] sm:$0xf]
    %v1740 = vld [vmem:[%s1736 + $0xc] sm:$0xf]
    %v1741 = vld [vmem:[%s1736 + $0x10] sm:$0xf]
    %v1742 = vld [vmem:[%s1736 + $0x14] sm:$0xf]
    %v1743 = vld [vmem:[%s1736 + $0x18] sm:$0xf]
    %v1744 = vld [vmem:[%s1736 + $0x1c] sm:$0xf]
    %v1745 = vld [vmem:[%s1736 + $0x20] sm:$0xf]
    %v1746 = vld [vmem:[%s1736 + $0x24] sm:$0xf]
    %v1747 = vld [vmem:[%s1736 + $0x28] sm:$0xf]
    %v1748 = vld [vmem:[%s1736 + $0x2c] sm:$0xf]
    %v1749 = vld [vmem:[%s1736 + $0x30] sm:$0xf]
    %v1750 = vld [vmem:[%s1736 + $0x34] sm:$0xf]
    %v1751 = vld [vmem:[%s1736 + $0x38] sm:$0xf]
    %v1752 = vld [vmem:[%s1736 + $0x3c] sm:$0xf]
    %vm1753 = vcmask 1040384
    %vm1754 = vcmask 1042434
    %vm1755 = vmor %vm1753, %vm1754
    %vm1756 = vcmask 1044484
    %vm1757 = vmor %vm1755, %vm1756
    %vm1758 = vcmask 1046534
    %vm1759 = vmor %vm1757, %vm1758
    %v1760 = vrot.slane %v1379, 7
    %v1761 = vrot.slane %v1760, 2
    %v1762 = vrot.slane %v1387, 7
    %v1763 = vsel %vm1759, %v1761, %v1762
    %v1764 = vrot.slane %v1762, 2
    %v1765 = vrot.slane %v1386, 7
    %v1766 = vsel %vm1759, %v1764, %v1765
    %v1767 = vrot.slane %v1765, 2
    %v1768 = vrot.slane %v1388, 7
    %v1769 = vsel %vm1759, %v1767, %v1768
    %v1770 = vrot.slane %v1396, 7
    %v1771 = vrot.slane %v1770, 2
    %v1772 = vrot.slane %v1404, 7
    %v1773 = vsel %vm1759, %v1771, %v1772
    %v1774 = vrot.slane %v1772, 2
    %v1775 = vrot.slane %v1403, 7
    %v1776 = vsel %vm1759, %v1774, %v1775
    %v1777 = vrot.slane %v1775, 2
    %v1778 = vrot.slane %v1405, 7
    %v1779 = vsel %vm1759, %v1777, %v1778
    %v1780 = vcombine.low %v1763, %v1766
    %v1781 = vcombine.low %v1769, %v1773
    %v1783 = vunpack.c.l.s4 1983009808
    %v1784 = vunpack.c.0.s8 %v1783
    %v1785 = vlaneseq
    %v1786 = vshrl.u32 %v1785, 7
    %v1787 = vsub.s32 %v1784, %v1786
    %v1788 = vrot.slane %v1780, %v1787
    %v1790 = vunpack.c.l.s4 1983009808
    %v1791 = vunpack.c.0.s8 %v1790
    %v1792 = vlaneseq
    %v1793 = vshrl.u32 %v1792, 7
    %v1794 = vsub.s32 %v1791, %v1793
    %v1795 = vrot.slane %v1781, %v1794
    %v1796 = vcombine.low %v1788, %v1795
    %v1797 = vcombine.low %v1776, %v1779
    %v1799 = vunpack.c.l.s4 1983009808
    %v1800 = vunpack.c.0.s8 %v1799
    %v1801 = vlaneseq
    %v1802 = vshrl.u32 %v1801, 7
    %v1803 = vsub.s32 %v1800, %v1802
    %v1804 = vrot.slane %v1797, %v1803
    %v1823 = vunpack.c.l.b16 %v1737
    %v1824 = vunpack.c.l.b16 %v1738
    %v1825 = vunpack.c.l.b16 %v1739
    %v1826 = vunpack.c.l.b16 %v1740
    %v1827 = vunpack.c.l.b16 %v1741
    %v1828 = vunpack.c.l.b16 %v1742
    %v1829 = vunpack.c.l.b16 %v1743
    %v1830 = vunpack.c.l.b16 %v1744
    %v1831 = vunpack.c.l.b16 %v1745
    %v1832 = vunpack.c.l.b16 %v1746
    %v1833 = vunpack.c.l.b16 %v1747
    %v1834 = vunpack.c.l.b16 %v1748
    %v1835 = vunpack.c.l.b16 %v1749
    %v1836 = vunpack.c.l.b16 %v1750
    %v1837 = vunpack.c.l.b16 %v1751
    %v1838 = vunpack.c.l.b16 %v1752
    %v1839 = vpack.c.b16 %v1824, %v1823
    %v1840 = vpack.c.b16 %v1826, %v1825
    %v1841 = vpack.c.b16 %v1828, %v1827
    %v1842 = vpack.c.b16 %v1830, %v1829
    %v1843 = vpack.c.b16 %v1832, %v1831
    %v1844 = vpack.c.b16 %v1834, %v1833
    %v1845 = vpack.c.b16 %v1836, %v1835
    %v1846 = vpack.c.b16 %v1838, %v1837
    %1855 = vmatprep.subr.bf16.mxu0 0
    %1856 = vmatpush1.bf16.msra.mxu0 %v1839
    %1857 = vmatprep.subr.bf16.mxu0 0
    %1858 = vmatpush1.bf16.msra.mxu0 %v1840
    %1859 = vmatprep.subr.bf16.mxu0 0
    %1860 = vmatpush1.bf16.msra.mxu0 %v1841
    %1861 = vmatprep.subr.bf16.mxu0 0
    %1862 = vmatpush1.bf16.msra.mxu0 %v1842
    %1863 = vmatprep.subr.bf16.mxu0 0
    %1864 = vmatpush1.bf16.msra.mxu0 %v1843
    %1865 = vmatprep.subr.bf16.mxu0 0
    %1866 = vmatpush1.bf16.msra.mxu0 %v1844
    %1867 = vmatprep.subr.bf16.mxu0 0
    %1868 = vmatpush1.bf16.msra.mxu0 %v1845
    %1869 = vmatprep.subr.bf16.mxu0 0
    %1870 = vmatpush1.bf16.msra.mxu0 %v1846
    %1871 = vmatprep.subr.bf16.mxu0 0
    %1872 = vmatpush1.bf16.msra.mxu0 0
    %1873 = vmatprep.subr.bf16.mxu0 0
    %1874 = vmatpush1.bf16.msra.mxu0 0
    %1875 = vmatprep.subr.bf16.mxu0 0
    %1876 = vmatpush1.bf16.msra.mxu0 0
    %1877 = vmatprep.subr.bf16.mxu0 0
    %1878 = vmatpush1.bf16.msra.mxu0 0
    %1879 = vmatprep.subr.bf16.mxu0 0
    %1880 = vmatpush1.bf16.msra.mxu0 0
    %1881 = vmatprep.subr.bf16.mxu0 0
    %1882 = vmatpush1.bf16.msra.mxu0 0
    %1883 = vmatprep.subr.bf16.mxu0 0
    %1884 = vmatpush1.bf16.msra.mxu0 0
    %1885 = vmatprep.subr.bf16.mxu0 0
    %1886 = vmatpush1.bf16.msra.mxu0 0
    %1887 = vmatprep.mubr.bf16.mxu0 0
    %1888 = vmatmul.mubr.bf16.gmra.mrb[0].mxu0 %v1796
    %v1889 = vpop.f32.mrb[0].mxu0
    %v1890 = vadd.f32 0.0, %v1889
    %v1891 = vpop.f32.mrb[0].mxu0
    %v1892 = vpop.f32.mrb[0].mxu0
    %v1893 = vadd.f32 0.0, %v1892
    %v1894 = vpop.f32.mrb[0].mxu0
    %1895 = vmatprep.mubr.bf16.mxu0 0
    %1896 = vmatmul.mubr.bf16.gmra.mrb[0].mxu0 %v1804
    %v1897 = vpop.f32.mrb[0].mxu0
    %v1898 = vadd.f32 0.0, %v1897
    %v1899 = vpop.f32.mrb[0].mxu0
    %v1900 = vpop.f32.mrb[0].mxu0
    %v1901 = vpop.f32.mrb[0].mxu0
    %1902 = vdwg.mxu0
    %v1906 = vcombine.high %v1890, %v1890
    %v1907 = vcombine.high %v1893, %v1893
    %v1908 = vcombine.high %v1898, %v1898
    %v1912 = vadd.f32 %v1714, %v1890
    %v1913 = vadd.f32 %v1730, %v1906
    %v1914 = vadd.f32 %v1717, %v1893
    %v1915 = vadd.f32 %v1731, %v1907
    %v1916 = vadd.f32 %v1722, %v1898
    %v1917 = vadd.f32 %v1732, %v1908
    %v1918 = vld [vmem:[%s5] sm:$0x1]
    %v1920 = vlaneseq
    %v1921 = vshrl.u32 %v1920, 7
    %v1922 = vsub.s32 0, %v1921
    %v1923 = vrot.slane %v1918, %v1922
    %v1925 = vcombine.high %v1923, %v1923
    %v1927 = vadd.f32 %v1912, %v1923
    %v1928 = vadd.f32 %v1913, %v1925
    %v1929 = vadd.f32 %v1914, %v1923
    %v1930 = vadd.f32 %v1915, %v1923
    %v1931 = vadd.f32 %v1916, %v1925
    %v1932 = vadd.f32 %v1917, %v1923
    %v1933 = vmax.f32 %v1927, 0.0
    %v1934 = vmax.f32 %v1928, 0.0
    %v1935 = vmax.f32 %v1929, 0.0
    %v1936 = vmax.f32 %v1930, 0.0
    %v1937 = vmax.f32 %v1931, 0.0
    %v1938 = vmax.f32 %v1932, 0.0
    %v1943 = vcombine.low %v1933, %v1934
    %v1944 = vcombine.low %v1936, %v1937
    %vm1947 = vcmask 1043456
    %v1948 = vsel %vm1947, %v1935, -inf
    %v1949 = vmax.f32 %v1943, %v1948
    %v1950 = vrot.slane %v1949, 4
    %v1951 = vmax.f32 %v1949, %v1950
    %v1952 = vrot.slane %v1951, 2
    %v1953 = vmax.f32 %v1951, %v1952
    %v1954 = vrot.slane %v1953, 1
    %v1955 = vmax.f32 %v1953, %v1954
    %v1956 = vsel %vm1947, %v1938, -inf
    %v1957 = vmax.f32 %v1944, %v1956
    %v1958 = vrot.slane %v1957, 4
    %v1959 = vmax.f32 %v1957, %v1958
    %v1960 = vrot.slane %v1959, 2
    %v1961 = vmax.f32 %v1959, %v1960
    %v1962 = vrot.slane %v1961, 1
    %v1963 = vmax.f32 %v1961, %v1962
    %v1964 = vld [vmem:[#allocation11] sm:$0xf]
    %v1965 = vld [vmem:[#allocation11 + $0x4] sm:$0xf]
    %v1966 = vld [vmem:[#allocation11 + $0x8] sm:$0xf]
    %v1967 = vld [vmem:[#allocation11 + $0xc] sm:$0xf]
    %v1968 = vld [vmem:[#allocation11 + $0x10] sm:$0xf]
    %v1969 = vld [vmem:[#allocation11 + $0x14] sm:$0xf]
    %v1970 = vld [vmem:[#allocation11 + $0x18] sm:$0xf]
    %v1971 = vld [vmem:[#allocation11 + $0x1c] sm:$0xf]
    %v1972 = vld [vmem:[#allocation11 + $0x20] sm:$0xf]
    %v1973 = vld [vmem:[#allocation11 + $0x24] sm:$0xf]
    %v1974 = vld [vmem:[#allocation11 + $0x28] sm:$0xf]
    %v1975 = vld [vmem:[#allocation11 + $0x2c] sm:$0xf]
    %v1976 = vld [vmem:[#allocation11 + $0x30] sm:$0xf]
    %v1977 = vld [vmem:[#allocation11 + $0x34] sm:$0xf]
    %v1978 = vld [vmem:[#allocation11 + $0x38] sm:$0xf]
    %v1979 = vld [vmem:[#allocation11 + $0x3c] sm:$0xf]
    %s1980 = scalar_lea.vmem [#allocation11], 64
    %v1981 = vld [vmem:[%s1980] sm:$0xf]
    %v1982 = vld [vmem:[%s1980 + $0x4] sm:$0xf]
    %v1983 = vld [vmem:[%s1980 + $0x8] sm:$0xf]
    %v1984 = vld [vmem:[%s1980 + $0xc] sm:$0xf]
    %v1985 = vld [vmem:[%s1980 + $0x10] sm:$0xf]
    %v1986 = vld [vmem:[%s1980 + $0x14] sm:$0xf]
    %v1987 = vld [vmem:[%s1980 + $0x18] sm:$0xf]
    %v1988 = vld [vmem:[%s1980 + $0x1c] sm:$0xf]
    %v1989 = vld [vmem:[%s1980 + $0x20] sm:$0xf]
    %v1990 = vld [vmem:[%s1980 + $0x24] sm:$0xf]
    %v1991 = vld [vmem:[%s1980 + $0x28] sm:$0xf]
    %v1992 = vld [vmem:[%s1980 + $0x2c] sm:$0xf]
    %v1993 = vld [vmem:[%s1980 + $0x30] sm:$0xf]
    %v1994 = vld [vmem:[%s1980 + $0x34] sm:$0xf]
    %v1995 = vld [vmem:[%s1980 + $0x38] sm:$0xf]
    %v1996 = vld [vmem:[%s1980 + $0x3c] sm:$0xf]
    %v1997 = vunpack.i.h.s16 %v243
    %v1998 = vunpack.i.l.s16 %v257
    %v1999 = vunpack.i.h.s16 %v257
    %v2000 = vunpack.i.l.s16 %v265
    %v2001 = vunpack.i.h.s16 %v265
    %v2002 = vunpack.i.l.s16 %v267
    %v2003 = vunpack.i.h.s16 %v267
    %v2004 = vunpack.i.l.s16 %v250
    %v2005 = vunpack.i.h.s16 %v250
    %v2006 = vunpack.i.l.s16 %v264
    %v2007 = vunpack.i.h.s16 %v264
    %v2008 = vunpack.i.l.s16 %v266
    %v2009 = vunpack.i.h.s16 %v266
    %v2010 = vunpack.i.h.s16 %v292
    %v2011 = vunpack.i.l.s16 %v306
    %v2012 = vunpack.i.h.s16 %v306
    %v2013 = vunpack.i.l.s16 %v314
    %v2014 = vunpack.i.h.s16 %v314
    %v2015 = vunpack.i.l.s16 %v316
    %v2016 = vunpack.i.h.s16 %v316
    %v2017 = vunpack.i.l.s16 %v299
    %v2018 = vunpack.i.h.s16 %v299
    %v2019 = vunpack.i.l.s16 %v313
    %v2020 = vunpack.i.h.s16 %v313
    %v2021 = vunpack.i.l.s16 %v315
    %v2022 = vunpack.i.h.s16 %v315
    %v2023 = vpack.i.b16 %v1998, %v1997
    %v2024 = vpack.i.b16 %v2000, %v1999
    %v2025 = vpack.i.b16 %v2002, %v2001
    %v2026 = vpack.i.b16 %v2004, %v2003
    %v2027 = vpack.i.b16 %v2006, %v2005
    %v2028 = vpack.i.b16 %v2008, %v2007
    %v2029 = vpack.i.b16 %v2010, %v2009
    %v2030 = vpack.i.b16 %v2012, %v2011
    %v2031 = vpack.i.b16 %v2014, %v2013
    %v2032 = vpack.i.b16 %v2016, %v2015
    %v2033 = vpack.i.b16 %v2018, %v2017
    %v2034 = vpack.i.b16 %v2020, %v2019
    %v2035 = vpack.i.b16 %v2022, %v2021
    %v2036 = vcombine.low %v2023, %v2024
    %v2037 = vcombine.low %v2025, %v2026
    %v2038 = vcombine.low %v2027, %v2028
    %v2039 = vcombine.low %v2029, %v2030
    %v2041 = vunpack.c.l.s4 1966171168
    %v2042 = vunpack.c.0.s8 %v2041
    %v2043 = vlaneseq
    %v2044 = vshrl.u32 %v2043, 7
    %v2045 = vsub.s32 %v2042, %v2044
    %v2046 = vrot.slane %v2036, %v2045
    %v2048 = vunpack.c.l.s4 1966171168
    %v2049 = vunpack.c.0.s8 %v2048
    %v2050 = vlaneseq
    %v2051 = vshrl.u32 %v2050, 7
    %v2052 = vsub.s32 %v2049, %v2051
    %v2053 = vrot.slane %v2037, %v2052
    %v2055 = vunpack.c.l.s4 1966171168
    %v2056 = vunpack.c.0.s8 %v2055
    %v2057 = vlaneseq
    %v2058 = vshrl.u32 %v2057, 7
    %v2059 = vsub.s32 %v2056, %v2058
    %v2060 = vrot.slane %v2038, %v2059
    %v2062 = vunpack.c.l.s4 1966171168
    %v2063 = vunpack.c.0.s8 %v2062
    %v2064 = vlaneseq
    %v2065 = vshrl.u32 %v2064, 7
    %v2066 = vsub.s32 %v2063, %v2065
    %v2067 = vrot.slane %v2039, %v2066
    %v2068 = vcombine.low %v2046, %v2053
    %v2069 = vcombine.low %v2060, %v2067
    %v2071 = vunpack.c.l.s4 1966171168
    %v2072 = vunpack.c.0.s8 %v2071
    %v2073 = vlaneseq
    %v2074 = vshrl.u32 %v2073, 7
    %v2075 = vsub.s32 %v2072, %v2074
    %v2076 = vrot.slane %v2068, %v2075
    %v2078 = vunpack.c.l.s4 1966171168
    %v2079 = vunpack.c.0.s8 %v2078
    %v2080 = vlaneseq
    %v2081 = vshrl.u32 %v2080, 7
    %v2082 = vsub.s32 %v2079, %v2081
    %v2083 = vrot.slane %v2069, %v2082
    %v2084 = vcombine.low %v2076, %v2083
    %v2085 = vcombine.low %v2031, %v2032
    %v2086 = vcombine.low %v2033, %v2034
    %v2088 = vunpack.c.l.s4 1966171168
    %v2089 = vunpack.c.0.s8 %v2088
    %v2090 = vlaneseq
    %v2091 = vshrl.u32 %v2090, 7
    %v2092 = vsub.s32 %v2089, %v2091
    %v2093 = vrot.slane %v2085, %v2092
    %v2095 = vunpack.c.l.s4 1966171168
    %v2096 = vunpack.c.0.s8 %v2095
    %v2097 = vlaneseq
    %v2098 = vshrl.u32 %v2097, 7
    %v2099 = vsub.s32 %v2096, %v2098
    %v2100 = vrot.slane %v2086, %v2099
    %v2102 = vunpack.c.l.s4 1966171168
    %v2103 = vunpack.c.0.s8 %v2102
    %v2104 = vlaneseq
    %v2105 = vshrl.u32 %v2104, 7
    %v2106 = vsub.s32 %v2103, %v2105
    %v2107 = vrot.slane %v2035, %v2106
    %v2108 = vcombine.low %v2093, %v2100
    %v2110 = vunpack.c.l.s4 1966171168
    %v2111 = vunpack.c.0.s8 %v2110
    %v2112 = vlaneseq
    %v2113 = vshrl.u32 %v2112, 7
    %v2114 = vsub.s32 %v2111, %v2113
    %v2115 = vrot.slane %v2108, %v2114
    %v2117 = vunpack.c.l.s4 1966171168
    %v2118 = vunpack.c.0.s8 %v2117
    %v2119 = vlaneseq
    %v2120 = vshrl.u32 %v2119, 7
    %v2121 = vsub.s32 %v2118, %v2120
    %v2122 = vrot.slane %v2107, %v2121
    %v2123 = vcombine.low %v2115, %v2122
    %v2142 = vunpack.c.l.b16 %v1981
    %v2143 = vunpack.c.l.b16 %v1982
    %v2144 = vunpack.c.l.b16 %v1983
    %v2145 = vunpack.c.l.b16 %v1984
    %v2146 = vunpack.c.l.b16 %v1985
    %v2147 = vunpack.c.l.b16 %v1986
    %v2148 = vunpack.c.l.b16 %v1987
    %v2149 = vunpack.c.l.b16 %v1988
    %v2150 = vunpack.c.l.b16 %v1989
    %v2151 = vunpack.c.l.b16 %v1990
    %v2152 = vunpack.c.l.b16 %v1991
    %v2153 = vunpack.c.l.b16 %v1992
    %v2154 = vunpack.c.l.b16 %v1993
    %v2155 = vunpack.c.l.b16 %v1994
    %v2156 = vunpack.c.l.b16 %v1995
    %v2157 = vunpack.c.l.b16 %v1996
    %v2158 = vpack.c.b16 %v2143, %v2142
    %v2159 = vpack.c.b16 %v2145, %v2144
    %v2160 = vpack.c.b16 %v2147, %v2146
    %v2161 = vpack.c.b16 %v2149, %v2148
    %v2162 = vpack.c.b16 %v2151, %v2150
    %v2163 = vpack.c.b16 %v2153, %v2152
    %v2164 = vpack.c.b16 %v2155, %v2154
    %v2165 = vpack.c.b16 %v2157, %v2156
    %2174 = vmatprep.subr.bf16.mxu0 0
    %2175 = vmatpush1.bf16.msra.mxu0 %v2158
    %2176 = vmatprep.subr.bf16.mxu0 0
    %2177 = vmatpush1.bf16.msra.mxu0 %v2159
    %2178 = vmatprep.subr.bf16.mxu0 0
    %2179 = vmatpush1.bf16.msra.mxu0 %v2160
    %2180 = vmatprep.subr.bf16.mxu0 0
    %2181 = vmatpush1.bf16.msra.mxu0 %v2161
    %2182 = vmatprep.subr.bf16.mxu0 0
    %2183 = vmatpush1.bf16.msra.mxu0 %v2162
    %2184 = vmatprep.subr.bf16.mxu0 0
    %2185 = vmatpush1.bf16.msra.mxu0 %v2163
    %2186 = vmatprep.subr.bf16.mxu0 0
    %2187 = vmatpush1.bf16.msra.mxu0 %v2164
    %2188 = vmatprep.subr.bf16.mxu0 0
    %2189 = vmatpush1.bf16.msra.mxu0 %v2165
    %2190 = vmatprep.subr.bf16.mxu0 0
    %2191 = vmatpush1.bf16.msra.mxu0 0
    %2192 = vmatprep.subr.bf16.mxu0 0
    %2193 = vmatpush1.bf16.msra.mxu0 0
    %2194 = vmatprep.subr.bf16.mxu0 0
    %2195 = vmatpush1.bf16.msra.mxu0 0
    %2196 = vmatprep.subr.bf16.mxu0 0
    %2197 = vmatpush1.bf16.msra.mxu0 0
    %2198 = vmatprep.subr.bf16.mxu0 0
    %2199 = vmatpush1.bf16.msra.mxu0 0
    %2200 = vmatprep.subr.bf16.mxu0 0
    %2201 = vmatpush1.bf16.msra.mxu0 0
    %2202 = vmatprep.subr.bf16.mxu0 0
    %2203 = vmatpush1.bf16.msra.mxu0 0
    %2204 = vmatprep.subr.bf16.mxu0 0
    %2205 = vmatpush1.bf16.msra.mxu0 0
    %2206 = vmatprep.mubr.bf16.mxu0 0
    %2207 = vmatmul.mubr.bf16.gmra.mrb[0].mxu0 %v2084
    %v2208 = vpop.f32.mrb[0].mxu0
    %v2209 = vadd.f32 0.0, %v2208
    %v2210 = vpop.f32.mrb[0].mxu0
    %v2211 = vpop.f32.mrb[0].mxu0
    %v2212 = vadd.f32 0.0, %v2211
    %v2213 = vpop.f32.mrb[0].mxu0
    %2214 = vmatprep.mubr.bf16.mxu0 0
    %2215 = vmatmul.mubr.bf16.gmra.mrb[0].mxu0 %v2123
    %v2216 = vpop.f32.mrb[0].mxu0
    %v2217 = vadd.f32 0.0, %v2216
    %v2218 = vpop.f32.mrb[0].mxu0
    %v2219 = vpop.f32.mrb[0].mxu0
    %v2220 = vadd.f32 0.0, %v2219
    %v2221 = vpop.f32.mrb[0].mxu0
    %2222 = vdwg.mxu0
    %v2223 = vunpack.i.l.s16 %v243
    %v2224 = vunpack.i.l.s16 %v292
    %v2225 = vpack.i.b16 %v1997, %v2223
    %v2226 = vpack.i.b16 %v1999, %v1998
    %v2227 = vpack.i.b16 %v2001, %v2000
    %v2228 = vpack.i.b16 %v2003, %v2002
    %v2229 = vpack.i.b16 %v2005, %v2004
    %v2230 = vpack.i.b16 %v2007, %v2006
    %v2231 = vpack.i.b16 %v2224, %v2008
    %v2232 = vpack.i.b16 %v2011, %v2010
    %v2233 = vpack.i.b16 %v2013, %v2012
    %v2234 = vpack.i.b16 %v2015, %v2014
    %v2235 = vpack.i.b16 %v2017, %v2016
    %v2236 = vpack.i.b16 %v2019, %v2018
    %v2237 = vpack.i.b16 %v2021, %v2020
    %v2238 = vcombine.low %v2225, %v2226
    %v2239 = vcombine.low %v2227, %v2228
    %v2240 = vcombine.low %v2229, %v2230
    %v2241 = vcombine.low %v2231, %v2232
    %v2243 = vunpack.c.l.s4 1966171168
    %v2244 = vunpack.c.0.s8 %v2243
    %v2245 = vlaneseq
    %v2246 = vshrl.u32 %v2245, 7
    %v2247 = vsub.s32 %v2244, %v2246
    %v2248 = vrot.slane %v2238, %v2247
    %v2250 = vunpack.c.l.s4 1966171168
    %v2251 = vunpack.c.0.s8 %v2250
    %v2252 = vlaneseq
    %v2253 = vshrl.u32 %v2252, 7
    %v2254 = vsub.s32 %v2251, %v2253
    %v2255 = vrot.slane %v2239, %v2254
    %v2257 = vunpack.c.l.s4 1966171168
    %v2258 = vunpack.c.0.s8 %v2257
    %v2259 = vlaneseq
    %v2260 = vshrl.u32 %v2259, 7
    %v2261 = vsub.s32 %v2258, %v2260
    %v2262 = vrot.slane %v2240, %v2261
    %v2264 = vunpack.c.l.s4 1966171168
    %v2265 = vunpack.c.0.s8 %v2264
    %v2266 = vlaneseq
    %v2267 = vshrl.u32 %v2266, 7
    %v2268 = vsub.s32 %v2265, %v2267
    %v2269 = vrot.slane %v2241, %v2268
    %v2270 = vcombine.low %v2248, %v2255
    %v2271 = vcombine.low %v2262, %v2269
    %v2273 = vunpack.c.l.s4 1966171168
    %v2274 = vunpack.c.0.s8 %v2273
    %v2275 = vlaneseq
    %v2276 = vshrl.u32 %v2275, 7
    %v2277 = vsub.s32 %v2274, %v2276
    %v2278 = vrot.slane %v2270, %v2277
    %v2280 = vunpack.c.l.s4 1966171168
    %v2281 = vunpack.c.0.s8 %v2280
    %v2282 = vlaneseq
    %v2283 = vshrl.u32 %v2282, 7
    %v2284 = vsub.s32 %v2281, %v2283
    %v2285 = vrot.slane %v2271, %v2284
    %v2286 = vcombine.low %v2278, %v2285
    %v2287 = vcombine.low %v2233, %v2234
    %v2288 = vcombine.low %v2235, %v2236
    %v2290 = vunpack.c.l.s4 1966171168
    %v2291 = vunpack.c.0.s8 %v2290
    %v2292 = vlaneseq
    %v2293 = vshrl.u32 %v2292, 7
    %v2294 = vsub.s32 %v2291, %v2293
    %v2295 = vrot.slane %v2287, %v2294
    %v2297 = vunpack.c.l.s4 1966171168
    %v2298 = vunpack.c.0.s8 %v2297
    %v2299 = vlaneseq
    %v2300 = vshrl.u32 %v2299, 7
    %v2301 = vsub.s32 %v2298, %v2300
    %v2302 = vrot.slane %v2288, %v2301
    %v2304 = vunpack.c.l.s4 1966171168
    %v2305 = vunpack.c.0.s8 %v2304
    %v2306 = vlaneseq
    %v2307 = vshrl.u32 %v2306, 7
    %v2308 = vsub.s32 %v2305, %v2307
    %v2309 = vrot.slane %v2237, %v2308
    %v2310 = vcombine.low %v2295, %v2302
    %v2312 = vunpack.c.l.s4 1966171168
    %v2313 = vunpack.c.0.s8 %v2312
    %v2314 = vlaneseq
    %v2315 = vshrl.u32 %v2314, 7
    %v2316 = vsub.s32 %v2313, %v2315
    %v2317 = vrot.slane %v2310, %v2316
    %v2319 = vunpack.c.l.s4 1966171168
    %v2320 = vunpack.c.0.s8 %v2319
    %v2321 = vlaneseq
    %v2322 = vshrl.u32 %v2321, 7
    %v2323 = vsub.s32 %v2320, %v2322
    %v2324 = vrot.slane %v2309, %v2323
    %v2325 = vcombine.low %v2317, %v2324
    %v2344 = vunpack.c.l.b16 %v1964
    %v2345 = vunpack.c.l.b16 %v1965
    %v2346 = vunpack.c.l.b16 %v1966
    %v2347 = vunpack.c.l.b16 %v1967
    %v2348 = vunpack.c.l.b16 %v1968
    %v2349 = vunpack.c.l.b16 %v1969
    %v2350 = vunpack.c.l.b16 %v1970
    %v2351 = vunpack.c.l.b16 %v1971
    %v2352 = vunpack.c.l.b16 %v1972
    %v2353 = vunpack.c.l.b16 %v1973
    %v2354 = vunpack.c.l.b16 %v1974
    %v2355 = vunpack.c.l.b16 %v1975
    %v2356 = vunpack.c.l.b16 %v1976
    %v2357 = vunpack.c.l.b16 %v1977
    %v2358 = vunpack.c.l.b16 %v1978
    %v2359 = vunpack.c.l.b16 %v1979
    %v2360 = vpack.c.b16 %v2345, %v2344
    %v2361 = vpack.c.b16 %v2347, %v2346
    %v2362 = vpack.c.b16 %v2349, %v2348
    %v2363 = vpack.c.b16 %v2351, %v2350
    %v2364 = vpack.c.b16 %v2353, %v2352
    %v2365 = vpack.c.b16 %v2355, %v2354
    %v2366 = vpack.c.b16 %v2357, %v2356
    %v2367 = vpack.c.b16 %v2359, %v2358
    %2376 = vmatprep.subr.bf16.mxu0 0
    %2377 = vmatpush1.bf16.msra.mxu0 %v2360
    %2378 = vmatprep.subr.bf16.mxu0 0
    %2379 = vmatpush1.bf16.msra.mxu0 %v2361
    %2380 = vmatprep.subr.bf16.mxu0 0
    %2381 = vmatpush1.bf16.msra.mxu0 %v2362
    %2382 = vmatprep.subr.bf16.mxu0 0
    %2383 = vmatpush1.bf16.msra.mxu0 %v2363
    %2384 = vmatprep.subr.bf16.mxu0 0
    %2385 = vmatpush1.bf16.msra.mxu0 %v2364
    %2386 = vmatprep.subr.bf16.mxu0 0
    %2387 = vmatpush1.bf16.msra.mxu0 %v2365
    %2388 = vmatprep.subr.bf16.mxu0 0
    %2389 = vmatpush1.bf16.msra.mxu0 %v2366
    %2390 = vmatprep.subr.bf16.mxu0 0
    %2391 = vmatpush1.bf16.msra.mxu0 %v2367
    %2392 = vmatprep.subr.bf16.mxu0 0
    %2393 = vmatpush1.bf16.msra.mxu0 0
    %2394 = vmatprep.subr.bf16.mxu0 0
    %2395 = vmatpush1.bf16.msra.mxu0 0
    %2396 = vmatprep.subr.bf16.mxu0 0
    %2397 = vmatpush1.bf16.msra.mxu0 0
    %2398 = vmatprep.subr.bf16.mxu0 0
    %2399 = vmatpush1.bf16.msra.mxu0 0
    %2400 = vmatprep.subr.bf16.mxu0 0
    %2401 = vmatpush1.bf16.msra.mxu0 0
    %2402 = vmatprep.subr.bf16.mxu0 0
    %2403 = vmatpush1.bf16.msra.mxu0 0
    %2404 = vmatprep.subr.bf16.mxu0 0
    %2405 = vmatpush1.bf16.msra.mxu0 0
    %2406 = vmatprep.subr.bf16.mxu0 0
    %2407 = vmatpush1.bf16.msra.mxu0 0
    %2408 = vmatprep.mubr.bf16.mxu0 0
    %2409 = vmatmul.mubr.bf16.gmra.mrb[0].mxu0 %v2286
    %v2410 = vpop.f32.mrb[0].mxu0
    %v2411 = vadd.f32 %v2209, %v2410
    %v2412 = vpop.f32.mrb[0].mxu0
    %v2413 = vpop.f32.mrb[0].mxu0
    %v2414 = vadd.f32 %v2212, %v2413
    %v2415 = vpop.f32.mrb[0].mxu0
    %2416 = vmatprep.mubr.bf16.mxu0 0
    %2417 = vmatmul.mubr.bf16.gmra.mrb[0].mxu0 %v2325
    %v2418 = vpop.f32.mrb[0].mxu0
    %v2419 = vadd.f32 %v2217, %v2418
    %v2420 = vpop.f32.mrb[0].mxu0
    %v2421 = vpop.f32.mrb[0].mxu0
    %v2422 = vadd.f32 %v2220, %v2421
    %v2423 = vpop.f32.mrb[0].mxu0
    %2424 = vdwg.mxu0
    %v2429 = vcombine.high %v2411, %v2411
    %v2431 = vunpack.c.l.s4 1966171168
    %v2432 = vunpack.c.0.s8 %v2431
    %v2433 = vlaneseq
    %v2434 = vshrl.u32 %v2433, 7
    %v2435 = vsub.s32 %v2432, %v2434
    %v2436 = vrot.slane %v2411, %v2435
    %v2438 = vunpack.c.l.s4 1966171168
    %v2439 = vunpack.c.0.s8 %v2438
    %v2440 = vlaneseq
    %v2441 = vshrl.u32 %v2440, 7
    %v2442 = vsub.s32 %v2439, %v2441
    %v2443 = vrot.slane %v2429, %v2442
    %v2444 = vcombine.high %v2436, %v2436
    %v2445 = vcombine.high %v2443, %v2443
    %v2447 = vunpack.c.l.s4 1966171168
    %v2448 = vunpack.c.0.s8 %v2447
    %v2449 = vlaneseq
    %v2450 = vshrl.u32 %v2449, 7
    %v2451 = vsub.s32 %v2448, %v2450
    %v2452 = vrot.slane %v2436, %v2451
    %v2454 = vunpack.c.l.s4 1966171168
    %v2455 = vunpack.c.0.s8 %v2454
    %v2456 = vlaneseq
    %v2457 = vshrl.u32 %v2456, 7
    %v2458 = vsub.s32 %v2455, %v2457
    %v2459 = vrot.slane %v2443, %v2458
    %v2461 = vunpack.c.l.s4 1966171168
    %v2462 = vunpack.c.0.s8 %v2461
    %v2463 = vlaneseq
    %v2464 = vshrl.u32 %v2463, 7
    %v2465 = vsub.s32 %v2462, %v2464
    %v2466 = vrot.slane %v2444, %v2465
    %v2468 = vunpack.c.l.s4 1966171168
    %v2469 = vunpack.c.0.s8 %v2468
    %v2470 = vlaneseq
    %v2471 = vshrl.u32 %v2470, 7
    %v2472 = vsub.s32 %v2469, %v2471
    %v2473 = vrot.slane %v2445, %v2472
    %v2474 = vcombine.high %v2452, %v2452
    %v2475 = vcombine.high %v2459, %v2459
    %v2476 = vcombine.high %v2466, %v2466
    %v2477 = vcombine.high %v2473, %v2473
    %v2478 = vcombine.high %v2414, %v2414
    %v2480 = vunpack.c.l.s4 1966171168
    %v2481 = vunpack.c.0.s8 %v2480
    %v2482 = vlaneseq
    %v2483 = vshrl.u32 %v2482, 7
    %v2484 = vsub.s32 %v2481, %v2483
    %v2485 = vrot.slane %v2414, %v2484
    %v2487 = vunpack.c.l.s4 1966171168
    %v2488 = vunpack.c.0.s8 %v2487
    %v2489 = vlaneseq
    %v2490 = vshrl.u32 %v2489, 7
    %v2491 = vsub.s32 %v2488, %v2490
    %v2492 = vrot.slane %v2478, %v2491
    %v2493 = vcombine.high %v2485, %v2485
    %v2494 = vcombine.high %v2492, %v2492
    %v2496 = vunpack.c.l.s4 1966171168
    %v2497 = vunpack.c.0.s8 %v2496
    %v2498 = vlaneseq
    %v2499 = vshrl.u32 %v2498, 7
    %v2500 = vsub.s32 %v2497, %v2499
    %v2501 = vrot.slane %v2485, %v2500
    %v2503 = vunpack.c.l.s4 1966171168
    %v2504 = vunpack.c.0.s8 %v2503
    %v2505 = vlaneseq
    %v2506 = vshrl.u32 %v2505, 7
    %v2507 = vsub.s32 %v2504, %v2506
    %v2508 = vrot.slane %v2492, %v2507
    %v2510 = vunpack.c.l.s4 1966171168
    %v2511 = vunpack.c.0.s8 %v2510
    %v2512 = vlaneseq
    %v2513 = vshrl.u32 %v2512, 7
    %v2514 = vsub.s32 %v2511, %v2513
    %v2515 = vrot.slane %v2493, %v2514
    %v2517 = vunpack.c.l.s4 1966171168
    %v2518 = vunpack.c.0.s8 %v2517
    %v2519 = vlaneseq
    %v2520 = vshrl.u32 %v2519, 7
    %v2521 = vsub.s32 %v2518, %v2520
    %v2522 = vrot.slane %v2494, %v2521
    %v2523 = vcombine.high %v2501, %v2501
    %v2524 = vcombine.high %v2508, %v2508
    %v2525 = vcombine.high %v2515, %v2515
    %v2526 = vcombine.high %v2522, %v2522
    %v2527 = vcombine.high %v2419, %v2419
    %v2529 = vunpack.c.l.s4 1966171168
    %v2530 = vunpack.c.0.s8 %v2529
    %v2531 = vlaneseq
    %v2532 = vshrl.u32 %v2531, 7
    %v2533 = vsub.s32 %v2530, %v2532
    %v2534 = vrot.slane %v2419, %v2533
    %v2536 = vunpack.c.l.s4 1966171168
    %v2537 = vunpack.c.0.s8 %v2536
    %v2538 = vlaneseq
    %v2539 = vshrl.u32 %v2538, 7
    %v2540 = vsub.s32 %v2537, %v2539
    %v2541 = vrot.slane %v2527, %v2540
    %v2542 = vcombine.high %v2534, %v2534
    %v2543 = vcombine.high %v2541, %v2541
    %v2545 = vunpack.c.l.s4 1966171168
    %v2546 = vunpack.c.0.s8 %v2545
    %v2547 = vlaneseq
    %v2548 = vshrl.u32 %v2547, 7
    %v2549 = vsub.s32 %v2546, %v2548
    %v2550 = vrot.slane %v2534, %v2549
    %v2552 = vunpack.c.l.s4 1966171168
    %v2553 = vunpack.c.0.s8 %v2552
    %v2554 = vlaneseq
    %v2555 = vshrl.u32 %v2554, 7
    %v2556 = vsub.s32 %v2553, %v2555
    %v2557 = vrot.slane %v2541, %v2556
    %v2559 = vunpack.c.l.s4 1966171168
    %v2560 = vunpack.c.0.s8 %v2559
    %v2561 = vlaneseq
    %v2562 = vshrl.u32 %v2561, 7
    %v2563 = vsub.s32 %v2560, %v2562
    %v2564 = vrot.slane %v2542, %v2563
    %v2566 = vunpack.c.l.s4 1966171168
    %v2567 = vunpack.c.0.s8 %v2566
    %v2568 = vlaneseq
    %v2569 = vshrl.u32 %v2568, 7
    %v2570 = vsub.s32 %v2567, %v2569
    %v2571 = vrot.slane %v2543, %v2570
    %v2572 = vcombine.high %v2550, %v2550
    %v2573 = vcombine.high %v2557, %v2557
    %v2574 = vcombine.high %v2564, %v2564
    %v2575 = vcombine.high %v2571, %v2571
    %v2577 = vunpack.c.l.s4 1966171168
    %v2578 = vunpack.c.0.s8 %v2577
    %v2579 = vlaneseq
    %v2580 = vshrl.u32 %v2579, 7
    %v2581 = vsub.s32 %v2578, %v2580
    %v2582 = vrot.slane %v2422, %v2581
    %v2583 = vcombine.high %v2582, %v2582
    %v2585 = vunpack.c.l.s4 1966171168
    %v2586 = vunpack.c.0.s8 %v2585
    %v2587 = vlaneseq
    %v2588 = vshrl.u32 %v2587, 7
    %v2589 = vsub.s32 %v2586, %v2588
    %v2590 = vrot.slane %v2582, %v2589
    %v2592 = vunpack.c.l.s4 1966171168
    %v2593 = vunpack.c.0.s8 %v2592
    %v2594 = vlaneseq
    %v2595 = vshrl.u32 %v2594, 7
    %v2596 = vsub.s32 %v2593, %v2595
    %v2597 = vrot.slane %v2583, %v2596
    %s2624 = scalar_lea.vmem [#allocation11], 128
    %v2625 = vld [vmem:[%s2624] sm:$0xf]
    %v2626 = vld [vmem:[%s2624 + $0x4] sm:$0xf]
    %v2627 = vld [vmem:[%s2624 + $0x8] sm:$0xf]
    %v2628 = vld [vmem:[%s2624 + $0xc] sm:$0xf]
    %v2629 = vld [vmem:[%s2624 + $0x10] sm:$0xf]
    %v2630 = vld [vmem:[%s2624 + $0x14] sm:$0xf]
    %v2631 = vld [vmem:[%s2624 + $0x18] sm:$0xf]
    %v2632 = vld [vmem:[%s2624 + $0x1c] sm:$0xf]
    %v2633 = vld [vmem:[%s2624 + $0x20] sm:$0xf]
    %v2634 = vld [vmem:[%s2624 + $0x24] sm:$0xf]
    %v2635 = vld [vmem:[%s2624 + $0x28] sm:$0xf]
    %v2636 = vld [vmem:[%s2624 + $0x2c] sm:$0xf]
    %v2637 = vld [vmem:[%s2624 + $0x30] sm:$0xf]
    %v2638 = vld [vmem:[%s2624 + $0x34] sm:$0xf]
    %v2639 = vld [vmem:[%s2624 + $0x38] sm:$0xf]
    %v2640 = vld [vmem:[%s2624 + $0x3c] sm:$0xf]
    %v2641 = vunpack.i.l.s16 %v268
    %v2642 = vunpack.i.l.s16 %v317
    %v2643 = vpack.i.b16 %v2009, %v2008
    %v2644 = vpack.i.b16 %v2011, %v2641
    %v2645 = vpack.i.b16 %v2642, %v2022
    %v2646 = vcombine.low %v2226, %v2227
    %v2647 = vcombine.low %v2228, %v2229
    %v2648 = vcombine.low %v2230, %v2643
    %v2649 = vcombine.low %v2644, %v2233
    %v2651 = vunpack.c.l.s4 1966171168
    %v2652 = vunpack.c.0.s8 %v2651
    %v2653 = vlaneseq
    %v2654 = vshrl.u32 %v2653, 7
    %v2655 = vsub.s32 %v2652, %v2654
    %v2656 = vrot.slane %v2646, %v2655
    %v2658 = vunpack.c.l.s4 1966171168
    %v2659 = vunpack.c.0.s8 %v2658
    %v2660 = vlaneseq
    %v2661 = vshrl.u32 %v2660, 7
    %v2662 = vsub.s32 %v2659, %v2661
    %v2663 = vrot.slane %v2647, %v2662
    %v2665 = vunpack.c.l.s4 1966171168
    %v2666 = vunpack.c.0.s8 %v2665
    %v2667 = vlaneseq
    %v2668 = vshrl.u32 %v2667, 7
    %v2669 = vsub.s32 %v2666, %v2668
    %v2670 = vrot.slane %v2648, %v2669
    %v2672 = vunpack.c.l.s4 1966171168
    %v2673 = vunpack.c.0.s8 %v2672
    %v2674 = vlaneseq
    %v2675 = vshrl.u32 %v2674, 7
    %v2676 = vsub.s32 %v2673, %v2675
    %v2677 = vrot.slane %v2649, %v2676
    %v2678 = vcombine.low %v2656, %v2663
    %v2679 = vcombine.low %v2670, %v2677
    %v2681 = vunpack.c.l.s4 1966171168
    %v2682 = vunpack.c.0.s8 %v2681
    %v2683 = vlaneseq
    %v2684 = vshrl.u32 %v2683, 7
    %v2685 = vsub.s32 %v2682, %v2684
    %v2686 = vrot.slane %v2678, %v2685
    %v2688 = vunpack.c.l.s4 1966171168
    %v2689 = vunpack.c.0.s8 %v2688
    %v2690 = vlaneseq
    %v2691 = vshrl.u32 %v2690, 7
    %v2692 = vsub.s32 %v2689, %v2691
    %v2693 = vrot.slane %v2679, %v2692
    %v2694 = vcombine.low %v2686, %v2693
    %v2695 = vcombine.low %v2234, %v2235
    %v2696 = vcombine.low %v2236, %v2237
    %v2698 = vunpack.c.l.s4 1966171168
    %v2699 = vunpack.c.0.s8 %v2698
    %v2700 = vlaneseq
    %v2701 = vshrl.u32 %v2700, 7
    %v2702 = vsub.s32 %v2699, %v2701
    %v2703 = vrot.slane %v2695, %v2702
    %v2705 = vunpack.c.l.s4 1966171168
    %v2706 = vunpack.c.0.s8 %v2705
    %v2707 = vlaneseq
    %v2708 = vshrl.u32 %v2707, 7
    %v2709 = vsub.s32 %v2706, %v2708
    %v2710 = vrot.slane %v2696, %v2709
    %v2712 = vunpack.c.l.s4 1966171168
    %v2713 = vunpack.c.0.s8 %v2712
    %v2714 = vlaneseq
    %v2715 = vshrl.u32 %v2714, 7
    %v2716 = vsub.s32 %v2713, %v2715
    %v2717 = vrot.slane %v2645, %v2716
    %v2718 = vcombine.low %v2703, %v2710
    %v2720 = vunpack.c.l.s4 1966171168
    %v2721 = vunpack.c.0.s8 %v2720
    %v2722 = vlaneseq
    %v2723 = vshrl.u32 %v2722, 7
    %v2724 = vsub.s32 %v2721, %v2723
    %v2725 = vrot.slane %v2718, %v2724
    %v2727 = vunpack.c.l.s4 1966171168
    %v2728 = vunpack.c.0.s8 %v2727
    %v2729 = vlaneseq
    %v2730 = vshrl.u32 %v2729, 7
    %v2731 = vsub.s32 %v2728, %v2730
    %v2732 = vrot.slane %v2717, %v2731
    %v2733 = vcombine.low %v2725, %v2732
    %v2752 = vunpack.c.l.b16 %v2625
    %v2753 = vunpack.c.l.b16 %v2626
    %v2754 = vunpack.c.l.b16 %v2627
    %v2755 = vunpack.c.l.b16 %v2628
    %v2756 = vunpack.c.l.b16 %v2629
    %v2757 = vunpack.c.l.b16 %v2630
    %v2758 = vunpack.c.l.b16 %v2631
    %v2759 = vunpack.c.l.b16 %v2632
    %v2760 = vunpack.c.l.b16 %v2633
    %v2761 = vunpack.c.l.b16 %v2634
    %v2762 = vunpack.c.l.b16 %v2635
    %v2763 = vunpack.c.l.b16 %v2636
    %v2764 = vunpack.c.l.b16 %v2637
    %v2765 = vunpack.c.l.b16 %v2638
    %v2766 = vunpack.c.l.b16 %v2639
    %v2767 = vunpack.c.l.b16 %v2640
    %v2768 = vpack.c.b16 %v2753, %v2752
    %v2769 = vpack.c.b16 %v2755, %v2754
    %v2770 = vpack.c.b16 %v2757, %v2756
    %v2771 = vpack.c.b16 %v2759, %v2758
    %v2772 = vpack.c.b16 %v2761, %v2760
    %v2773 = vpack.c.b16 %v2763, %v2762
    %v2774 = vpack.c.b16 %v2765, %v2764
    %v2775 = vpack.c.b16 %v2767, %v2766
    %2784 = vmatprep.subr.bf16.mxu0 0
    %2785 = vmatpush1.bf16.msra.mxu0 %v2768
    %2786 = vmatprep.subr.bf16.mxu0 0
    %2787 = vmatpush1.bf16.msra.mxu0 %v2769
    %2788 = vmatprep.subr.bf16.mxu0 0
    %2789 = vmatpush1.bf16.msra.mxu0 %v2770
    %2790 = vmatprep.subr.bf16.mxu0 0
    %2791 = vmatpush1.bf16.msra.mxu0 %v2771
    %2792 = vmatprep.subr.bf16.mxu0 0
    %2793 = vmatpush1.bf16.msra.mxu0 %v2772
    %2794 = vmatprep.subr.bf16.mxu0 0
    %2795 = vmatpush1.bf16.msra.mxu0 %v2773
    %2796 = vmatprep.subr.bf16.mxu0 0
    %2797 = vmatpush1.bf16.msra.mxu0 %v2774
    %2798 = vmatprep.subr.bf16.mxu0 0
    %2799 = vmatpush1.bf16.msra.mxu0 %v2775
    %2800 = vmatprep.subr.bf16.mxu0 0
    %2801 = vmatpush1.bf16.msra.mxu0 0
    %2802 = vmatprep.subr.bf16.mxu0 0
    %2803 = vmatpush1.bf16.msra.mxu0 0
    %2804 = vmatprep.subr.bf16.mxu0 0
    %2805 = vmatpush1.bf16.msra.mxu0 0
    %2806 = vmatprep.subr.bf16.mxu0 0
    %2807 = vmatpush1.bf16.msra.mxu0 0
    %2808 = vmatprep.subr.bf16.mxu0 0
    %2809 = vmatpush1.bf16.msra.mxu0 0
    %2810 = vmatprep.subr.bf16.mxu0 0
    %2811 = vmatpush1.bf16.msra.mxu0 0
    %2812 = vmatprep.subr.bf16.mxu0 0
    %2813 = vmatpush1.bf16.msra.mxu0 0
    %2814 = vmatprep.subr.bf16.mxu0 0
    %2815 = vmatpush1.bf16.msra.mxu0 0
    %2816 = vmatprep.mubr.bf16.mxu0 0
    %2817 = vmatmul.mubr.bf16.gmra.mrb[0].mxu0 %v2694
    %v2818 = vpop.f32.mrb[0].mxu0
    %v2819 = vadd.f32 0.0, %v2818
    %v2820 = vpop.f32.mrb[0].mxu0
    %v2821 = vpop.f32.mrb[0].mxu0
    %v2822 = vadd.f32 0.0, %v2821
    %v2823 = vpop.f32.mrb[0].mxu0
    %2824 = vmatprep.mubr.bf16.mxu0 0
    %2825 = vmatmul.mubr.bf16.gmra.mrb[0].mxu0 %v2733
    %v2826 = vpop.f32.mrb[0].mxu0
    %v2827 = vadd.f32 0.0, %v2826
    %v2828 = vpop.f32.mrb[0].mxu0
    %v2829 = vpop.f32.mrb[0].mxu0
    %v2830 = vadd.f32 0.0, %v2829
    %v2831 = vpop.f32.mrb[0].mxu0
    %2832 = vdwg.mxu0
    %v2837 = vcombine.high %v2819, %v2819
    %v2839 = vunpack.c.l.s4 1966171168
    %v2840 = vunpack.c.0.s8 %v2839
    %v2841 = vlaneseq
    %v2842 = vshrl.u32 %v2841, 7
    %v2843 = vsub.s32 %v2840, %v2842
    %v2844 = vrot.slane %v2819, %v2843
    %v2846 = vunpack.c.l.s4 1966171168
    %v2847 = vunpack.c.0.s8 %v2846
    %v2848 = vlaneseq
    %v2849 = vshrl.u32 %v2848, 7
    %v2850 = vsub.s32 %v2847, %v2849
    %v2851 = vrot.slane %v2837, %v2850
    %v2852 = vcombine.high %v2844, %v2844
    %v2853 = vcombine.high %v2851, %v2851
    %v2855 = vunpack.c.l.s4 1966171168
    %v2856 = vunpack.c.0.s8 %v2855
    %v2857 = vlaneseq
    %v2858 = vshrl.u32 %v2857, 7
    %v2859 = vsub.s32 %v2856, %v2858
    %v2860 = vrot.slane %v2844, %v2859
    %v2862 = vunpack.c.l.s4 1966171168
    %v2863 = vunpack.c.0.s8 %v2862
    %v2864 = vlaneseq
    %v2865 = vshrl.u32 %v2864, 7
    %v2866 = vsub.s32 %v2863, %v2865
    %v2867 = vrot.slane %v2851, %v2866
    %v2869 = vunpack.c.l.s4 1966171168
    %v2870 = vunpack.c.0.s8 %v2869
    %v2871 = vlaneseq
    %v2872 = vshrl.u32 %v2871, 7
    %v2873 = vsub.s32 %v2870, %v2872
    %v2874 = vrot.slane %v2852, %v2873
    %v2876 = vunpack.c.l.s4 1966171168
    %v2877 = vunpack.c.0.s8 %v2876
    %v2878 = vlaneseq
    %v2879 = vshrl.u32 %v2878, 7
    %v2880 = vsub.s32 %v2877, %v2879
    %v2881 = vrot.slane %v2853, %v2880
    %v2882 = vcombine.high %v2860, %v2860
    %v2883 = vcombine.high %v2867, %v2867
    %v2884 = vcombine.high %v2874, %v2874
    %v2885 = vcombine.high %v2881, %v2881
    %v2886 = vcombine.high %v2822, %v2822
    %v2888 = vunpack.c.l.s4 1966171168
    %v2889 = vunpack.c.0.s8 %v2888
    %v2890 = vlaneseq
    %v2891 = vshrl.u32 %v2890, 7
    %v2892 = vsub.s32 %v2889, %v2891
    %v2893 = vrot.slane %v2822, %v2892
    %v2895 = vunpack.c.l.s4 1966171168
    %v2896 = vunpack.c.0.s8 %v2895
    %v2897 = vlaneseq
    %v2898 = vshrl.u32 %v2897, 7
    %v2899 = vsub.s32 %v2896, %v2898
    %v2900 = vrot.slane %v2886, %v2899
    %v2901 = vcombine.high %v2893, %v2893
    %v2902 = vcombine.high %v2900, %v2900
    %v2904 = vunpack.c.l.s4 1966171168
    %v2905 = vunpack.c.0.s8 %v2904
    %v2906 = vlaneseq
    %v2907 = vshrl.u32 %v2906, 7
    %v2908 = vsub.s32 %v2905, %v2907
    %v2909 = vrot.slane %v2893, %v2908
    %v2911 = vunpack.c.l.s4 1966171168
    %v2912 = vunpack.c.0.s8 %v2911
    %v2913 = vlaneseq
    %v2914 = vshrl.u32 %v2913, 7
    %v2915 = vsub.s32 %v2912, %v2914
    %v2916 = vrot.slane %v2900, %v2915
    %v2918 = vunpack.c.l.s4 1966171168
    %v2919 = vunpack.c.0.s8 %v2918
    %v2920 = vlaneseq
    %v2921 = vshrl.u32 %v2920, 7
    %v2922 = vsub.s32 %v2919, %v2921
    %v2923 = vrot.slane %v2901, %v2922
    %v2925 = vunpack.c.l.s4 1966171168
    %v2926 = vunpack.c.0.s8 %v2925
    %v2927 = vlaneseq
    %v2928 = vshrl.u32 %v2927, 7
    %v2929 = vsub.s32 %v2926, %v2928
    %v2930 = vrot.slane %v2902, %v2929
    %v2931 = vcombine.high %v2909, %v2909
    %v2932 = vcombine.high %v2916, %v2916
    %v2933 = vcombine.high %v2923, %v2923
    %v2934 = vcombine.high %v2930, %v2930
    %v2935 = vcombine.high %v2827, %v2827
    %v2937 = vunpack.c.l.s4 1966171168
    %v2938 = vunpack.c.0.s8 %v2937
    %v2939 = vlaneseq
    %v2940 = vshrl.u32 %v2939, 7
    %v2941 = vsub.s32 %v2938, %v2940
    %v2942 = vrot.slane %v2827, %v2941
    %v2944 = vunpack.c.l.s4 1966171168
    %v2945 = vunpack.c.0.s8 %v2944
    %v2946 = vlaneseq
    %v2947 = vshrl.u32 %v2946, 7
    %v2948 = vsub.s32 %v2945, %v2947
    %v2949 = vrot.slane %v2935, %v2948
    %v2950 = vcombine.high %v2942, %v2942
    %v2951 = vcombine.high %v2949, %v2949
    %v2953 = vunpack.c.l.s4 1966171168
    %v2954 = vunpack.c.0.s8 %v2953
    %v2955 = vlaneseq
    %v2956 = vshrl.u32 %v2955, 7
    %v2957 = vsub.s32 %v2954, %v2956
    %v2958 = vrot.slane %v2942, %v2957
    %v2960 = vunpack.c.l.s4 1966171168
    %v2961 = vunpack.c.0.s8 %v2960
    %v2962 = vlaneseq
    %v2963 = vshrl.u32 %v2962, 7
    %v2964 = vsub.s32 %v2961, %v2963
    %v2965 = vrot.slane %v2949, %v2964
    %v2967 = vunpack.c.l.s4 1966171168
    %v2968 = vunpack.c.0.s8 %v2967
    %v2969 = vlaneseq
    %v2970 = vshrl.u32 %v2969, 7
    %v2971 = vsub.s32 %v2968, %v2970
    %v2972 = vrot.slane %v2950, %v2971
    %v2974 = vunpack.c.l.s4 1966171168
    %v2975 = vunpack.c.0.s8 %v2974
    %v2976 = vlaneseq
    %v2977 = vshrl.u32 %v2976, 7
    %v2978 = vsub.s32 %v2975, %v2977
    %v2979 = vrot.slane %v2951, %v2978
    %v2980 = vcombine.high %v2958, %v2958
    %v2981 = vcombine.high %v2965, %v2965
    %v2982 = vcombine.high %v2972, %v2972
    %v2983 = vcombine.high %v2979, %v2979
    %v2985 = vunpack.c.l.s4 1966171168
    %v2986 = vunpack.c.0.s8 %v2985
    %v2987 = vlaneseq
    %v2988 = vshrl.u32 %v2987, 7
    %v2989 = vsub.s32 %v2986, %v2988
    %v2990 = vrot.slane %v2830, %v2989
    %v2991 = vcombine.high %v2990, %v2990
    %v2993 = vunpack.c.l.s4 1966171168
    %v2994 = vunpack.c.0.s8 %v2993
    %v2995 = vlaneseq
    %v2996 = vshrl.u32 %v2995, 7
    %v2997 = vsub.s32 %v2994, %v2996
    %v2998 = vrot.slane %v2990, %v2997
    %v3000 = vunpack.c.l.s4 1966171168
    %v3001 = vunpack.c.0.s8 %v3000
    %v3002 = vlaneseq
    %v3003 = vshrl.u32 %v3002, 7
    %v3004 = vsub.s32 %v3001, %v3003
    %v3005 = vrot.slane %v2991, %v3004
    %v3032 = vadd.f32 %v2452, %v2860
    %v3033 = vadd.f32 %v2466, %v2874
    %v3034 = vadd.f32 %v2474, %v2882
    %v3035 = vadd.f32 %v2476, %v2884
    %v3036 = vadd.f32 %v2459, %v2867
    %v3037 = vadd.f32 %v2473, %v2881
    %v3038 = vadd.f32 %v2475, %v2883
    %v3039 = vadd.f32 %v2477, %v2885
    %v3040 = vadd.f32 %v2501, %v2909
    %v3041 = vadd.f32 %v2515, %v2923
    %v3042 = vadd.f32 %v2523, %v2931
    %v3043 = vadd.f32 %v2525, %v2933
    %v3044 = vadd.f32 %v2508, %v2916
    %v3045 = vadd.f32 %v2522, %v2930
    %v3046 = vadd.f32 %v2524, %v2932
    %v3047 = vadd.f32 %v2526, %v2934
    %v3048 = vadd.f32 %v2550, %v2958
    %v3049 = vadd.f32 %v2564, %v2972
    %v3050 = vadd.f32 %v2572, %v2980
    %v3051 = vadd.f32 %v2574, %v2982
    %v3052 = vadd.f32 %v2557, %v2965
    %v3053 = vadd.f32 %v2571, %v2979
    %v3054 = vadd.f32 %v2573, %v2981
    %v3055 = vadd.f32 %v2575, %v2983
    %v3056 = vadd.f32 %v2590, %v2998
    %v3057 = vadd.f32 %v2597, %v3005
    %s3058 = scalar_lea.vmem [#allocation11], 192
    %v3059 = vld [vmem:[%s3058] sm:$0xf]
    %v3060 = vld [vmem:[%s3058 + $0x4] sm:$0xf]
    %v3061 = vld [vmem:[%s3058 + $0x8] sm:$0xf]
    %v3062 = vld [vmem:[%s3058 + $0xc] sm:$0xf]
    %v3063 = vld [vmem:[%s3058 + $0x10] sm:$0xf]
    %v3064 = vld [vmem:[%s3058 + $0x14] sm:$0xf]
    %v3065 = vld [vmem:[%s3058 + $0x18] sm:$0xf]
    %v3066 = vld [vmem:[%s3058 + $0x1c] sm:$0xf]
    %v3067 = vld [vmem:[%s3058 + $0x20] sm:$0xf]
    %v3068 = vld [vmem:[%s3058 + $0x24] sm:$0xf]
    %v3069 = vld [vmem:[%s3058 + $0x28] sm:$0xf]
    %v3070 = vld [vmem:[%s3058 + $0x2c] sm:$0xf]
    %v3071 = vld [vmem:[%s3058 + $0x30] sm:$0xf]
    %v3072 = vld [vmem:[%s3058 + $0x34] sm:$0xf]
    %v3073 = vld [vmem:[%s3058 + $0x38] sm:$0xf]
    %v3074 = vld [vmem:[%s3058 + $0x3c] sm:$0xf]
    %v3075 = vunpack.i.h.s16 %v268
    %v3076 = vunpack.i.h.s16 %v317
    %v3077 = vpack.i.b16 %v2641, %v2009
    %v3078 = vpack.i.b16 %v2012, %v3075
    %v3079 = vpack.i.b16 %v3076, %v2642
    %v3080 = vcombine.low %v2024, %v2025
    %v3081 = vcombine.low %v2026, %v2027
    %v3082 = vcombine.low %v2028, %v3077
    %v3083 = vcombine.low %v3078, %v2031
    %v3085 = vunpack.c.l.s4 1966171168
    %v3086 = vunpack.c.0.s8 %v3085
    %v3087 = vlaneseq
    %v3088 = vshrl.u32 %v3087, 7
    %v3089 = vsub.s32 %v3086, %v3088
    %v3090 = vrot.slane %v3080, %v3089
    %v3092 = vunpack.c.l.s4 1966171168
    %v3093 = vunpack.c.0.s8 %v3092
    %v3094 = vlaneseq
    %v3095 = vshrl.u32 %v3094, 7
    %v3096 = vsub.s32 %v3093, %v3095
    %v3097 = vrot.slane %v3081, %v3096
    %v3099 = vunpack.c.l.s4 1966171168
    %v3100 = vunpack.c.0.s8 %v3099
    %v3101 = vlaneseq
    %v3102 = vshrl.u32 %v3101, 7
    %v3103 = vsub.s32 %v3100, %v3102
    %v3104 = vrot.slane %v3082, %v3103
    %v3106 = vunpack.c.l.s4 1966171168
    %v3107 = vunpack.c.0.s8 %v3106
    %v3108 = vlaneseq
    %v3109 = vshrl.u32 %v3108, 7
    %v3110 = vsub.s32 %v3107, %v3109
    %v3111 = vrot.slane %v3083, %v3110
    %v3112 = vcombine.low %v3090, %v3097
    %v3113 = vcombine.low %v3104, %v3111
    %v3115 = vunpack.c.l.s4 1966171168
    %v3116 = vunpack.c.0.s8 %v3115
    %v3117 = vlaneseq
    %v3118 = vshrl.u32 %v3117, 7
    %v3119 = vsub.s32 %v3116, %v3118
    %v3120 = vrot.slane %v3112, %v3119
    %v3122 = vunpack.c.l.s4 1966171168
    %v3123 = vunpack.c.0.s8 %v3122
    %v3124 = vlaneseq
    %v3125 = vshrl.u32 %v3124, 7
    %v3126 = vsub.s32 %v3123, %v3125
    %v3127 = vrot.slane %v3113, %v3126
    %v3128 = vcombine.low %v3120, %v3127
    %v3129 = vcombine.low %v2032, %v2033
    %v3130 = vcombine.low %v2034, %v2035
    %v3132 = vunpack.c.l.s4 1966171168
    %v3133 = vunpack.c.0.s8 %v3132
    %v3134 = vlaneseq
    %v3135 = vshrl.u32 %v3134, 7
    %v3136 = vsub.s32 %v3133, %v3135
    %v3137 = vrot.slane %v3129, %v3136
    %v3139 = vunpack.c.l.s4 1966171168
    %v3140 = vunpack.c.0.s8 %v3139
    %v3141 = vlaneseq
    %v3142 = vshrl.u32 %v3141, 7
    %v3143 = vsub.s32 %v3140, %v3142
    %v3144 = vrot.slane %v3130, %v3143
    %v3146 = vunpack.c.l.s4 1966171168
    %v3147 = vunpack.c.0.s8 %v3146
    %v3148 = vlaneseq
    %v3149 = vshrl.u32 %v3148, 7
    %v3150 = vsub.s32 %v3147, %v3149
    %v3151 = vrot.slane %v3079, %v3150
    %v3152 = vcombine.low %v3137, %v3144
    %v3154 = vunpack.c.l.s4 1966171168
    %v3155 = vunpack.c.0.s8 %v3154
    %v3156 = vlaneseq
    %v3157 = vshrl.u32 %v3156, 7
    %v3158 = vsub.s32 %v3155, %v3157
    %v3159 = vrot.slane %v3152, %v3158
    %v3161 = vunpack.c.l.s4 1966171168
    %v3162 = vunpack.c.0.s8 %v3161
    %v3163 = vlaneseq
    %v3164 = vshrl.u32 %v3163, 7
    %v3165 = vsub.s32 %v3162, %v3164
    %v3166 = vrot.slane %v3151, %v3165
    %v3167 = vcombine.low %v3159, %v3166
    %v3186 = vunpack.c.l.b16 %v3059
    %v3187 = vunpack.c.l.b16 %v3060
    %v3188 = vunpack.c.l.b16 %v3061
    %v3189 = vunpack.c.l.b16 %v3062
    %v3190 = vunpack.c.l.b16 %v3063
    %v3191 = vunpack.c.l.b16 %v3064
    %v3192 = vunpack.c.l.b16 %v3065
    %v3193 = vunpack.c.l.b16 %v3066
    %v3194 = vunpack.c.l.b16 %v3067
    %v3195 = vunpack.c.l.b16 %v3068
    %v3196 = vunpack.c.l.b16 %v3069
    %v3197 = vunpack.c.l.b16 %v3070
    %v3198 = vunpack.c.l.b16 %v3071
    %v3199 = vunpack.c.l.b16 %v3072
    %v3200 = vunpack.c.l.b16 %v3073
    %v3201 = vunpack.c.l.b16 %v3074
    %v3202 = vpack.c.b16 %v3187, %v3186
    %v3203 = vpack.c.b16 %v3189, %v3188
    %v3204 = vpack.c.b16 %v3191, %v3190
    %v3205 = vpack.c.b16 %v3193, %v3192
    %v3206 = vpack.c.b16 %v3195, %v3194
    %v3207 = vpack.c.b16 %v3197, %v3196
    %v3208 = vpack.c.b16 %v3199, %v3198
    %v3209 = vpack.c.b16 %v3201, %v3200
    %3218 = vmatprep.subr.bf16.mxu0 0
    %3219 = vmatpush1.bf16.msra.mxu0 %v3202
    %3220 = vmatprep.subr.bf16.mxu0 0
    %3221 = vmatpush1.bf16.msra.mxu0 %v3203
    %3222 = vmatprep.subr.bf16.mxu0 0
    %3223 = vmatpush1.bf16.msra.mxu0 %v3204
    %3224 = vmatprep.subr.bf16.mxu0 0
    %3225 = vmatpush1.bf16.msra.mxu0 %v3205
    %3226 = vmatprep.subr.bf16.mxu0 0
    %3227 = vmatpush1.bf16.msra.mxu0 %v3206
    %3228 = vmatprep.subr.bf16.mxu0 0
    %3229 = vmatpush1.bf16.msra.mxu0 %v3207
    %3230 = vmatprep.subr.bf16.mxu0 0
    %3231 = vmatpush1.bf16.msra.mxu0 %v3208
    %3232 = vmatprep.subr.bf16.mxu0 0
    %3233 = vmatpush1.bf16.msra.mxu0 %v3209
    %3234 = vmatprep.subr.bf16.mxu0 0
    %3235 = vmatpush1.bf16.msra.mxu0 0
    %3236 = vmatprep.subr.bf16.mxu0 0
    %3237 = vmatpush1.bf16.msra.mxu0 0
    %3238 = vmatprep.subr.bf16.mxu0 0
    %3239 = vmatpush1.bf16.msra.mxu0 0
    %3240 = vmatprep.subr.bf16.mxu0 0
    %3241 = vmatpush1.bf16.msra.mxu0 0
    %3242 = vmatprep.subr.bf16.mxu0 0
    %3243 = vmatpush1.bf16.msra.mxu0 0
    %3244 = vmatprep.subr.bf16.mxu0 0
    %3245 = vmatpush1.bf16.msra.mxu0 0
    %3246 = vmatprep.subr.bf16.mxu0 0
    %3247 = vmatpush1.bf16.msra.mxu0 0
    %3248 = vmatprep.subr.bf16.mxu0 0
    %3249 = vmatpush1.bf16.msra.mxu0 0
    %3250 = vmatprep.mubr.bf16.mxu0 0
    %3251 = vmatmul.mubr.bf16.gmra.mrb[0].mxu0 %v3128
    %v3252 = vpop.f32.mrb[0].mxu0
    %v3253 = vadd.f32 0.0, %v3252
    %v3254 = vpop.f32.mrb[0].mxu0
    %v3255 = vpop.f32.mrb[0].mxu0
    %v3256 = vadd.f32 0.0, %v3255
    %v3257 = vpop.f32.mrb[0].mxu0
    %3258 = vmatprep.mubr.bf16.mxu0 0
    %3259 = vmatmul.mubr.bf16.gmra.mrb[0].mxu0 %v3167
    %v3260 = vpop.f32.mrb[0].mxu0
    %v3261 = vadd.f32 0.0, %v3260
    %v3262 = vpop.f32.mrb[0].mxu0
    %v3263 = vpop.f32.mrb[0].mxu0
    %v3264 = vadd.f32 0.0, %v3263
    %v3265 = vpop.f32.mrb[0].mxu0
    %3266 = vdwg.mxu0
    %v3271 = vcombine.high %v3253, %v3253
    %v3273 = vunpack.c.l.s4 1966171168
    %v3274 = vunpack.c.0.s8 %v3273
    %v3275 = vlaneseq
    %v3276 = vshrl.u32 %v3275, 7
    %v3277 = vsub.s32 %v3274, %v3276
    %v3278 = vrot.slane %v3253, %v3277
    %v3280 = vunpack.c.l.s4 1966171168
    %v3281 = vunpack.c.0.s8 %v3280
    %v3282 = vlaneseq
    %v3283 = vshrl.u32 %v3282, 7
    %v3284 = vsub.s32 %v3281, %v3283
    %v3285 = vrot.slane %v3271, %v3284
    %v3286 = vcombine.high %v3278, %v3278
    %v3287 = vcombine.high %v3285, %v3285
    %v3289 = vunpack.c.l.s4 1966171168
    %v3290 = vunpack.c.0.s8 %v3289
    %v3291 = vlaneseq
    %v3292 = vshrl.u32 %v3291, 7
    %v3293 = vsub.s32 %v3290, %v3292
    %v3294 = vrot.slane %v3278, %v3293
    %v3296 = vunpack.c.l.s4 1966171168
    %v3297 = vunpack.c.0.s8 %v3296
    %v3298 = vlaneseq
    %v3299 = vshrl.u32 %v3298, 7
    %v3300 = vsub.s32 %v3297, %v3299
    %v3301 = vrot.slane %v3285, %v3300
    %v3303 = vunpack.c.l.s4 1966171168
    %v3304 = vunpack.c.0.s8 %v3303
    %v3305 = vlaneseq
    %v3306 = vshrl.u32 %v3305, 7
    %v3307 = vsub.s32 %v3304, %v3306
    %v3308 = vrot.slane %v3286, %v3307
    %v3310 = vunpack.c.l.s4 1966171168
    %v3311 = vunpack.c.0.s8 %v3310
    %v3312 = vlaneseq
    %v3313 = vshrl.u32 %v3312, 7
    %v3314 = vsub.s32 %v3311, %v3313
    %v3315 = vrot.slane %v3287, %v3314
    %v3316 = vcombine.high %v3294, %v3294
    %v3317 = vcombine.high %v3301, %v3301
    %v3318 = vcombine.high %v3308, %v3308
    %v3319 = vcombine.high %v3315, %v3315
    %v3320 = vcombine.high %v3256, %v3256
    %v3322 = vunpack.c.l.s4 1966171168
    %v3323 = vunpack.c.0.s8 %v3322
    %v3324 = vlaneseq
    %v3325 = vshrl.u32 %v3324, 7
    %v3326 = vsub.s32 %v3323, %v3325
    %v3327 = vrot.slane %v3256, %v3326
    %v3329 = vunpack.c.l.s4 1966171168
    %v3330 = vunpack.c.0.s8 %v3329
    %v3331 = vlaneseq
    %v3332 = vshrl.u32 %v3331, 7
    %v3333 = vsub.s32 %v3330, %v3332
    %v3334 = vrot.slane %v3320, %v3333
    %v3335 = vcombine.high %v3327, %v3327
    %v3336 = vcombine.high %v3334, %v3334
    %v3338 = vunpack.c.l.s4 1966171168
    %v3339 = vunpack.c.0.s8 %v3338
    %v3340 = vlaneseq
    %v3341 = vshrl.u32 %v3340, 7
    %v3342 = vsub.s32 %v3339, %v3341
    %v3343 = vrot.slane %v3327, %v3342
    %v3345 = vunpack.c.l.s4 1966171168
    %v3346 = vunpack.c.0.s8 %v3345
    %v3347 = vlaneseq
    %v3348 = vshrl.u32 %v3347, 7
    %v3349 = vsub.s32 %v3346, %v3348
    %v3350 = vrot.slane %v3334, %v3349
    %v3352 = vunpack.c.l.s4 1966171168
    %v3353 = vunpack.c.0.s8 %v3352
    %v3354 = vlaneseq
    %v3355 = vshrl.u32 %v3354, 7
    %v3356 = vsub.s32 %v3353, %v3355
    %v3357 = vrot.slane %v3335, %v3356
    %v3359 = vunpack.c.l.s4 1966171168
    %v3360 = vunpack.c.0.s8 %v3359
    %v3361 = vlaneseq
    %v3362 = vshrl.u32 %v3361, 7
    %v3363 = vsub.s32 %v3360, %v3362
    %v3364 = vrot.slane %v3336, %v3363
    %v3365 = vcombine.high %v3343, %v3343
    %v3366 = vcombine.high %v3350, %v3350
    %v3367 = vcombine.high %v3357, %v3357
    %v3368 = vcombine.high %v3364, %v3364
    %v3369 = vcombine.high %v3261, %v3261
    %v3371 = vunpack.c.l.s4 1966171168
    %v3372 = vunpack.c.0.s8 %v3371
    %v3373 = vlaneseq
    %v3374 = vshrl.u32 %v3373, 7
    %v3375 = vsub.s32 %v3372, %v3374
    %v3376 = vrot.slane %v3261, %v3375
    %v3378 = vunpack.c.l.s4 1966171168
    %v3379 = vunpack.c.0.s8 %v3378
    %v3380 = vlaneseq
    %v3381 = vshrl.u32 %v3380, 7
    %v3382 = vsub.s32 %v3379, %v3381
    %v3383 = vrot.slane %v3369, %v3382
    %v3384 = vcombine.high %v3376, %v3376
    %v3385 = vcombine.high %v3383, %v3383
    %v3387 = vunpack.c.l.s4 1966171168
    %v3388 = vunpack.c.0.s8 %v3387
    %v3389 = vlaneseq
    %v3390 = vshrl.u32 %v3389, 7
    %v3391 = vsub.s32 %v3388, %v3390
    %v3392 = vrot.slane %v3376, %v3391
    %v3394 = vunpack.c.l.s4 1966171168
    %v3395 = vunpack.c.0.s8 %v3394
    %v3396 = vlaneseq
    %v3397 = vshrl.u32 %v3396, 7
    %v3398 = vsub.s32 %v3395, %v3397
    %v3399 = vrot.slane %v3383, %v3398
    %v3401 = vunpack.c.l.s4 1966171168
    %v3402 = vunpack.c.0.s8 %v3401
    %v3403 = vlaneseq
    %v3404 = vshrl.u32 %v3403, 7
    %v3405 = vsub.s32 %v3402, %v3404
    %v3406 = vrot.slane %v3384, %v3405
    %v3408 = vunpack.c.l.s4 1966171168
    %v3409 = vunpack.c.0.s8 %v3408
    %v3410 = vlaneseq
    %v3411 = vshrl.u32 %v3410, 7
    %v3412 = vsub.s32 %v3409, %v3411
    %v3413 = vrot.slane %v3385, %v3412
    %v3414 = vcombine.high %v3392, %v3392
    %v3415 = vcombine.high %v3399, %v3399
    %v3416 = vcombine.high %v3406, %v3406
    %v3417 = vcombine.high %v3413, %v3413
    %v3419 = vunpack.c.l.s4 1966171168
    %v3420 = vunpack.c.0.s8 %v3419
    %v3421 = vlaneseq
    %v3422 = vshrl.u32 %v3421, 7
    %v3423 = vsub.s32 %v3420, %v3422
    %v3424 = vrot.slane %v3264, %v3423
    %v3425 = vcombine.high %v3424, %v3424
    %v3427 = vunpack.c.l.s4 1966171168
    %v3428 = vunpack.c.0.s8 %v3427
    %v3429 = vlaneseq
    %v3430 = vshrl.u32 %v3429, 7
    %v3431 = vsub.s32 %v3428, %v3430
    %v3432 = vrot.slane %v3424, %v3431
    %v3434 = vunpack.c.l.s4 1966171168
    %v3435 = vunpack.c.0.s8 %v3434
    %v3436 = vlaneseq
    %v3437 = vshrl.u32 %v3436, 7
    %v3438 = vsub.s32 %v3435, %v3437
    %v3439 = vrot.slane %v3425, %v3438
    %v3466 = vadd.f32 %v3032, %v3294
    %v3467 = vadd.f32 %v3033, %v3308
    %v3468 = vadd.f32 %v3034, %v3316
    %v3469 = vadd.f32 %v3035, %v3318
    %v3470 = vadd.f32 %v3036, %v3301
    %v3471 = vadd.f32 %v3037, %v3315
    %v3472 = vadd.f32 %v3038, %v3317
    %v3473 = vadd.f32 %v3039, %v3319
    %v3474 = vadd.f32 %v3040, %v3343
    %v3475 = vadd.f32 %v3041, %v3357
    %v3476 = vadd.f32 %v3042, %v3365
    %v3477 = vadd.f32 %v3043, %v3367
    %v3478 = vadd.f32 %v3044, %v3350
    %v3479 = vadd.f32 %v3045, %v3364
    %v3480 = vadd.f32 %v3046, %v3366
    %v3481 = vadd.f32 %v3047, %v3368
    %v3482 = vadd.f32 %v3048, %v3392
    %v3483 = vadd.f32 %v3049, %v3406
    %v3484 = vadd.f32 %v3050, %v3414
    %v3485 = vadd.f32 %v3051, %v3416
    %v3486 = vadd.f32 %v3052, %v3399
    %v3487 = vadd.f32 %v3053, %v3413
    %v3488 = vadd.f32 %v3054, %v3415
    %v3489 = vadd.f32 %v3055, %v3417
    %v3490 = vadd.f32 %v3056, %v3432
    %v3491 = vadd.f32 %v3057, %v3439
    %v3492 = vld [vmem:[%s7] sm:$0x1]
    %v3494 = vlaneseq
    %v3495 = vshrl.u32 %v3494, 7
    %v3496 = vsub.s32 0, %v3495
    %v3497 = vrot.slane %v3492, %v3496
    %v3498 = vcombine.high %v3497, %v3497
    %v3500 = vunpack.c.l.s4 1966171168
    %v3501 = vunpack.c.0.s8 %v3500
    %v3502 = vlaneseq
    %v3503 = vshrl.u32 %v3502, 7
    %v3504 = vsub.s32 %v3501, %v3503
    %v3505 = vrot.slane %v3497, %v3504
    %v3507 = vunpack.c.l.s4 1966171168
    %v3508 = vunpack.c.0.s8 %v3507
    %v3509 = vlaneseq
    %v3510 = vshrl.u32 %v3509, 7
    %v3511 = vsub.s32 %v3508, %v3510
    %v3512 = vrot.slane %v3498, %v3511
    %v3513 = vcombine.high %v3505, %v3505
    %v3514 = vcombine.high %v3512, %v3512
    %v3516 = vunpack.c.l.s4 1966171168
    %v3517 = vunpack.c.0.s8 %v3516
    %v3518 = vlaneseq
    %v3519 = vshrl.u32 %v3518, 7
    %v3520 = vsub.s32 %v3517, %v3519
    %v3521 = vrot.slane %v3505, %v3520
    %v3523 = vunpack.c.l.s4 1966171168
    %v3524 = vunpack.c.0.s8 %v3523
    %v3525 = vlaneseq
    %v3526 = vshrl.u32 %v3525, 7
    %v3527 = vsub.s32 %v3524, %v3526
    %v3528 = vrot.slane %v3512, %v3527
    %v3530 = vunpack.c.l.s4 1966171168
    %v3531 = vunpack.c.0.s8 %v3530
    %v3532 = vlaneseq
    %v3533 = vshrl.u32 %v3532, 7
    %v3534 = vsub.s32 %v3531, %v3533
    %v3535 = vrot.slane %v3513, %v3534
    %v3537 = vunpack.c.l.s4 1966171168
    %v3538 = vunpack.c.0.s8 %v3537
    %v3539 = vlaneseq
    %v3540 = vshrl.u32 %v3539, 7
    %v3541 = vsub.s32 %v3538, %v3540
    %v3542 = vrot.slane %v3514, %v3541
    %v3543 = vcombine.high %v3521, %v3521
    %v3544 = vcombine.high %v3528, %v3528
    %v3545 = vcombine.high %v3535, %v3535
    %v3546 = vcombine.high %v3542, %v3542
    %v3555 = vadd.f32 %v3466, %v3521
    %v3556 = vadd.f32 %v3467, %v3535
    %v3557 = vadd.f32 %v3468, %v3543
    %v3558 = vadd.f32 %v3469, %v3545
    %v3559 = vadd.f32 %v3470, %v3528
    %v3560 = vadd.f32 %v3471, %v3542
    %v3561 = vadd.f32 %v3472, %v3544
    %v3562 = vadd.f32 %v3473, %v3546
    %v3563 = vadd.f32 %v3474, %v3521
    %v3564 = vadd.f32 %v3475, %v3535
    %v3565 = vadd.f32 %v3476, %v3543
    %v3566 = vadd.f32 %v3477, %v3545
    %v3567 = vadd.f32 %v3478, %v3528
    %v3568 = vadd.f32 %v3479, %v3521
    %v3569 = vadd.f32 %v3480, %v3535
    %v3570 = vadd.f32 %v3481, %v3543
    %v3571 = vadd.f32 %v3482, %v3545
    %v3572 = vadd.f32 %v3483, %v3528
    %v3573 = vadd.f32 %v3484, %v3542
    %v3574 = vadd.f32 %v3485, %v3544
    %v3575 = vadd.f32 %v3486, %v3546
    %v3576 = vadd.f32 %v3487, %v3521
    %v3577 = vadd.f32 %v3488, %v3535
    %v3578 = vadd.f32 %v3489, %v3543
    %v3579 = vadd.f32 %v3490, %v3545
    %v3580 = vadd.f32 %v3491, %v3528
    %v3581 = vmax.f32 %v3555, 0.0
    %v3582 = vmax.f32 %v3556, 0.0
    %v3583 = vmax.f32 %v3557, 0.0
    %v3584 = vmax.f32 %v3558, 0.0
    %v3585 = vmax.f32 %v3559, 0.0
    %v3586 = vmax.f32 %v3560, 0.0
    %v3587 = vmax.f32 %v3561, 0.0
    %v3588 = vmax.f32 %v3562, 0.0
    %v3589 = vmax.f32 %v3563, 0.0
    %v3590 = vmax.f32 %v3564, 0.0
    %v3591 = vmax.f32 %v3565, 0.0
    %v3592 = vmax.f32 %v3566, 0.0
    %v3593 = vmax.f32 %v3567, 0.0
    %v3594 = vmax.f32 %v3568, 0.0
    %v3595 = vmax.f32 %v3569, 0.0
    %v3596 = vmax.f32 %v3570, 0.0
    %v3597 = vmax.f32 %v3571, 0.0
    %v3598 = vmax.f32 %v3572, 0.0
    %v3599 = vmax.f32 %v3573, 0.0
    %v3600 = vmax.f32 %v3574, 0.0
    %v3601 = vmax.f32 %v3575, 0.0
    %v3602 = vmax.f32 %v3576, 0.0
    %v3603 = vmax.f32 %v3577, 0.0
    %v3604 = vmax.f32 %v3578, 0.0
    %v3605 = vmax.f32 %v3579, 0.0
    %v3606 = vmax.f32 %v3580, 0.0
    %v3633 = vcombine.low %v3581, %v3582
    %v3634 = vcombine.low %v3583, %v3584
    %v3635 = vcombine.low %v3585, %v3586
    %v3636 = vcombine.low %v3587, %v3588
    %v3638 = vunpack.c.l.s4 1966171168
    %v3639 = vunpack.c.0.s8 %v3638
    %v3640 = vlaneseq
    %v3641 = vshrl.u32 %v3640, 7
    %v3642 = vsub.s32 %v3639, %v3641
    %v3643 = vrot.slane %v3633, %v3642
    %v3645 = vunpack.c.l.s4 1966171168
    %v3646 = vunpack.c.0.s8 %v3645
    %v3647 = vlaneseq
    %v3648 = vshrl.u32 %v3647, 7
    %v3649 = vsub.s32 %v3646, %v3648
    %v3650 = vrot.slane %v3634, %v3649
    %v3652 = vunpack.c.l.s4 1966171168
    %v3653 = vunpack.c.0.s8 %v3652
    %v3654 = vlaneseq
    %v3655 = vshrl.u32 %v3654, 7
    %v3656 = vsub.s32 %v3653, %v3655
    %v3657 = vrot.slane %v3635, %v3656
    %v3659 = vunpack.c.l.s4 1966171168
    %v3660 = vunpack.c.0.s8 %v3659
    %v3661 = vlaneseq
    %v3662 = vshrl.u32 %v3661, 7
    %v3663 = vsub.s32 %v3660, %v3662
    %v3664 = vrot.slane %v3636, %v3663
    %v3665 = vcombine.low %v3643, %v3650
    %v3666 = vcombine.low %v3657, %v3664
    %v3668 = vunpack.c.l.s4 1966171168
    %v3669 = vunpack.c.0.s8 %v3668
    %v3670 = vlaneseq
    %v3671 = vshrl.u32 %v3670, 7
    %v3672 = vsub.s32 %v3669, %v3671
    %v3673 = vrot.slane %v3665, %v3672
    %v3675 = vunpack.c.l.s4 1966171168
    %v3676 = vunpack.c.0.s8 %v3675
    %v3677 = vlaneseq
    %v3678 = vshrl.u32 %v3677, 7
    %v3679 = vsub.s32 %v3676, %v3678
    %v3680 = vrot.slane %v3666, %v3679
    %v3681 = vcombine.low %v3673, %v3680
    %v3682 = vcombine.low %v3589, %v3590
    %v3683 = vcombine.low %v3591, %v3592
    %v3685 = vunpack.c.l.s4 1966171168
    %v3686 = vunpack.c.0.s8 %v3685
    %v3687 = vlaneseq
    %v3688 = vshrl.u32 %v3687, 7
    %v3689 = vsub.s32 %v3686, %v3688
    %v3690 = vrot.slane %v3682, %v3689
    %v3692 = vunpack.c.l.s4 1966171168
    %v3693 = vunpack.c.0.s8 %v3692
    %v3694 = vlaneseq
    %v3695 = vshrl.u32 %v3694, 7
    %v3696 = vsub.s32 %v3693, %v3695
    %v3697 = vrot.slane %v3683, %v3696
    %v3699 = vunpack.c.l.s4 1966171168
    %v3700 = vunpack.c.0.s8 %v3699
    %v3701 = vlaneseq
    %v3702 = vshrl.u32 %v3701, 7
    %v3703 = vsub.s32 %v3700, %v3702
    %v3704 = vrot.slane %v3593, %v3703
    %v3705 = vcombine.low %v3690, %v3697
    %v3707 = vunpack.c.l.s4 1966171168
    %v3708 = vunpack.c.0.s8 %v3707
    %v3709 = vlaneseq
    %v3710 = vshrl.u32 %v3709, 7
    %v3711 = vsub.s32 %v3708, %v3710
    %v3712 = vrot.slane %v3705, %v3711
    %v3714 = vunpack.c.l.s4 1966171168
    %v3715 = vunpack.c.0.s8 %v3714
    %v3716 = vlaneseq
    %v3717 = vshrl.u32 %v3716, 7
    %v3718 = vsub.s32 %v3715, %v3717
    %v3719 = vrot.slane %v3704, %v3718
    %v3720 = vcombine.low %v3712, %v3719
    %v3721 = vcombine.low %v3594, %v3595
    %v3722 = vcombine.low %v3596, %v3597
    %v3723 = vcombine.low %v3598, %v3599
    %v3724 = vcombine.low %v3600, %v3601
    %v3726 = vunpack.c.l.s4 1966171168
    %v3727 = vunpack.c.0.s8 %v3726
    %v3728 = vlaneseq
    %v3729 = vshrl.u32 %v3728, 7
    %v3730 = vsub.s32 %v3727, %v3729
    %v3731 = vrot.slane %v3721, %v3730
    %v3733 = vunpack.c.l.s4 1966171168
    %v3734 = vunpack.c.0.s8 %v3733
    %v3735 = vlaneseq
    %v3736 = vshrl.u32 %v3735, 7
    %v3737 = vsub.s32 %v3734, %v3736
    %v3738 = vrot.slane %v3722, %v3737
    %v3740 = vunpack.c.l.s4 1966171168
    %v3741 = vunpack.c.0.s8 %v3740
    %v3742 = vlaneseq
    %v3743 = vshrl.u32 %v3742, 7
    %v3744 = vsub.s32 %v3741, %v3743
    %v3745 = vrot.slane %v3723, %v3744
    %v3747 = vunpack.c.l.s4 1966171168
    %v3748 = vunpack.c.0.s8 %v3747
    %v3749 = vlaneseq
    %v3750 = vshrl.u32 %v3749, 7
    %v3751 = vsub.s32 %v3748, %v3750
    %v3752 = vrot.slane %v3724, %v3751
    %v3753 = vcombine.low %v3731, %v3738
    %v3754 = vcombine.low %v3745, %v3752
    %v3756 = vunpack.c.l.s4 1966171168
    %v3757 = vunpack.c.0.s8 %v3756
    %v3758 = vlaneseq
    %v3759 = vshrl.u32 %v3758, 7
    %v3760 = vsub.s32 %v3757, %v3759
    %v3761 = vrot.slane %v3753, %v3760
    %v3763 = vunpack.c.l.s4 1966171168
    %v3764 = vunpack.c.0.s8 %v3763
    %v3765 = vlaneseq
    %v3766 = vshrl.u32 %v3765, 7
    %v3767 = vsub.s32 %v3764, %v3766
    %v3768 = vrot.slane %v3754, %v3767
    %v3769 = vcombine.low %v3761, %v3768
    %v3770 = vcombine.low %v3602, %v3603
    %v3771 = vcombine.low %v3604, %v3605
    %v3773 = vunpack.c.l.s4 1966171168
    %v3774 = vunpack.c.0.s8 %v3773
    %v3775 = vlaneseq
    %v3776 = vshrl.u32 %v3775, 7
    %v3777 = vsub.s32 %v3774, %v3776
    %v3778 = vrot.slane %v3770, %v3777
    %v3780 = vunpack.c.l.s4 1966171168
    %v3781 = vunpack.c.0.s8 %v3780
    %v3782 = vlaneseq
    %v3783 = vshrl.u32 %v3782, 7
    %v3784 = vsub.s32 %v3781, %v3783
    %v3785 = vrot.slane %v3771, %v3784
    %v3787 = vunpack.c.l.s4 1966171168
    %v3788 = vunpack.c.0.s8 %v3787
    %v3789 = vlaneseq
    %v3790 = vshrl.u32 %v3789, 7
    %v3791 = vsub.s32 %v3788, %v3790
    %v3792 = vrot.slane %v3606, %v3791
    %v3793 = vcombine.low %v3778, %v3785
    %v3795 = vunpack.c.l.s4 1966171168
    %v3796 = vunpack.c.0.s8 %v3795
    %v3797 = vlaneseq
    %v3798 = vshrl.u32 %v3797, 7
    %v3799 = vsub.s32 %v3796, %v3798
    %v3800 = vrot.slane %v3793, %v3799
    %v3802 = vunpack.c.l.s4 1966171168
    %v3803 = vunpack.c.0.s8 %v3802
    %v3804 = vlaneseq
    %v3805 = vshrl.u32 %v3804, 7
    %v3806 = vsub.s32 %v3803, %v3805
    %v3807 = vrot.slane %v3792, %v3806
    %v3808 = vcombine.low %v3800, %v3807
    %v3813 = vpack.c.bf16 %v3720, %v3681
    %v3814 = vpack.c.bf16 %v3808, %v3769
    %v3815 = vld [vmem:[#allocation13] sm:$0xf]
    %v3816 = vld [vmem:[#allocation13 + $0x4] sm:$0xf]
    %v3817 = vld [vmem:[#allocation13 + $0x8] sm:$0xf]
    %v3818 = vld [vmem:[#allocation13 + $0xc] sm:$0xf]
    %v3819 = vld [vmem:[#allocation13 + $0x10] sm:$0xf]
    %v3820 = vld [vmem:[#allocation13 + $0x14] sm:$0xf]
    %v3821 = vld [vmem:[#allocation13 + $0x18] sm:$0xf]
    %v3822 = vld [vmem:[#allocation13 + $0x1c] sm:$0xf]
    %v3823 = vld [vmem:[#allocation13 + $0x20] sm:$0xf]
    %v3824 = vld [vmem:[#allocation13 + $0x24] sm:$0xf]
    %v3825 = vld [vmem:[#allocation13 + $0x28] sm:$0xf]
    %v3826 = vld [vmem:[#allocation13 + $0x2c] sm:$0xf]
    %v3827 = vld [vmem:[#allocation13 + $0x30] sm:$0xf]
    %v3828 = vld [vmem:[#allocation13 + $0x34] sm:$0xf]
    %v3829 = vld [vmem:[#allocation13 + $0x38] sm:$0xf]
    %v3830 = vld [vmem:[#allocation13 + $0x3c] sm:$0xf]
    %s3831 = scalar_lea.vmem [#allocation13], 64
    %v3832 = vld [vmem:[%s3831] sm:$0xf]
    %v3833 = vld [vmem:[%s3831 + $0x4] sm:$0xf]
    %v3834 = vld [vmem:[%s3831 + $0x8] sm:$0xf]
    %v3835 = vld [vmem:[%s3831 + $0xc] sm:$0xf]
    %v3836 = vld [vmem:[%s3831 + $0x10] sm:$0xf]
    %v3837 = vld [vmem:[%s3831 + $0x14] sm:$0xf]
    %v3838 = vld [vmem:[%s3831 + $0x18] sm:$0xf]
    %v3839 = vld [vmem:[%s3831 + $0x1c] sm:$0xf]
    %v3840 = vld [vmem:[%s3831 + $0x20] sm:$0xf]
    %v3841 = vld [vmem:[%s3831 + $0x24] sm:$0xf]
    %v3842 = vld [vmem:[%s3831 + $0x28] sm:$0xf]
    %v3843 = vld [vmem:[%s3831 + $0x2c] sm:$0xf]
    %v3844 = vld [vmem:[%s3831 + $0x30] sm:$0xf]
    %v3845 = vld [vmem:[%s3831 + $0x34] sm:$0xf]
    %v3846 = vld [vmem:[%s3831 + $0x38] sm:$0xf]
    %v3847 = vld [vmem:[%s3831 + $0x3c] sm:$0xf]
    %v3850 = vcombine.high %v3813, %v3813
    %v3852 = vunpack.c.l.s4 1966171168
    %v3853 = vunpack.c.0.s8 %v3852
    %v3854 = vlaneseq
    %v3855 = vshrl.u32 %v3854, 7
    %v3856 = vsub.s32 %v3853, %v3855
    %v3857 = vrot.slane %v3813, %v3856
    %v3859 = vunpack.c.l.s4 1966171168
    %v3860 = vunpack.c.0.s8 %v3859
    %v3861 = vlaneseq
    %v3862 = vshrl.u32 %v3861, 7
    %v3863 = vsub.s32 %v3860, %v3862
    %v3864 = vrot.slane %v3850, %v3863
    %v3865 = vcombine.high %v3857, %v3857
    %v3866 = vcombine.high %v3864, %v3864
    %v3868 = vunpack.c.l.s4 1966171168
    %v3869 = vunpack.c.0.s8 %v3868
    %v3870 = vlaneseq
    %v3871 = vshrl.u32 %v3870, 7
    %v3872 = vsub.s32 %v3869, %v3871
    %v3873 = vrot.slane %v3857, %v3872
    %v3875 = vunpack.c.l.s4 1966171168
    %v3876 = vunpack.c.0.s8 %v3875
    %v3877 = vlaneseq
    %v3878 = vshrl.u32 %v3877, 7
    %v3879 = vsub.s32 %v3876, %v3878
    %v3880 = vrot.slane %v3864, %v3879
    %v3882 = vunpack.c.l.s4 1966171168
    %v3883 = vunpack.c.0.s8 %v3882
    %v3884 = vlaneseq
    %v3885 = vshrl.u32 %v3884, 7
    %v3886 = vsub.s32 %v3883, %v3885
    %v3887 = vrot.slane %v3865, %v3886
    %v3889 = vunpack.c.l.s4 1966171168
    %v3890 = vunpack.c.0.s8 %v3889
    %v3891 = vlaneseq
    %v3892 = vshrl.u32 %v3891, 7
    %v3893 = vsub.s32 %v3890, %v3892
    %v3894 = vrot.slane %v3866, %v3893
    %v3895 = vcombine.high %v3873, %v3873
    %v3896 = vcombine.high %v3887, %v3887
    %v3897 = vcombine.high %v3814, %v3814
    %v3899 = vunpack.c.l.s4 1966171168
    %v3900 = vunpack.c.0.s8 %v3899
    %v3901 = vlaneseq
    %v3902 = vshrl.u32 %v3901, 7
    %v3903 = vsub.s32 %v3900, %v3902
    %v3904 = vrot.slane %v3814, %v3903
    %v3906 = vunpack.c.l.s4 1966171168
    %v3907 = vunpack.c.0.s8 %v3906
    %v3908 = vlaneseq
    %v3909 = vshrl.u32 %v3908, 7
    %v3910 = vsub.s32 %v3907, %v3909
    %v3911 = vrot.slane %v3897, %v3910
    %v3912 = vcombine.high %v3904, %v3904
    %v3913 = vcombine.high %v3911, %v3911
    %v3915 = vunpack.c.l.s4 1966171168
    %v3916 = vunpack.c.0.s8 %v3915
    %v3917 = vlaneseq
    %v3918 = vshrl.u32 %v3917, 7
    %v3919 = vsub.s32 %v3916, %v3918
    %v3920 = vrot.slane %v3904, %v3919
    %v3922 = vunpack.c.l.s4 1966171168
    %v3923 = vunpack.c.0.s8 %v3922
    %v3924 = vlaneseq
    %v3925 = vshrl.u32 %v3924, 7
    %v3926 = vsub.s32 %v3923, %v3925
    %v3927 = vrot.slane %v3911, %v3926
    %v3929 = vunpack.c.l.s4 1966171168
    %v3930 = vunpack.c.0.s8 %v3929
    %v3931 = vlaneseq
    %v3932 = vshrl.u32 %v3931, 7
    %v3933 = vsub.s32 %v3930, %v3932
    %v3934 = vrot.slane %v3912, %v3933
    %v3936 = vunpack.c.l.s4 1966171168
    %v3937 = vunpack.c.0.s8 %v3936
    %v3938 = vlaneseq
    %v3939 = vshrl.u32 %v3938, 7
    %v3940 = vsub.s32 %v3937, %v3939
    %v3941 = vrot.slane %v3913, %v3940
    %v3942 = vcombine.high %v3920, %v3920
    %v3943 = vcombine.high %v3934, %v3934
    %v3945 = vshrl.u32 %v3873, 16
    %v3947 = vrot.slane %v3945, 7
    %v3948 = vrot.slane %v3947, 1
    %v3950 = vshll.u32 %v3887, 16
    %v3952 = vsel %vm332, %v3948, %v3950
    %v3953 = vshrl.u32 %v3887, 16
    %v3955 = vrot.slane %v3953, 7
    %v3956 = vrot.slane %v3955, 1
    %v3958 = vshll.u32 %v3895, 16
    %v3960 = vsel %vm332, %v3956, %v3958
    %v3961 = vshrl.u32 %v3895, 16
    %v3963 = vrot.slane %v3961, 7
    %v3964 = vrot.slane %v3963, 1
    %v3966 = vshll.u32 %v3896, 16
    %v3968 = vsel %vm332, %v3964, %v3966
    %v3969 = vshrl.u32 %v3896, 16
    %v3971 = vrot.slane %v3969, 7
    %v3972 = vrot.slane %v3971, 1
    %v3974 = vshll.u32 %v3880, 16
    %v3976 = vsel %vm332, %v3972, %v3974
    %v3977 = vshrl.u32 %v3880, 16
    %v3979 = vrot.slane %v3977, 7
    %v3980 = vrot.slane %v3979, 1
    %v3982 = vshll.u32 %v3894, 16
    %v3984 = vsel %vm332, %v3980, %v3982
    %v3986 = vshrl.u32 %v3920, 16
    %v3988 = vrot.slane %v3986, 7
    %v3989 = vrot.slane %v3988, 1
    %v3991 = vshll.u32 %v3934, 16
    %v3993 = vsel %vm332, %v3989, %v3991
    %v3994 = vshrl.u32 %v3934, 16
    %v3996 = vrot.slane %v3994, 7
    %v3997 = vrot.slane %v3996, 1
    %v3999 = vshll.u32 %v3942, 16
    %v4001 = vsel %vm332, %v3997, %v3999
    %v4002 = vshrl.u32 %v3942, 16
    %v4004 = vrot.slane %v4002, 7
    %v4005 = vrot.slane %v4004, 1
    %v4007 = vshll.u32 %v3943, 16
    %v4009 = vsel %vm332, %v4005, %v4007
    %v4010 = vshrl.u32 %v3943, 16
    %v4012 = vrot.slane %v4010, 7
    %v4013 = vrot.slane %v4012, 1
    %v4015 = vshll.u32 %v3927, 16
    %v4017 = vsel %vm332, %v4013, %v4015
    %v4018 = vshrl.u32 %v3927, 16
    %v4020 = vrot.slane %v4018, 7
    %v4021 = vrot.slane %v4020, 1
    %v4023 = vshll.u32 %v3941, 16
    %v4025 = vsel %vm332, %v4021, %v4023
    %v4026 = vcombine.low %v3952, %v3960
    %v4027 = vcombine.low %v3968, %v3976
    %v4028 = vcombine.low %v3984, %v3993
    %v4029 = vcombine.low %v4001, %v4009
    %v4031 = vunpack.c.l.s4 1966171168
    %v4032 = vunpack.c.0.s8 %v4031
    %v4033 = vlaneseq
    %v4034 = vshrl.u32 %v4033, 7
    %v4035 = vsub.s32 %v4032, %v4034
    %v4036 = vrot.slane %v4026, %v4035
    %v4038 = vunpack.c.l.s4 1966171168
    %v4039 = vunpack.c.0.s8 %v4038
    %v4040 = vlaneseq
    %v4041 = vshrl.u32 %v4040, 7
    %v4042 = vsub.s32 %v4039, %v4041
    %v4043 = vrot.slane %v4027, %v4042
    %v4045 = vunpack.c.l.s4 1966171168
    %v4046 = vunpack.c.0.s8 %v4045
    %v4047 = vlaneseq
    %v4048 = vshrl.u32 %v4047, 7
    %v4049 = vsub.s32 %v4046, %v4048
    %v4050 = vrot.slane %v4028, %v4049
    %v4052 = vunpack.c.l.s4 1966171168
    %v4053 = vunpack.c.0.s8 %v4052
    %v4054 = vlaneseq
    %v4055 = vshrl.u32 %v4054, 7
    %v4056 = vsub.s32 %v4053, %v4055
    %v4057 = vrot.slane %v4029, %v4056
    %v4058 = vcombine.low %v4036, %v4043
    %v4059 = vcombine.low %v4050, %v4057
    %v4061 = vunpack.c.l.s4 1966171168
    %v4062 = vunpack.c.0.s8 %v4061
    %v4063 = vlaneseq
    %v4064 = vshrl.u32 %v4063, 7
    %v4065 = vsub.s32 %v4062, %v4064
    %v4066 = vrot.slane %v4058, %v4065
    %v4068 = vunpack.c.l.s4 1966171168
    %v4069 = vunpack.c.0.s8 %v4068
    %v4070 = vlaneseq
    %v4071 = vshrl.u32 %v4070, 7
    %v4072 = vsub.s32 %v4069, %v4071
    %v4073 = vrot.slane %v4059, %v4072
    %v4074 = vcombine.low %v4066, %v4073
    %v4075 = vcombine.low %v4017, %v4025
    %v4077 = vunpack.c.l.s4 1966171168
    %v4078 = vunpack.c.0.s8 %v4077
    %v4079 = vlaneseq
    %v4080 = vshrl.u32 %v4079, 7
    %v4081 = vsub.s32 %v4078, %v4080
    %v4082 = vrot.slane %v4075, %v4081
    %v4084 = vunpack.c.l.s4 1966171168
    %v4085 = vunpack.c.0.s8 %v4084
    %v4086 = vlaneseq
    %v4087 = vshrl.u32 %v4086, 7
    %v4088 = vsub.s32 %v4085, %v4087
    %v4089 = vrot.slane %v4082, %v4088
    %v4108 = vunpack.c.l.b16 %v3832
    %v4109 = vunpack.c.l.b16 %v3833
    %v4110 = vunpack.c.l.b16 %v3834
    %v4111 = vunpack.c.l.b16 %v3835
    %v4112 = vunpack.c.l.b16 %v3836
    %v4113 = vunpack.c.l.b16 %v3837
    %v4114 = vunpack.c.l.b16 %v3838
    %v4115 = vunpack.c.l.b16 %v3839
    %v4116 = vunpack.c.l.b16 %v3840
    %v4117 = vunpack.c.l.b16 %v3841
    %v4118 = vunpack.c.l.b16 %v3842
    %v4119 = vunpack.c.l.b16 %v3843
    %v4120 = vunpack.c.l.b16 %v3844
    %v4121 = vunpack.c.l.b16 %v3845
    %v4122 = vunpack.c.l.b16 %v3846
    %v4123 = vunpack.c.l.b16 %v3847
    %v4124 = vpack.c.b16 %v4109, %v4108
    %v4125 = vpack.c.b16 %v4111, %v4110
    %v4126 = vpack.c.b16 %v4113, %v4112
    %v4127 = vpack.c.b16 %v4115, %v4114
    %v4128 = vpack.c.b16 %v4117, %v4116
    %v4129 = vpack.c.b16 %v4119, %v4118
    %v4130 = vpack.c.b16 %v4121, %v4120
    %v4131 = vpack.c.b16 %v4123, %v4122
    %4140 = vmatprep.subr.bf16.mxu0 0
    %4141 = vmatpush1.bf16.msra.mxu0 %v4124
    %4142 = vmatprep.subr.bf16.mxu0 0
    %4143 = vmatpush1.bf16.msra.mxu0 %v4125
    %4144 = vmatprep.subr.bf16.mxu0 0
    %4145 = vmatpush1.bf16.msra.mxu0 %v4126
    %4146 = vmatprep.subr.bf16.mxu0 0
    %4147 = vmatpush1.bf16.msra.mxu0 %v4127
    %4148 = vmatprep.subr.bf16.mxu0 0
    %4149 = vmatpush1.bf16.msra.mxu0 %v4128
    %4150 = vmatprep.subr.bf16.mxu0 0
    %4151 = vmatpush1.bf16.msra.mxu0 %v4129
    %4152 = vmatprep.subr.bf16.mxu0 0
    %4153 = vmatpush1.bf16.msra.mxu0 %v4130
    %4154 = vmatprep.subr.bf16.mxu0 0
    %4155 = vmatpush1.bf16.msra.mxu0 %v4131
    %4156 = vmatprep.subr.bf16.mxu0 0
    %4157 = vmatpush1.bf16.msra.mxu0 0
    %4158 = vmatprep.subr.bf16.mxu0 0
    %4159 = vmatpush1.bf16.msra.mxu0 0
    %4160 = vmatprep.subr.bf16.mxu0 0
    %4161 = vmatpush1.bf16.msra.mxu0 0
    %4162 = vmatprep.subr.bf16.mxu0 0
    %4163 = vmatpush1.bf16.msra.mxu0 0
    %4164 = vmatprep.subr.bf16.mxu0 0
    %4165 = vmatpush1.bf16.msra.mxu0 0
    %4166 = vmatprep.subr.bf16.mxu0 0
    %4167 = vmatpush1.bf16.msra.mxu0 0
    %4168 = vmatprep.subr.bf16.mxu0 0
    %4169 = vmatpush1.bf16.msra.mxu0 0
    %4170 = vmatprep.subr.bf16.mxu0 0
    %4171 = vmatpush1.bf16.msra.mxu0 0
    %4172 = vmatprep.mubr.bf16.mxu0 0
    %4173 = vmatmul.mubr.bf16.gmra.mrb[0].mxu0 %v4074
    %v4174 = vpop.f32.mrb[0].mxu0
    %v4175 = vadd.f32 0.0, %v4174
    %v4176 = vpop.f32.mrb[0].mxu0
    %v4177 = vpop.f32.mrb[0].mxu0
    %v4178 = vadd.f32 0.0, %v4177
    %v4179 = vpop.f32.mrb[0].mxu0
    %4180 = vmatprep.mubr.bf16.mxu0 0
    %4181 = vmatmul.mubr.bf16.gmra.mrb[0].mxu0 %v4089
    %v4182 = vpop.f32.mrb[0].mxu0
    %v4183 = vadd.f32 0.0, %v4182
    %v4184 = vpop.f32.mrb[0].mxu0
    %v4185 = vpop.f32.mrb[0].mxu0
    %v4186 = vpop.f32.mrb[0].mxu0
    %4187 = vdwg.mxu0
    %v4188 = vcombine.low %v3873, %v3887
    %v4189 = vcombine.low %v3895, %v3896
    %v4190 = vcombine.low %v3880, %v3920
    %v4191 = vcombine.low %v3934, %v3942
    %v4193 = vunpack.c.l.s4 1966171168
    %v4194 = vunpack.c.0.s8 %v4193
    %v4195 = vlaneseq
    %v4196 = vshrl.u32 %v4195, 7
    %v4197 = vsub.s32 %v4194, %v4196
    %v4198 = vrot.slane %v4188, %v4197
    %v4200 = vunpack.c.l.s4 1966171168
    %v4201 = vunpack.c.0.s8 %v4200
    %v4202 = vlaneseq
    %v4203 = vshrl.u32 %v4202, 7
    %v4204 = vsub.s32 %v4201, %v4203
    %v4205 = vrot.slane %v4189, %v4204
    %v4207 = vunpack.c.l.s4 1966171168
    %v4208 = vunpack.c.0.s8 %v4207
    %v4209 = vlaneseq
    %v4210 = vshrl.u32 %v4209, 7
    %v4211 = vsub.s32 %v4208, %v4210
    %v4212 = vrot.slane %v4190, %v4211
    %v4214 = vunpack.c.l.s4 1966171168
    %v4215 = vunpack.c.0.s8 %v4214
    %v4216 = vlaneseq
    %v4217 = vshrl.u32 %v4216, 7
    %v4218 = vsub.s32 %v4215, %v4217
    %v4219 = vrot.slane %v4191, %v4218
    %v4220 = vcombine.low %v4198, %v4205
    %v4221 = vcombine.low %v4212, %v4219
    %v4223 = vunpack.c.l.s4 1966171168
    %v4224 = vunpack.c.0.s8 %v4223
    %v4225 = vlaneseq
    %v4226 = vshrl.u32 %v4225, 7
    %v4227 = vsub.s32 %v4224, %v4226
    %v4228 = vrot.slane %v4220, %v4227
    %v4230 = vunpack.c.l.s4 1966171168
    %v4231 = vunpack.c.0.s8 %v4230
    %v4232 = vlaneseq
    %v4233 = vshrl.u32 %v4232, 7
    %v4234 = vsub.s32 %v4231, %v4233
    %v4235 = vrot.slane %v4221, %v4234
    %v4236 = vcombine.low %v4228, %v4235
    %v4237 = vcombine.low %v3943, %v3927
    %v4239 = vunpack.c.l.s4 1966171168
    %v4240 = vunpack.c.0.s8 %v4239
    %v4241 = vlaneseq
    %v4242 = vshrl.u32 %v4241, 7
    %v4243 = vsub.s32 %v4240, %v4242
    %v4244 = vrot.slane %v4237, %v4243
    %v4246 = vunpack.c.l.s4 1966171168
    %v4247 = vunpack.c.0.s8 %v4246
    %v4248 = vlaneseq
    %v4249 = vshrl.u32 %v4248, 7
    %v4250 = vsub.s32 %v4247, %v4249
    %v4251 = vrot.slane %v4244, %v4250
    %v4270 = vunpack.c.l.b16 %v3815
    %v4271 = vunpack.c.l.b16 %v3816
    %v4272 = vunpack.c.l.b16 %v3817
    %v4273 = vunpack.c.l.b16 %v3818
    %v4274 = vunpack.c.l.b16 %v3819
    %v4275 = vunpack.c.l.b16 %v3820
    %v4276 = vunpack.c.l.b16 %v3821
    %v4277 = vunpack.c.l.b16 %v3822
    %v4278 = vunpack.c.l.b16 %v3823
    %v4279 = vunpack.c.l.b16 %v3824
    %v4280 = vunpack.c.l.b16 %v3825
    %v4281 = vunpack.c.l.b16 %v3826
    %v4282 = vunpack.c.l.b16 %v3827
    %v4283 = vunpack.c.l.b16 %v3828
    %v4284 = vunpack.c.l.b16 %v3829
    %v4285 = vunpack.c.l.b16 %v3830
    %v4286 = vpack.c.b16 %v4271, %v4270
    %v4287 = vpack.c.b16 %v4273, %v4272
    %v4288 = vpack.c.b16 %v4275, %v4274
    %v4289 = vpack.c.b16 %v4277, %v4276
    %v4290 = vpack.c.b16 %v4279, %v4278
    %v4291 = vpack.c.b16 %v4281, %v4280
    %v4292 = vpack.c.b16 %v4283, %v4282
    %v4293 = vpack.c.b16 %v4285, %v4284
    %4302 = vmatprep.subr.bf16.mxu0 0
    %4303 = vmatpush1.bf16.msra.mxu0 %v4286
    %4304 = vmatprep.subr.bf16.mxu0 0
    %4305 = vmatpush1.bf16.msra.mxu0 %v4287
    %4306 = vmatprep.subr.bf16.mxu0 0
    %4307 = vmatpush1.bf16.msra.mxu0 %v4288
    %4308 = vmatprep.subr.bf16.mxu0 0
    %4309 = vmatpush1.bf16.msra.mxu0 %v4289
    %4310 = vmatprep.subr.bf16.mxu0 0
    %4311 = vmatpush1.bf16.msra.mxu0 %v4290
    %4312 = vmatprep.subr.bf16.mxu0 0
    %4313 = vmatpush1.bf16.msra.mxu0 %v4291
    %4314 = vmatprep.subr.bf16.mxu0 0
    %4315 = vmatpush1.bf16.msra.mxu0 %v4292
    %4316 = vmatprep.subr.bf16.mxu0 0
    %4317 = vmatpush1.bf16.msra.mxu0 %v4293
    %4318 = vmatprep.subr.bf16.mxu0 0
    %4319 = vmatpush1.bf16.msra.mxu0 0
    %4320 = vmatprep.subr.bf16.mxu0 0
    %4321 = vmatpush1.bf16.msra.mxu0 0
    %4322 = vmatprep.subr.bf16.mxu0 0
    %4323 = vmatpush1.bf16.msra.mxu0 0
    %4324 = vmatprep.subr.bf16.mxu0 0
    %4325 = vmatpush1.bf16.msra.mxu0 0
    %4326 = vmatprep.subr.bf16.mxu0 0
    %4327 = vmatpush1.bf16.msra.mxu0 0
    %4328 = vmatprep.subr.bf16.mxu0 0
    %4329 = vmatpush1.bf16.msra.mxu0 0
    %4330 = vmatprep.subr.bf16.mxu0 0
    %4331 = vmatpush1.bf16.msra.mxu0 0
    %4332 = vmatprep.subr.bf16.mxu0 0
    %4333 = vmatpush1.bf16.msra.mxu0 0
    %4334 = vmatprep.mubr.bf16.mxu0 0
    %4335 = vmatmul.mubr.bf16.gmra.mrb[0].mxu0 %v4236
    %v4336 = vpop.f32.mrb[0].mxu0
    %v4337 = vadd.f32 %v4175, %v4336
    %v4338 = vpop.f32.mrb[0].mxu0
    %v4339 = vpop.f32.mrb[0].mxu0
    %v4340 = vadd.f32 %v4178, %v4339
    %v4341 = vpop.f32.mrb[0].mxu0
    %4342 = vmatprep.mubr.bf16.mxu0 0
    %4343 = vmatmul.mubr.bf16.gmra.mrb[0].mxu0 %v4251
    %v4344 = vpop.f32.mrb[0].mxu0
    %v4345 = vadd.f32 %v4183, %v4344
    %v4346 = vpop.f32.mrb[0].mxu0
    %v4347 = vpop.f32.mrb[0].mxu0
    %v4348 = vpop.f32.mrb[0].mxu0
    %4349 = vdwg.mxu0
    %v4353 = vcombine.high %v4337, %v4337
    %v4355 = vunpack.c.l.s4 1983009808
    %v4356 = vunpack.c.0.s8 %v4355
    %v4357 = vlaneseq
    %v4358 = vshrl.u32 %v4357, 7
    %v4359 = vsub.s32 %v4356, %v4358
    %v4360 = vrot.slane %v4337, %v4359
    %v4362 = vunpack.c.l.s4 1983009808
    %v4363 = vunpack.c.0.s8 %v4362
    %v4364 = vlaneseq
    %v4365 = vshrl.u32 %v4364, 7
    %v4366 = vsub.s32 %v4363, %v4365
    %v4367 = vrot.slane %v4353, %v4366
    %v4368 = vcombine.high %v4360, %v4360
    %v4369 = vcombine.high %v4367, %v4367
    %v4370 = vcombine.high %v4340, %v4340
    %v4372 = vunpack.c.l.s4 1983009808
    %v4373 = vunpack.c.0.s8 %v4372
    %v4374 = vlaneseq
    %v4375 = vshrl.u32 %v4374, 7
    %v4376 = vsub.s32 %v4373, %v4375
    %v4377 = vrot.slane %v4340, %v4376
    %v4379 = vunpack.c.l.s4 1983009808
    %v4380 = vunpack.c.0.s8 %v4379
    %v4381 = vlaneseq
    %v4382 = vshrl.u32 %v4381, 7
    %v4383 = vsub.s32 %v4380, %v4382
    %v4384 = vrot.slane %v4370, %v4383
    %v4385 = vcombine.high %v4377, %v4377
    %v4386 = vcombine.high %v4384, %v4384
    %v4388 = vunpack.c.l.s4 1983009808
    %v4389 = vunpack.c.0.s8 %v4388
    %v4390 = vlaneseq
    %v4391 = vshrl.u32 %v4390, 7
    %v4392 = vsub.s32 %v4389, %v4391
    %v4393 = vrot.slane %v4345, %v4392
    %v4394 = vcombine.high %v4393, %v4393
    %s4405 = scalar_lea.vmem [#allocation13], 128
    %v4406 = vld [vmem:[%s4405] sm:$0xf]
    %v4407 = vld [vmem:[%s4405 + $0x4] sm:$0xf]
    %v4408 = vld [vmem:[%s4405 + $0x8] sm:$0xf]
    %v4409 = vld [vmem:[%s4405 + $0xc] sm:$0xf]
    %v4410 = vld [vmem:[%s4405 + $0x10] sm:$0xf]
    %v4411 = vld [vmem:[%s4405 + $0x14] sm:$0xf]
    %v4412 = vld [vmem:[%s4405 + $0x18] sm:$0xf]
    %v4413 = vld [vmem:[%s4405 + $0x1c] sm:$0xf]
    %v4414 = vld [vmem:[%s4405 + $0x20] sm:$0xf]
    %v4415 = vld [vmem:[%s4405 + $0x24] sm:$0xf]
    %v4416 = vld [vmem:[%s4405 + $0x28] sm:$0xf]
    %v4417 = vld [vmem:[%s4405 + $0x2c] sm:$0xf]
    %v4418 = vld [vmem:[%s4405 + $0x30] sm:$0xf]
    %v4419 = vld [vmem:[%s4405 + $0x34] sm:$0xf]
    %v4420 = vld [vmem:[%s4405 + $0x38] sm:$0xf]
    %v4421 = vld [vmem:[%s4405 + $0x3c] sm:$0xf]
    %v4422 = vcombine.low %v3887, %v3895
    %v4423 = vcombine.low %v3896, %v3880
    %v4424 = vcombine.low %v3894, %v3934
    %v4425 = vcombine.low %v3942, %v3943
    %v4427 = vunpack.c.l.s4 1966171168
    %v4428 = vunpack.c.0.s8 %v4427
    %v4429 = vlaneseq
    %v4430 = vshrl.u32 %v4429, 7
    %v4431 = vsub.s32 %v4428, %v4430
    %v4432 = vrot.slane %v4422, %v4431
    %v4434 = vunpack.c.l.s4 1966171168
    %v4435 = vunpack.c.0.s8 %v4434
    %v4436 = vlaneseq
    %v4437 = vshrl.u32 %v4436, 7
    %v4438 = vsub.s32 %v4435, %v4437
    %v4439 = vrot.slane %v4423, %v4438
    %v4441 = vunpack.c.l.s4 1966171168
    %v4442 = vunpack.c.0.s8 %v4441
    %v4443 = vlaneseq
    %v4444 = vshrl.u32 %v4443, 7
    %v4445 = vsub.s32 %v4442, %v4444
    %v4446 = vrot.slane %v4424, %v4445
    %v4448 = vunpack.c.l.s4 1966171168
    %v4449 = vunpack.c.0.s8 %v4448
    %v4450 = vlaneseq
    %v4451 = vshrl.u32 %v4450, 7
    %v4452 = vsub.s32 %v4449, %v4451
    %v4453 = vrot.slane %v4425, %v4452
    %v4454 = vcombine.low %v4432, %v4439
    %v4455 = vcombine.low %v4446, %v4453
    %v4457 = vunpack.c.l.s4 1966171168
    %v4458 = vunpack.c.0.s8 %v4457
    %v4459 = vlaneseq
    %v4460 = vshrl.u32 %v4459, 7
    %v4461 = vsub.s32 %v4458, %v4460
    %v4462 = vrot.slane %v4454, %v4461
    %v4464 = vunpack.c.l.s4 1966171168
    %v4465 = vunpack.c.0.s8 %v4464
    %v4466 = vlaneseq
    %v4467 = vshrl.u32 %v4466, 7
    %v4468 = vsub.s32 %v4465, %v4467
    %v4469 = vrot.slane %v4455, %v4468
    %v4470 = vcombine.low %v4462, %v4469
    %v4471 = vcombine.low %v3927, %v3941
    %v4473 = vunpack.c.l.s4 1966171168
    %v4474 = vunpack.c.0.s8 %v4473
    %v4475 = vlaneseq
    %v4476 = vshrl.u32 %v4475, 7
    %v4477 = vsub.s32 %v4474, %v4476
    %v4478 = vrot.slane %v4471, %v4477
    %v4480 = vunpack.c.l.s4 1966171168
    %v4481 = vunpack.c.0.s8 %v4480
    %v4482 = vlaneseq
    %v4483 = vshrl.u32 %v4482, 7
    %v4484 = vsub.s32 %v4481, %v4483
    %v4485 = vrot.slane %v4478, %v4484
    %v4504 = vunpack.c.l.b16 %v4406
    %v4505 = vunpack.c.l.b16 %v4407
    %v4506 = vunpack.c.l.b16 %v4408
    %v4507 = vunpack.c.l.b16 %v4409
    %v4508 = vunpack.c.l.b16 %v4410
    %v4509 = vunpack.c.l.b16 %v4411
    %v4510 = vunpack.c.l.b16 %v4412
    %v4511 = vunpack.c.l.b16 %v4413
    %v4512 = vunpack.c.l.b16 %v4414
    %v4513 = vunpack.c.l.b16 %v4415
    %v4514 = vunpack.c.l.b16 %v4416
    %v4515 = vunpack.c.l.b16 %v4417
    %v4516 = vunpack.c.l.b16 %v4418
    %v4517 = vunpack.c.l.b16 %v4419
    %v4518 = vunpack.c.l.b16 %v4420
    %v4519 = vunpack.c.l.b16 %v4421
    %v4520 = vpack.c.b16 %v4505, %v4504
    %v4521 = vpack.c.b16 %v4507, %v4506
    %v4522 = vpack.c.b16 %v4509, %v4508
    %v4523 = vpack.c.b16 %v4511, %v4510
    %v4524 = vpack.c.b16 %v4513, %v4512
    %v4525 = vpack.c.b16 %v4515, %v4514
    %v4526 = vpack.c.b16 %v4517, %v4516
    %v4527 = vpack.c.b16 %v4519, %v4518
    %4536 = vmatprep.subr.bf16.mxu0 0
    %4537 = vmatpush1.bf16.msra.mxu0 %v4520
    %4538 = vmatprep.subr.bf16.mxu0 0
    %4539 = vmatpush1.bf16.msra.mxu0 %v4521
    %4540 = vmatprep.subr.bf16.mxu0 0
    %4541 = vmatpush1.bf16.msra.mxu0 %v4522
    %4542 = vmatprep.subr.bf16.mxu0 0
    %4543 = vmatpush1.bf16.msra.mxu0 %v4523
    %4544 = vmatprep.subr.bf16.mxu0 0
    %4545 = vmatpush1.bf16.msra.mxu0 %v4524
    %4546 = vmatprep.subr.bf16.mxu0 0
    %4547 = vmatpush1.bf16.msra.mxu0 %v4525
    %4548 = vmatprep.subr.bf16.mxu0 0
    %4549 = vmatpush1.bf16.msra.mxu0 %v4526
    %4550 = vmatprep.subr.bf16.mxu0 0
    %4551 = vmatpush1.bf16.msra.mxu0 %v4527
    %4552 = vmatprep.subr.bf16.mxu0 0
    %4553 = vmatpush1.bf16.msra.mxu0 0
    %4554 = vmatprep.subr.bf16.mxu0 0
    %4555 = vmatpush1.bf16.msra.mxu0 0
    %4556 = vmatprep.subr.bf16.mxu0 0
    %4557 = vmatpush1.bf16.msra.mxu0 0
    %4558 = vmatprep.subr.bf16.mxu0 0
    %4559 = vmatpush1.bf16.msra.mxu0 0
    %4560 = vmatprep.subr.bf16.mxu0 0
    %4561 = vmatpush1.bf16.msra.mxu0 0
    %4562 = vmatprep.subr.bf16.mxu0 0
    %4563 = vmatpush1.bf16.msra.mxu0 0
    %4564 = vmatprep.subr.bf16.mxu0 0
    %4565 = vmatpush1.bf16.msra.mxu0 0
    %4566 = vmatprep.subr.bf16.mxu0 0
    %4567 = vmatpush1.bf16.msra.mxu0 0
    %4568 = vmatprep.mubr.bf16.mxu0 0
    %4569 = vmatmul.mubr.bf16.gmra.mrb[0].mxu0 %v4470
    %v4570 = vpop.f32.mrb[0].mxu0
    %v4571 = vadd.f32 0.0, %v4570
    %v4572 = vpop.f32.mrb[0].mxu0
    %v4573 = vpop.f32.mrb[0].mxu0
    %v4574 = vadd.f32 0.0, %v4573
    %v4575 = vpop.f32.mrb[0].mxu0
    %4576 = vmatprep.mubr.bf16.mxu0 0
    %4577 = vmatmul.mubr.bf16.gmra.mrb[0].mxu0 %v4485
    %v4578 = vpop.f32.mrb[0].mxu0
    %v4579 = vadd.f32 0.0, %v4578
    %v4580 = vpop.f32.mrb[0].mxu0
    %v4581 = vpop.f32.mrb[0].mxu0
    %v4582 = vpop.f32.mrb[0].mxu0
    %4583 = vdwg.mxu0
    %v4587 = vcombine.high %v4571, %v4571
    %v4589 = vunpack.c.l.s4 1983009808
    %v4590 = vunpack.c.0.s8 %v4589
    %v4591 = vlaneseq
    %v4592 = vshrl.u32 %v4591, 7
    %v4593 = vsub.s32 %v4590, %v4592
    %v4594 = vrot.slane %v4571, %v4593
    %v4596 = vunpack.c.l.s4 1983009808
    %v4597 = vunpack.c.0.s8 %v4596
    %v4598 = vlaneseq
    %v4599 = vshrl.u32 %v4598, 7
    %v4600 = vsub.s32 %v4597, %v4599
    %v4601 = vrot.slane %v4587, %v4600
    %v4602 = vcombine.high %v4594, %v4594
    %v4603 = vcombine.high %v4601, %v4601
    %v4604 = vcombine.high %v4574, %v4574
    %v4606 = vunpack.c.l.s4 1983009808
    %v4607 = vunpack.c.0.s8 %v4606
    %v4608 = vlaneseq
    %v4609 = vshrl.u32 %v4608, 7
    %v4610 = vsub.s32 %v4607, %v4609
    %v4611 = vrot.slane %v4574, %v4610
    %v4613 = vunpack.c.l.s4 1983009808
    %v4614 = vunpack.c.0.s8 %v4613
    %v4615 = vlaneseq
    %v4616 = vshrl.u32 %v4615, 7
    %v4617 = vsub.s32 %v4614, %v4616
    %v4618 = vrot.slane %v4604, %v4617
    %v4619 = vcombine.high %v4611, %v4611
    %v4620 = vcombine.high %v4618, %v4618
    %v4622 = vunpack.c.l.s4 1983009808
    %v4623 = vunpack.c.0.s8 %v4622
    %v4624 = vlaneseq
    %v4625 = vshrl.u32 %v4624, 7
    %v4626 = vsub.s32 %v4623, %v4625
    %v4627 = vrot.slane %v4579, %v4626
    %v4628 = vcombine.high %v4627, %v4627
    %v4639 = vadd.f32 %v4360, %v4594
    %v4640 = vadd.f32 %v4368, %v4602
    %v4641 = vadd.f32 %v4367, %v4601
    %v4642 = vadd.f32 %v4369, %v4603
    %v4643 = vadd.f32 %v4377, %v4611
    %v4644 = vadd.f32 %v4385, %v4619
    %v4645 = vadd.f32 %v4384, %v4618
    %v4646 = vadd.f32 %v4386, %v4620
    %v4647 = vadd.f32 %v4393, %v4627
    %v4648 = vadd.f32 %v4394, %v4628
    %s4649 = scalar_lea.vmem [#allocation13], 192
    %v4650 = vld [vmem:[%s4649] sm:$0xf]
    %v4651 = vld [vmem:[%s4649 + $0x4] sm:$0xf]
    %v4652 = vld [vmem:[%s4649 + $0x8] sm:$0xf]
    %v4653 = vld [vmem:[%s4649 + $0xc] sm:$0xf]
    %v4654 = vld [vmem:[%s4649 + $0x10] sm:$0xf]
    %v4655 = vld [vmem:[%s4649 + $0x14] sm:$0xf]
    %v4656 = vld [vmem:[%s4649 + $0x18] sm:$0xf]
    %v4657 = vld [vmem:[%s4649 + $0x1c] sm:$0xf]
    %v4658 = vld [vmem:[%s4649 + $0x20] sm:$0xf]
    %v4659 = vld [vmem:[%s4649 + $0x24] sm:$0xf]
    %v4660 = vld [vmem:[%s4649 + $0x28] sm:$0xf]
    %v4661 = vld [vmem:[%s4649 + $0x2c] sm:$0xf]
    %v4662 = vld [vmem:[%s4649 + $0x30] sm:$0xf]
    %v4663 = vld [vmem:[%s4649 + $0x34] sm:$0xf]
    %v4664 = vld [vmem:[%s4649 + $0x38] sm:$0xf]
    %v4665 = vld [vmem:[%s4649 + $0x3c] sm:$0xf]
    %v4666 = vcombine.high %v3880, %v3880
    %v4667 = vcombine.high %v3927, %v3927
    %v4668 = vshrl.u32 %v3894, 16
    %v4670 = vrot.slane %v4668, 7
    %v4671 = vrot.slane %v4670, 1
    %v4673 = vshll.u32 %v4666, 16
    %v4675 = vsel %vm332, %v4671, %v4673
    %v4676 = vshrl.u32 %v3941, 16
    %v4678 = vrot.slane %v4676, 7
    %v4679 = vrot.slane %v4678, 1
    %v4681 = vshll.u32 %v4667, 16
    %v4683 = vsel %vm332, %v4679, %v4681
    %v4684 = vcombine.low %v3960, %v3968
    %v4685 = vcombine.low %v3976, %v3984
    %v4686 = vcombine.low %v4675, %v4001
    %v4687 = vcombine.low %v4009, %v4017
    %v4689 = vunpack.c.l.s4 1966171168
    %v4690 = vunpack.c.0.s8 %v4689
    %v4691 = vlaneseq
    %v4692 = vshrl.u32 %v4691, 7
    %v4693 = vsub.s32 %v4690, %v4692
    %v4694 = vrot.slane %v4684, %v4693
    %v4696 = vunpack.c.l.s4 1966171168
    %v4697 = vunpack.c.0.s8 %v4696
    %v4698 = vlaneseq
    %v4699 = vshrl.u32 %v4698, 7
    %v4700 = vsub.s32 %v4697, %v4699
    %v4701 = vrot.slane %v4685, %v4700
    %v4703 = vunpack.c.l.s4 1966171168
    %v4704 = vunpack.c.0.s8 %v4703
    %v4705 = vlaneseq
    %v4706 = vshrl.u32 %v4705, 7
    %v4707 = vsub.s32 %v4704, %v4706
    %v4708 = vrot.slane %v4686, %v4707
    %v4710 = vunpack.c.l.s4 1966171168
    %v4711 = vunpack.c.0.s8 %v4710
    %v4712 = vlaneseq
    %v4713 = vshrl.u32 %v4712, 7
    %v4714 = vsub.s32 %v4711, %v4713
    %v4715 = vrot.slane %v4687, %v4714
    %v4716 = vcombine.low %v4694, %v4701
    %v4717 = vcombine.low %v4708, %v4715
    %v4719 = vunpack.c.l.s4 1966171168
    %v4720 = vunpack.c.0.s8 %v4719
    %v4721 = vlaneseq
    %v4722 = vshrl.u32 %v4721, 7
    %v4723 = vsub.s32 %v4720, %v4722
    %v4724 = vrot.slane %v4716, %v4723
    %v4726 = vunpack.c.l.s4 1966171168
    %v4727 = vunpack.c.0.s8 %v4726
    %v4728 = vlaneseq
    %v4729 = vshrl.u32 %v4728, 7
    %v4730 = vsub.s32 %v4727, %v4729
    %v4731 = vrot.slane %v4717, %v4730
    %v4732 = vcombine.low %v4724, %v4731
    %v4733 = vcombine.low %v4025, %v4683
    %v4735 = vunpack.c.l.s4 1966171168
    %v4736 = vunpack.c.0.s8 %v4735
    %v4737 = vlaneseq
    %v4738 = vshrl.u32 %v4737, 7
    %v4739 = vsub.s32 %v4736, %v4738
    %v4740 = vrot.slane %v4733, %v4739
    %v4742 = vunpack.c.l.s4 1966171168
    %v4743 = vunpack.c.0.s8 %v4742
    %v4744 = vlaneseq
    %v4745 = vshrl.u32 %v4744, 7
    %v4746 = vsub.s32 %v4743, %v4745
    %v4747 = vrot.slane %v4740, %v4746
    %v4766 = vunpack.c.l.b16 %v4650
    %v4767 = vunpack.c.l.b16 %v4651
    %v4768 = vunpack.c.l.b16 %v4652
    %v4769 = vunpack.c.l.b16 %v4653
    %v4770 = vunpack.c.l.b16 %v4654
    %v4771 = vunpack.c.l.b16 %v4655
    %v4772 = vunpack.c.l.b16 %v4656
    %v4773 = vunpack.c.l.b16 %v4657
    %v4774 = vunpack.c.l.b16 %v4658
    %v4775 = vunpack.c.l.b16 %v4659
    %v4776 = vunpack.c.l.b16 %v4660
    %v4777 = vunpack.c.l.b16 %v4661
    %v4778 = vunpack.c.l.b16 %v4662
    %v4779 = vunpack.c.l.b16 %v4663
    %v4780 = vunpack.c.l.b16 %v4664
    %v4781 = vunpack.c.l.b16 %v4665
    %v4782 = vpack.c.b16 %v4767, %v4766
    %v4783 = vpack.c.b16 %v4769, %v4768
    %v4784 = vpack.c.b16 %v4771, %v4770
    %v4785 = vpack.c.b16 %v4773, %v4772
    %v4786 = vpack.c.b16 %v4775, %v4774
    %v4787 = vpack.c.b16 %v4777, %v4776
    %v4788 = vpack.c.b16 %v4779, %v4778
    %v4789 = vpack.c.b16 %v4781, %v4780
    %4798 = vmatprep.subr.bf16.mxu0 0
    %4799 = vmatpush1.bf16.msra.mxu0 %v4782
    %4800 = vmatprep.subr.bf16.mxu0 0
    %4801 = vmatpush1.bf16.msra.mxu0 %v4783
    %4802 = vmatprep.subr.bf16.mxu0 0
    %4803 = vmatpush1.bf16.msra.mxu0 %v4784
    %4804 = vmatprep.subr.bf16.mxu0 0
    %4805 = vmatpush1.bf16.msra.mxu0 %v4785
    %4806 = vmatprep.subr.bf16.mxu0 0
    %4807 = vmatpush1.bf16.msra.mxu0 %v4786
    %4808 = vmatprep.subr.bf16.mxu0 0
    %4809 = vmatpush1.bf16.msra.mxu0 %v4787
    %4810 = vmatprep.subr.bf16.mxu0 0
    %4811 = vmatpush1.bf16.msra.mxu0 %v4788
    %4812 = vmatprep.subr.bf16.mxu0 0
    %4813 = vmatpush1.bf16.msra.mxu0 %v4789
    %4814 = vmatprep.subr.bf16.mxu0 0
    %4815 = vmatpush1.bf16.msra.mxu0 0
    %4816 = vmatprep.subr.bf16.mxu0 0
    %4817 = vmatpush1.bf16.msra.mxu0 0
    %4818 = vmatprep.subr.bf16.mxu0 0
    %4819 = vmatpush1.bf16.msra.mxu0 0
    %4820 = vmatprep.subr.bf16.mxu0 0
    %4821 = vmatpush1.bf16.msra.mxu0 0
    %4822 = vmatprep.subr.bf16.mxu0 0
    %4823 = vmatpush1.bf16.msra.mxu0 0
    %4824 = vmatprep.subr.bf16.mxu0 0
    %4825 = vmatpush1.bf16.msra.mxu0 0
    %4826 = vmatprep.subr.bf16.mxu0 0
    %4827 = vmatpush1.bf16.msra.mxu0 0
    %4828 = vmatprep.subr.bf16.mxu0 0
    %4829 = vmatpush1.bf16.msra.mxu0 0
    %4830 = vmatprep.mubr.bf16.mxu0 0
    %4831 = vmatmul.mubr.bf16.gmra.mrb[0].mxu0 %v4732
    %v4832 = vpop.f32.mrb[0].mxu0
    %v4833 = vadd.f32 0.0, %v4832
    %v4834 = vpop.f32.mrb[0].mxu0
    %v4835 = vpop.f32.mrb[0].mxu0
    %v4836 = vadd.f32 0.0, %v4835
    %v4837 = vpop.f32.mrb[0].mxu0
    %4838 = vmatprep.mubr.bf16.mxu0 0
    %4839 = vmatmul.mubr.bf16.gmra.mrb[0].mxu0 %v4747
    %v4840 = vpop.f32.mrb[0].mxu0
    %v4841 = vadd.f32 0.0, %v4840
    %v4842 = vpop.f32.mrb[0].mxu0
    %v4843 = vpop.f32.mrb[0].mxu0
    %v4844 = vpop.f32.mrb[0].mxu0
    %4845 = vdwg.mxu0
    %v4849 = vcombine.high %v4833, %v4833
    %v4851 = vunpack.c.l.s4 1983009808
    %v4852 = vunpack.c.0.s8 %v4851
    %v4853 = vlaneseq
    %v4854 = vshrl.u32 %v4853, 7
    %v4855 = vsub.s32 %v4852, %v4854
    %v4856 = vrot.slane %v4833, %v4855
    %v4858 = vunpack.c.l.s4 1983009808
    %v4859 = vunpack.c.0.s8 %v4858
    %v4860 = vlaneseq
    %v4861 = vshrl.u32 %v4860, 7
    %v4862 = vsub.s32 %v4859, %v4861
    %v4863 = vrot.slane %v4849, %v4862
    %v4864 = vcombine.high %v4856, %v4856
    %v4865 = vcombine.high %v4863, %v4863
    %v4866 = vcombine.high %v4836, %v4836
    %v4868 = vunpack.c.l.s4 1983009808
    %v4869 = vunpack.c.0.s8 %v4868
    %v4870 = vlaneseq
    %v4871 = vshrl.u32 %v4870, 7
    %v4872 = vsub.s32 %v4869, %v4871
    %v4873 = vrot.slane %v4836, %v4872
    %v4875 = vunpack.c.l.s4 1983009808
    %v4876 = vunpack.c.0.s8 %v4875
    %v4877 = vlaneseq
    %v4878 = vshrl.u32 %v4877, 7
    %v4879 = vsub.s32 %v4876, %v4878
    %v4880 = vrot.slane %v4866, %v4879
    %v4881 = vcombine.high %v4873, %v4873
    %v4882 = vcombine.high %v4880, %v4880
    %v4884 = vunpack.c.l.s4 1983009808
    %v4885 = vunpack.c.0.s8 %v4884
    %v4886 = vlaneseq
    %v4887 = vshrl.u32 %v4886, 7
    %v4888 = vsub.s32 %v4885, %v4887
    %v4889 = vrot.slane %v4841, %v4888
    %v4890 = vcombine.high %v4889, %v4889
    %v4901 = vadd.f32 %v4639, %v4856
    %v4902 = vadd.f32 %v4640, %v4864
    %v4903 = vadd.f32 %v4641, %v4863
    %v4904 = vadd.f32 %v4642, %v4865
    %v4905 = vadd.f32 %v4643, %v4873
    %v4906 = vadd.f32 %v4644, %v4881
    %v4907 = vadd.f32 %v4645, %v4880
    %v4908 = vadd.f32 %v4646, %v4882
    %v4909 = vadd.f32 %v4647, %v4889
    %v4910 = vadd.f32 %v4648, %v4890
    %v4911 = vld [vmem:[%s9] sm:$0x1]
    %v4913 = vlaneseq
    %v4914 = vshrl.u32 %v4913, 7
    %v4915 = vsub.s32 0, %v4914
    %v4916 = vrot.slane %v4911, %v4915
    %v4917 = vcombine.high %v4916, %v4916
    %v4919 = vunpack.c.l.s4 1983009808
    %v4920 = vunpack.c.0.s8 %v4919
    %v4921 = vlaneseq
    %v4922 = vshrl.u32 %v4921, 7
    %v4923 = vsub.s32 %v4920, %v4922
    %v4924 = vrot.slane %v4916, %v4923
    %v4926 = vunpack.c.l.s4 1983009808
    %v4927 = vunpack.c.0.s8 %v4926
    %v4928 = vlaneseq
    %v4929 = vshrl.u32 %v4928, 7
    %v4930 = vsub.s32 %v4927, %v4929
    %v4931 = vrot.slane %v4917, %v4930
    %v4932 = vcombine.high %v4924, %v4924
    %v4933 = vcombine.high %v4931, %v4931
    %v4938 = vadd.f32 %v4901, %v4924
    %v4939 = vadd.f32 %v4902, %v4932
    %v4940 = vadd.f32 %v4903, %v4931
    %v4941 = vadd.f32 %v4904, %v4933
    %v4942 = vadd.f32 %v4905, %v4924
    %v4943 = vadd.f32 %v4906, %v4924
    %v4944 = vadd.f32 %v4907, %v4932
    %v4945 = vadd.f32 %v4908, %v4931
    %v4946 = vadd.f32 %v4909, %v4933
    %v4947 = vadd.f32 %v4910, %v4924
    %v4948 = vmax.f32 %v4938, 0.0
    %v4949 = vmax.f32 %v4939, 0.0
    %v4950 = vmax.f32 %v4940, 0.0
    %v4951 = vmax.f32 %v4941, 0.0
    %v4952 = vmax.f32 %v4942, 0.0
    %v4953 = vmax.f32 %v4943, 0.0
    %v4954 = vmax.f32 %v4944, 0.0
    %v4955 = vmax.f32 %v4945, 0.0
    %v4956 = vmax.f32 %v4946, 0.0
    %v4957 = vmax.f32 %v4947, 0.0
    %v4968 = vcombine.low %v4948, %v4949
    %v4969 = vcombine.low %v4950, %v4951
    %v4971 = vunpack.c.l.s4 1983009808
    %v4972 = vunpack.c.0.s8 %v4971
    %v4973 = vlaneseq
    %v4974 = vshrl.u32 %v4973, 7
    %v4975 = vsub.s32 %v4972, %v4974
    %v4976 = vrot.slane %v4968, %v4975
    %v4978 = vunpack.c.l.s4 1983009808
    %v4979 = vunpack.c.0.s8 %v4978
    %v4980 = vlaneseq
    %v4981 = vshrl.u32 %v4980, 7
    %v4982 = vsub.s32 %v4979, %v4981
    %v4983 = vrot.slane %v4969, %v4982
    %v4984 = vcombine.low %v4976, %v4983
    %v4986 = vunpack.c.l.s4 1983009808
    %v4987 = vunpack.c.0.s8 %v4986
    %v4988 = vlaneseq
    %v4989 = vshrl.u32 %v4988, 7
    %v4990 = vsub.s32 %v4987, %v4989
    %v4991 = vrot.slane %v4952, %v4990
    %v4992 = vcombine.low %v4953, %v4954
    %v4993 = vcombine.low %v4955, %v4956
    %v4995 = vunpack.c.l.s4 1983009808
    %v4996 = vunpack.c.0.s8 %v4995
    %v4997 = vlaneseq
    %v4998 = vshrl.u32 %v4997, 7
    %v4999 = vsub.s32 %v4996, %v4998
    %v5000 = vrot.slane %v4992, %v4999
    %v5002 = vunpack.c.l.s4 1983009808
    %v5003 = vunpack.c.0.s8 %v5002
    %v5004 = vlaneseq
    %v5005 = vshrl.u32 %v5004, 7
    %v5006 = vsub.s32 %v5003, %v5005
    %v5007 = vrot.slane %v4993, %v5006
    %v5008 = vcombine.low %v5000, %v5007
    %v5010 = vunpack.c.l.s4 1983009808
    %v5011 = vunpack.c.0.s8 %v5010
    %v5012 = vlaneseq
    %v5013 = vshrl.u32 %v5012, 7
    %v5014 = vsub.s32 %v5011, %v5013
    %v5015 = vrot.slane %v4957, %v5014
    %vm5020 = vcmask 1041408
    %v5021 = vsel %vm5020, %v4991, -inf
    %v5022 = vmax.f32 %v4984, %v5021
    %v5023 = vrot.slane %v5022, 4
    %v5024 = vmax.f32 %v5022, %v5023
    %v5025 = vrot.slane %v5024, 2
    %v5026 = vmax.f32 %v5024, %v5025
    %v5027 = vrot.slane %v5026, 1
    %v5028 = vmax.f32 %v5026, %v5027
    %v5029 = vsel %vm5020, %v5015, -inf
    %v5030 = vmax.f32 %v5008, %v5029
    %v5031 = vrot.slane %v5030, 4
    %v5032 = vmax.f32 %v5030, %v5031
    %v5033 = vrot.slane %v5032, 2
    %v5034 = vmax.f32 %v5032, %v5033
    %v5035 = vrot.slane %v5034, 1
    %v5036 = vmax.f32 %v5034, %v5035
    %v5037 = vld [vmem:[#allocation14] sm:$0xf]
    %v5038 = vld [vmem:[#allocation14 + $0x4] sm:$0xf]
    %v5039 = vld [vmem:[#allocation14 + $0x8] sm:$0xf]
    %v5040 = vld [vmem:[#allocation14 + $0xc] sm:$0xf]
    %v5041 = vld [vmem:[#allocation14 + $0x10] sm:$0xf]
    %v5042 = vld [vmem:[#allocation14 + $0x14] sm:$0xf]
    %v5043 = vld [vmem:[#allocation14 + $0x18] sm:$0xf]
    %v5044 = vld [vmem:[#allocation14 + $0x1c] sm:$0xf]
    %v5045 = vld [vmem:[#allocation14 + $0x20] sm:$0xf]
    %v5046 = vld [vmem:[#allocation14 + $0x24] sm:$0xf]
    %v5047 = vld [vmem:[#allocation14 + $0x28] sm:$0xf]
    %v5048 = vld [vmem:[#allocation14 + $0x2c] sm:$0xf]
    %v5049 = vld [vmem:[#allocation14 + $0x30] sm:$0xf]
    %v5050 = vld [vmem:[#allocation14 + $0x34] sm:$0xf]
    %v5051 = vld [vmem:[#allocation14 + $0x38] sm:$0xf]
    %v5052 = vld [vmem:[#allocation14 + $0x3c] sm:$0xf]
    %s5053 = scalar_lea.vmem [#allocation14], 64
    %v5054 = vld [vmem:[%s5053] sm:$0xf]
    %v5055 = vld [vmem:[%s5053 + $0x4] sm:$0xf]
    %v5056 = vld [vmem:[%s5053 + $0x8] sm:$0xf]
    %v5057 = vld [vmem:[%s5053 + $0xc] sm:$0xf]
    %v5058 = vld [vmem:[%s5053 + $0x10] sm:$0xf]
    %v5059 = vld [vmem:[%s5053 + $0x14] sm:$0xf]
    %v5060 = vld [vmem:[%s5053 + $0x18] sm:$0xf]
    %v5061 = vld [vmem:[%s5053 + $0x1c] sm:$0xf]
    %v5062 = vld [vmem:[%s5053 + $0x20] sm:$0xf]
    %v5063 = vld [vmem:[%s5053 + $0x24] sm:$0xf]
    %v5064 = vld [vmem:[%s5053 + $0x28] sm:$0xf]
    %v5065 = vld [vmem:[%s5053 + $0x2c] sm:$0xf]
    %v5066 = vld [vmem:[%s5053 + $0x30] sm:$0xf]
    %v5067 = vld [vmem:[%s5053 + $0x34] sm:$0xf]
    %v5068 = vld [vmem:[%s5053 + $0x38] sm:$0xf]
    %v5069 = vld [vmem:[%s5053 + $0x3c] sm:$0xf]
    %v5071 = vunpack.c.l.s4 1983009808
    %v5072 = vunpack.c.0.s8 %v5071
    %v5073 = vlaneseq
    %v5074 = vshrl.u32 %v5073, 7
    %v5075 = vsub.s32 %v5072, %v5074
    %v5076 = vrot.slane %v183, %v5075
    %v5078 = vunpack.c.l.s4 1983009808
    %v5079 = vunpack.c.0.s8 %v5078
    %v5080 = vlaneseq
    %v5081 = vshrl.u32 %v5080, 7
    %v5082 = vsub.s32 %v5079, %v5081
    %v5083 = vrot.slane %v220, %v5082
    %v5084 = vcombine.high %v5076, %v5076
    %v5085 = vcombine.high %v5083, %v5083
    %v5087 = vunpack.c.l.s4 1983009808
    %v5088 = vunpack.c.0.s8 %v5087
    %v5089 = vlaneseq
    %v5090 = vshrl.u32 %v5089, 7
    %v5091 = vsub.s32 %v5088, %v5090
    %v5092 = vrot.slane %v184, %v5091
    %v5094 = vunpack.c.l.s4 1983009808
    %v5095 = vunpack.c.0.s8 %v5094
    %v5096 = vlaneseq
    %v5097 = vshrl.u32 %v5096, 7
    %v5098 = vsub.s32 %v5095, %v5097
    %v5099 = vrot.slane %v269, %v5098
    %v5100 = vcombine.high %v5092, %v5092
    %v5101 = vcombine.high %v5099, %v5099
    %v5103 = vshrl.u32 %v5076, 16
    %v5105 = vrot.slane %v5103, 6
    %v5106 = vshll.u32 %v5076, 16
    %v5108 = vrot.slane %v5106, 7
    %v5109 = vor.u32 %v5105, %v5108
    %v5110 = vrot.slane %v5109, 2
    %v5112 = vshll.u32 %v5084, 16
    %v5114 = vrot.slane %v5112, 7
    %v5115 = vsel %vm1412, %v5110, %v5114
    %v5116 = vshrl.u32 %v5084, 16
    %v5118 = vrot.slane %v5116, 6
    %v5119 = vor.u32 %v5118, %v5114
    %v5120 = vrot.slane %v5119, 2
    %v5122 = vshll.u32 %v5083, 16
    %v5124 = vrot.slane %v5122, 7
    %v5125 = vsel %vm1412, %v5120, %v5124
    %v5126 = vshrl.u32 %v5083, 16
    %v5128 = vrot.slane %v5126, 6
    %v5129 = vor.u32 %v5128, %v5124
    %v5130 = vrot.slane %v5129, 2
    %v5132 = vshll.u32 %v5085, 16
    %v5134 = vrot.slane %v5132, 7
    %v5135 = vsel %vm1412, %v5130, %v5134
    %v5137 = vshrl.u32 %v5092, 16
    %v5139 = vrot.slane %v5137, 6
    %v5140 = vshll.u32 %v5092, 16
    %v5142 = vrot.slane %v5140, 7
    %v5143 = vor.u32 %v5139, %v5142
    %v5144 = vrot.slane %v5143, 2
    %v5146 = vshll.u32 %v5100, 16
    %v5148 = vrot.slane %v5146, 7
    %v5149 = vsel %vm1412, %v5144, %v5148
    %v5150 = vshrl.u32 %v5100, 16
    %v5152 = vrot.slane %v5150, 6
    %v5153 = vor.u32 %v5152, %v5148
    %v5154 = vrot.slane %v5153, 2
    %v5156 = vshll.u32 %v5099, 16
    %v5158 = vrot.slane %v5156, 7
    %v5159 = vsel %vm1412, %v5154, %v5158
    %v5160 = vshrl.u32 %v5099, 16
    %v5162 = vrot.slane %v5160, 6
    %v5163 = vor.u32 %v5162, %v5158
    %v5164 = vrot.slane %v5163, 2
    %v5166 = vshll.u32 %v5101, 16
    %v5168 = vrot.slane %v5166, 7
    %v5169 = vsel %vm1412, %v5164, %v5168
    %v5170 = vcombine.low %v5115, %v5125
    %v5171 = vcombine.low %v5135, %v5149
    %v5173 = vunpack.c.l.s4 1983009808
    %v5174 = vunpack.c.0.s8 %v5173
    %v5175 = vlaneseq
    %v5176 = vshrl.u32 %v5175, 7
    %v5177 = vsub.s32 %v5174, %v5176
    %v5178 = vrot.slane %v5170, %v5177
    %v5180 = vunpack.c.l.s4 1983009808
    %v5181 = vunpack.c.0.s8 %v5180
    %v5182 = vlaneseq
    %v5183 = vshrl.u32 %v5182, 7
    %v5184 = vsub.s32 %v5181, %v5183
    %v5185 = vrot.slane %v5171, %v5184
    %v5186 = vcombine.low %v5178, %v5185
    %v5187 = vcombine.low %v5159, %v5169
    %v5189 = vunpack.c.l.s4 1983009808
    %v5190 = vunpack.c.0.s8 %v5189
    %v5191 = vlaneseq
    %v5192 = vshrl.u32 %v5191, 7
    %v5193 = vsub.s32 %v5190, %v5192
    %v5194 = vrot.slane %v5187, %v5193
    %v5213 = vunpack.c.l.b16 %v5054
    %v5214 = vunpack.c.l.b16 %v5055
    %v5215 = vunpack.c.l.b16 %v5056
    %v5216 = vunpack.c.l.b16 %v5057
    %v5217 = vunpack.c.l.b16 %v5058
    %v5218 = vunpack.c.l.b16 %v5059
    %v5219 = vunpack.c.l.b16 %v5060
    %v5220 = vunpack.c.l.b16 %v5061
    %v5221 = vunpack.c.l.b16 %v5062
    %v5222 = vunpack.c.l.b16 %v5063
    %v5223 = vunpack.c.l.b16 %v5064
    %v5224 = vunpack.c.l.b16 %v5065
    %v5225 = vunpack.c.l.b16 %v5066
    %v5226 = vunpack.c.l.b16 %v5067
    %v5227 = vunpack.c.l.b16 %v5068
    %v5228 = vunpack.c.l.b16 %v5069
    %v5229 = vpack.c.b16 %v5214, %v5213
    %v5230 = vpack.c.b16 %v5216, %v5215
    %v5231 = vpack.c.b16 %v5218, %v5217
    %v5232 = vpack.c.b16 %v5220, %v5219
    %v5233 = vpack.c.b16 %v5222, %v5221
    %v5234 = vpack.c.b16 %v5224, %v5223
    %v5235 = vpack.c.b16 %v5226, %v5225
    %v5236 = vpack.c.b16 %v5228, %v5227
    %5245 = vmatprep.subr.bf16.mxu0 0
    %5246 = vmatpush1.bf16.msra.mxu0 %v5229
    %5247 = vmatprep.subr.bf16.mxu0 0
    %5248 = vmatpush1.bf16.msra.mxu0 %v5230
    %5249 = vmatprep.subr.bf16.mxu0 0
    %5250 = vmatpush1.bf16.msra.mxu0 %v5231
    %5251 = vmatprep.subr.bf16.mxu0 0
    %5252 = vmatpush1.bf16.msra.mxu0 %v5232
    %5253 = vmatprep.subr.bf16.mxu0 0
    %5254 = vmatpush1.bf16.msra.mxu0 %v5233
    %5255 = vmatprep.subr.bf16.mxu0 0
    %5256 = vmatpush1.bf16.msra.mxu0 %v5234
    %5257 = vmatprep.subr.bf16.mxu0 0
    %5258 = vmatpush1.bf16.msra.mxu0 %v5235
    %5259 = vmatprep.subr.bf16.mxu0 0
    %5260 = vmatpush1.bf16.msra.mxu0 %v5236
    %5261 = vmatprep.subr.bf16.mxu0 0
    %5262 = vmatpush1.bf16.msra.mxu0 0
    %5263 = vmatprep.subr.bf16.mxu0 0
    %5264 = vmatpush1.bf16.msra.mxu0 0
    %5265 = vmatprep.subr.bf16.mxu0 0
    %5266 = vmatpush1.bf16.msra.mxu0 0
    %5267 = vmatprep.subr.bf16.mxu0 0
    %5268 = vmatpush1.bf16.msra.mxu0 0
    %5269 = vmatprep.subr.bf16.mxu0 0
    %5270 = vmatpush1.bf16.msra.mxu0 0
    %5271 = vmatprep.subr.bf16.mxu0 0
    %5272 = vmatpush1.bf16.msra.mxu0 0
    %5273 = vmatprep.subr.bf16.mxu0 0
    %5274 = vmatpush1.bf16.msra.mxu0 0
    %5275 = vmatprep.subr.bf16.mxu0 0
    %5276 = vmatpush1.bf16.msra.mxu0 0
    %5277 = vmatprep.mubr.bf16.mxu0 0
    %5278 = vmatmul.mubr.bf16.gmra.mrb[0].mxu0 %v5186
    %v5279 = vpop.f32.mrb[0].mxu0
    %v5280 = vadd.f32 0.0, %v5279
    %v5281 = vpop.f32.mrb[0].mxu0
    %v5282 = vpop.f32.mrb[0].mxu0
    %v5283 = vadd.f32 0.0, %v5282
    %v5284 = vpop.f32.mrb[0].mxu0
    %5285 = vmatprep.mubr.bf16.mxu0 0
    %5286 = vmatmul.mubr.bf16.gmra.mrb[0].mxu0 %v5194
    %v5287 = vpop.f32.mrb[0].mxu0
    %v5288 = vadd.f32 0.0, %v5287
    %v5289 = vpop.f32.mrb[0].mxu0
    %v5290 = vpop.f32.mrb[0].mxu0
    %v5291 = vpop.f32.mrb[0].mxu0
    %5292 = vdwg.mxu0
    %v5293 = vcombine.low %v5076, %v5084
    %v5294 = vcombine.low %v5083, %v5092
    %v5296 = vunpack.c.l.s4 1983009808
    %v5297 = vunpack.c.0.s8 %v5296
    %v5298 = vlaneseq
    %v5299 = vshrl.u32 %v5298, 7
    %v5300 = vsub.s32 %v5297, %v5299
    %v5301 = vrot.slane %v5293, %v5300
    %v5303 = vunpack.c.l.s4 1983009808
    %v5304 = vunpack.c.0.s8 %v5303
    %v5305 = vlaneseq
    %v5306 = vshrl.u32 %v5305, 7
    %v5307 = vsub.s32 %v5304, %v5306
    %v5308 = vrot.slane %v5294, %v5307
    %v5309 = vcombine.low %v5301, %v5308
    %v5310 = vcombine.low %v5100, %v5099
    %v5312 = vunpack.c.l.s4 1983009808
    %v5313 = vunpack.c.0.s8 %v5312
    %v5314 = vlaneseq
    %v5315 = vshrl.u32 %v5314, 7
    %v5316 = vsub.s32 %v5313, %v5315
    %v5317 = vrot.slane %v5310, %v5316
    %v5336 = vunpack.c.l.b16 %v5037
    %v5337 = vunpack.c.l.b16 %v5038
    %v5338 = vunpack.c.l.b16 %v5039
    %v5339 = vunpack.c.l.b16 %v5040
    %v5340 = vunpack.c.l.b16 %v5041
    %v5341 = vunpack.c.l.b16 %v5042
    %v5342 = vunpack.c.l.b16 %v5043
    %v5343 = vunpack.c.l.b16 %v5044
    %v5344 = vunpack.c.l.b16 %v5045
    %v5345 = vunpack.c.l.b16 %v5046
    %v5346 = vunpack.c.l.b16 %v5047
    %v5347 = vunpack.c.l.b16 %v5048
    %v5348 = vunpack.c.l.b16 %v5049
    %v5349 = vunpack.c.l.b16 %v5050
    %v5350 = vunpack.c.l.b16 %v5051
    %v5351 = vunpack.c.l.b16 %v5052
    %v5352 = vpack.c.b16 %v5337, %v5336
    %v5353 = vpack.c.b16 %v5339, %v5338
    %v5354 = vpack.c.b16 %v5341, %v5340
    %v5355 = vpack.c.b16 %v5343, %v5342
    %v5356 = vpack.c.b16 %v5345, %v5344
    %v5357 = vpack.c.b16 %v5347, %v5346
    %v5358 = vpack.c.b16 %v5349, %v5348
    %v5359 = vpack.c.b16 %v5351, %v5350
    %5368 = vmatprep.subr.bf16.mxu0 0
    %5369 = vmatpush1.bf16.msra.mxu0 %v5352
    %5370 = vmatprep.subr.bf16.mxu0 0
    %5371 = vmatpush1.bf16.msra.mxu0 %v5353
    %5372 = vmatprep.subr.bf16.mxu0 0
    %5373 = vmatpush1.bf16.msra.mxu0 %v5354
    %5374 = vmatprep.subr.bf16.mxu0 0
    %5375 = vmatpush1.bf16.msra.mxu0 %v5355
    %5376 = vmatprep.subr.bf16.mxu0 0
    %5377 = vmatpush1.bf16.msra.mxu0 %v5356
    %5378 = vmatprep.subr.bf16.mxu0 0
    %5379 = vmatpush1.bf16.msra.mxu0 %v5357
    %5380 = vmatprep.subr.bf16.mxu0 0
    %5381 = vmatpush1.bf16.msra.mxu0 %v5358
    %5382 = vmatprep.subr.bf16.mxu0 0
    %5383 = vmatpush1.bf16.msra.mxu0 %v5359
    %5384 = vmatprep.subr.bf16.mxu0 0
    %5385 = vmatpush1.bf16.msra.mxu0 0
    %5386 = vmatprep.subr.bf16.mxu0 0
    %5387 = vmatpush1.bf16.msra.mxu0 0
    %5388 = vmatprep.subr.bf16.mxu0 0
    %5389 = vmatpush1.bf16.msra.mxu0 0
    %5390 = vmatprep.subr.bf16.mxu0 0
    %5391 = vmatpush1.bf16.msra.mxu0 0
    %5392 = vmatprep.subr.bf16.mxu0 0
    %5393 = vmatpush1.bf16.msra.mxu0 0
    %5394 = vmatprep.subr.bf16.mxu0 0
    %5395 = vmatpush1.bf16.msra.mxu0 0
    %5396 = vmatprep.subr.bf16.mxu0 0
    %5397 = vmatpush1.bf16.msra.mxu0 0
    %5398 = vmatprep.subr.bf16.mxu0 0
    %5399 = vmatpush1.bf16.msra.mxu0 0
    %5400 = vmatprep.mubr.bf16.mxu0 0
    %5401 = vmatmul.mubr.bf16.gmra.mrb[0].mxu0 %v5309
    %v5402 = vpop.f32.mrb[0].mxu0
    %v5403 = vadd.f32 %v5280, %v5402
    %v5404 = vpop.f32.mrb[0].mxu0
    %v5405 = vpop.f32.mrb[0].mxu0
    %v5406 = vadd.f32 %v5283, %v5405
    %v5407 = vpop.f32.mrb[0].mxu0
    %5408 = vmatprep.mubr.bf16.mxu0 0
    %5409 = vmatmul.mubr.bf16.gmra.mrb[0].mxu0 %v5317
    %v5410 = vpop.f32.mrb[0].mxu0
    %v5411 = vadd.f32 %v5288, %v5410
    %v5412 = vpop.f32.mrb[0].mxu0
    %v5413 = vpop.f32.mrb[0].mxu0
    %v5414 = vpop.f32.mrb[0].mxu0
    %5415 = vdwg.mxu0
    %v5419 = vcombine.high %v5403, %v5403
    %v5420 = vcombine.high %v5406, %v5406
    %v5421 = vcombine.high %v5411, %v5411
    %s5425 = scalar_lea.vmem [#allocation14], 128
    %v5426 = vld [vmem:[%s5425] sm:$0xf]
    %v5427 = vld [vmem:[%s5425 + $0x4] sm:$0xf]
    %v5428 = vld [vmem:[%s5425 + $0x8] sm:$0xf]
    %v5429 = vld [vmem:[%s5425 + $0xc] sm:$0xf]
    %v5430 = vld [vmem:[%s5425 + $0x10] sm:$0xf]
    %v5431 = vld [vmem:[%s5425 + $0x14] sm:$0xf]
    %v5432 = vld [vmem:[%s5425 + $0x18] sm:$0xf]
    %v5433 = vld [vmem:[%s5425 + $0x1c] sm:$0xf]
    %v5434 = vld [vmem:[%s5425 + $0x20] sm:$0xf]
    %v5435 = vld [vmem:[%s5425 + $0x24] sm:$0xf]
    %v5436 = vld [vmem:[%s5425 + $0x28] sm:$0xf]
    %v5437 = vld [vmem:[%s5425 + $0x2c] sm:$0xf]
    %v5438 = vld [vmem:[%s5425 + $0x30] sm:$0xf]
    %v5439 = vld [vmem:[%s5425 + $0x34] sm:$0xf]
    %v5440 = vld [vmem:[%s5425 + $0x38] sm:$0xf]
    %v5441 = vld [vmem:[%s5425 + $0x3c] sm:$0xf]
    %v5442 = vrot.slane %v5076, 7
    %v5443 = vrot.slane %v5442, 2
    %v5444 = vrot.slane %v5084, 7
    %v5445 = vsel %vm1759, %v5443, %v5444
    %v5446 = vrot.slane %v5444, 2
    %v5447 = vrot.slane %v5083, 7
    %v5448 = vsel %vm1759, %v5446, %v5447
    %v5449 = vrot.slane %v5447, 2
    %v5450 = vrot.slane %v5085, 7
    %v5451 = vsel %vm1759, %v5449, %v5450
    %v5452 = vrot.slane %v5092, 7
    %v5453 = vrot.slane %v5452, 2
    %v5454 = vrot.slane %v5100, 7
    %v5455 = vsel %vm1759, %v5453, %v5454
    %v5456 = vrot.slane %v5454, 2
    %v5457 = vrot.slane %v5099, 7
    %v5458 = vsel %vm1759, %v5456, %v5457
    %v5459 = vrot.slane %v5457, 2
    %v5460 = vrot.slane %v5101, 7
    %v5461 = vsel %vm1759, %v5459, %v5460
    %v5462 = vcombine.low %v5445, %v5448
    %v5463 = vcombine.low %v5451, %v5455
    %v5465 = vunpack.c.l.s4 1983009808
    %v5466 = vunpack.c.0.s8 %v5465
    %v5467 = vlaneseq
    %v5468 = vshrl.u32 %v5467, 7
    %v5469 = vsub.s32 %v5466, %v5468
    %v5470 = vrot.slane %v5462, %v5469
    %v5472 = vunpack.c.l.s4 1983009808
    %v5473 = vunpack.c.0.s8 %v5472
    %v5474 = vlaneseq
    %v5475 = vshrl.u32 %v5474, 7
    %v5476 = vsub.s32 %v5473, %v5475
    %v5477 = vrot.slane %v5463, %v5476
    %v5478 = vcombine.low %v5470, %v5477
    %v5479 = vcombine.low %v5458, %v5461
    %v5481 = vunpack.c.l.s4 1983009808
    %v5482 = vunpack.c.0.s8 %v5481
    %v5483 = vlaneseq
    %v5484 = vshrl.u32 %v5483, 7
    %v5485 = vsub.s32 %v5482, %v5484
    %v5486 = vrot.slane %v5479, %v5485
    %v5505 = vunpack.c.l.b16 %v5426
    %v5506 = vunpack.c.l.b16 %v5427
    %v5507 = vunpack.c.l.b16 %v5428
    %v5508 = vunpack.c.l.b16 %v5429
    %v5509 = vunpack.c.l.b16 %v5430
    %v5510 = vunpack.c.l.b16 %v5431
    %v5511 = vunpack.c.l.b16 %v5432
    %v5512 = vunpack.c.l.b16 %v5433
    %v5513 = vunpack.c.l.b16 %v5434
    %v5514 = vunpack.c.l.b16 %v5435
    %v5515 = vunpack.c.l.b16 %v5436
    %v5516 = vunpack.c.l.b16 %v5437
    %v5517 = vunpack.c.l.b16 %v5438
    %v5518 = vunpack.c.l.b16 %v5439
    %v5519 = vunpack.c.l.b16 %v5440
    %v5520 = vunpack.c.l.b16 %v5441
    %v5521 = vpack.c.b16 %v5506, %v5505
    %v5522 = vpack.c.b16 %v5508, %v5507
    %v5523 = vpack.c.b16 %v5510, %v5509
    %v5524 = vpack.c.b16 %v5512, %v5511
    %v5525 = vpack.c.b16 %v5514, %v5513
    %v5526 = vpack.c.b16 %v5516, %v5515
    %v5527 = vpack.c.b16 %v5518, %v5517
    %v5528 = vpack.c.b16 %v5520, %v5519
    %5537 = vmatprep.subr.bf16.mxu0 0
    %5538 = vmatpush1.bf16.msra.mxu0 %v5521
    %5539 = vmatprep.subr.bf16.mxu0 0
    %5540 = vmatpush1.bf16.msra.mxu0 %v5522
    %5541 = vmatprep.subr.bf16.mxu0 0
    %5542 = vmatpush1.bf16.msra.mxu0 %v5523
    %5543 = vmatprep.subr.bf16.mxu0 0
    %5544 = vmatpush1.bf16.msra.mxu0 %v5524
    %5545 = vmatprep.subr.bf16.mxu0 0
    %5546 = vmatpush1.bf16.msra.mxu0 %v5525
    %5547 = vmatprep.subr.bf16.mxu0 0
    %5548 = vmatpush1.bf16.msra.mxu0 %v5526
    %5549 = vmatprep.subr.bf16.mxu0 0
    %5550 = vmatpush1.bf16.msra.mxu0 %v5527
    %5551 = vmatprep.subr.bf16.mxu0 0
    %5552 = vmatpush1.bf16.msra.mxu0 %v5528
    %5553 = vmatprep.subr.bf16.mxu0 0
    %5554 = vmatpush1.bf16.msra.mxu0 0
    %5555 = vmatprep.subr.bf16.mxu0 0
    %5556 = vmatpush1.bf16.msra.mxu0 0
    %5557 = vmatprep.subr.bf16.mxu0 0
    %5558 = vmatpush1.bf16.msra.mxu0 0
    %5559 = vmatprep.subr.bf16.mxu0 0
    %5560 = vmatpush1.bf16.msra.mxu0 0
    %5561 = vmatprep.subr.bf16.mxu0 0
    %5562 = vmatpush1.bf16.msra.mxu0 0
    %5563 = vmatprep.subr.bf16.mxu0 0
    %5564 = vmatpush1.bf16.msra.mxu0 0
    %5565 = vmatprep.subr.bf16.mxu0 0
    %5566 = vmatpush1.bf16.msra.mxu0 0
    %5567 = vmatprep.subr.bf16.mxu0 0
    %5568 = vmatpush1.bf16.msra.mxu0 0
    %5569 = vmatprep.mubr.bf16.mxu0 0
    %5570 = vmatmul.mubr.bf16.gmra.mrb[0].mxu0 %v5478
    %v5571 = vpop.f32.mrb[0].mxu0
    %v5572 = vadd.f32 0.0, %v5571
    %v5573 = vpop.f32.mrb[0].mxu0
    %v5574 = vpop.f32.mrb[0].mxu0
    %v5575 = vadd.f32 0.0, %v5574
    %v5576 = vpop.f32.mrb[0].mxu0
    %5577 = vmatprep.mubr.bf16.mxu0 0
    %5578 = vmatmul.mubr.bf16.gmra.mrb[0].mxu0 %v5486
    %v5579 = vpop.f32.mrb[0].mxu0
    %v5580 = vadd.f32 0.0, %v5579
    %v5581 = vpop.f32.mrb[0].mxu0
    %v5582 = vpop.f32.mrb[0].mxu0
    %v5583 = vpop.f32.mrb[0].mxu0
    %5584 = vdwg.mxu0
    %v5588 = vcombine.high %v5572, %v5572
    %v5589 = vcombine.high %v5575, %v5575
    %v5590 = vcombine.high %v5580, %v5580
    %v5594 = vadd.f32 %v5403, %v5572
    %v5595 = vadd.f32 %v5419, %v5588
    %v5596 = vadd.f32 %v5406, %v5575
    %v5597 = vadd.f32 %v5420, %v5589
    %v5598 = vadd.f32 %v5411, %v5580
    %v5599 = vadd.f32 %v5421, %v5590
    %s5600 = scalar_lea.vmem [#allocation14], 192
    %v5601 = vld [vmem:[%s5600] sm:$0xf]
    %v5602 = vld [vmem:[%s5600 + $0x4] sm:$0xf]
    %v5603 = vld [vmem:[%s5600 + $0x8] sm:$0xf]
    %v5604 = vld [vmem:[%s5600 + $0xc] sm:$0xf]
    %v5605 = vld [vmem:[%s5600 + $0x10] sm:$0xf]
    %v5606 = vld [vmem:[%s5600 + $0x14] sm:$0xf]
    %v5607 = vld [vmem:[%s5600 + $0x18] sm:$0xf]
    %v5608 = vld [vmem:[%s5600 + $0x1c] sm:$0xf]
    %v5609 = vld [vmem:[%s5600 + $0x20] sm:$0xf]
    %v5610 = vld [vmem:[%s5600 + $0x24] sm:$0xf]
    %v5611 = vld [vmem:[%s5600 + $0x28] sm:$0xf]
    %v5612 = vld [vmem:[%s5600 + $0x2c] sm:$0xf]
    %v5613 = vld [vmem:[%s5600 + $0x30] sm:$0xf]
    %v5614 = vld [vmem:[%s5600 + $0x34] sm:$0xf]
    %v5615 = vld [vmem:[%s5600 + $0x38] sm:$0xf]
    %v5616 = vld [vmem:[%s5600 + $0x3c] sm:$0xf]
    %vm5617 = vmor %vm318, %vm321
    %vm5618 = vmor %vm5617, %vm325
    %vm5619 = vmor %vm5618, %vm329
    %v5620 = vrot.slane %v5103, 7
    %v5621 = vrot.slane %v5620, 2
    %v5622 = vrot.slane %v5116, 7
    %v5623 = vor.u32 %v5622, %v5112
    %v5624 = vsel %vm5619, %v5621, %v5623
    %v5625 = vrot.slane %v5622, 2
    %v5626 = vrot.slane %v5126, 7
    %v5627 = vor.u32 %v5626, %v5122
    %v5628 = vsel %vm5619, %v5625, %v5627
    %v5629 = vrot.slane %v5626, 2
    %v5630 = vshrl.u32 %v5085, 16
    %v5632 = vrot.slane %v5630, 7
    %v5633 = vor.u32 %v5632, %v5132
    %v5634 = vsel %vm5619, %v5629, %v5633
    %v5635 = vrot.slane %v5137, 7
    %v5636 = vrot.slane %v5635, 2
    %v5637 = vrot.slane %v5150, 7
    %v5638 = vor.u32 %v5637, %v5146
    %v5639 = vsel %vm5619, %v5636, %v5638
    %v5640 = vrot.slane %v5637, 2
    %v5641 = vrot.slane %v5160, 7
    %v5642 = vor.u32 %v5641, %v5156
    %v5643 = vsel %vm5619, %v5640, %v5642
    %v5644 = vrot.slane %v5641, 2
    %v5645 = vshrl.u32 %v5101, 16
    %v5647 = vrot.slane %v5645, 7
    %v5648 = vor.u32 %v5647, %v5166
    %v5649 = vsel %vm5619, %v5644, %v5648
    %v5650 = vcombine.low %v5624, %v5628
    %v5651 = vcombine.low %v5634, %v5639
    %v5653 = vunpack.c.l.s4 1983009808
    %v5654 = vunpack.c.0.s8 %v5653
    %v5655 = vlaneseq
    %v5656 = vshrl.u32 %v5655, 7
    %v5657 = vsub.s32 %v5654, %v5656
    %v5658 = vrot.slane %v5650, %v5657
    %v5660 = vunpack.c.l.s4 1983009808
    %v5661 = vunpack.c.0.s8 %v5660
    %v5662 = vlaneseq
    %v5663 = vshrl.u32 %v5662, 7
    %v5664 = vsub.s32 %v5661, %v5663
    %v5665 = vrot.slane %v5651, %v5664
    %v5666 = vcombine.low %v5658, %v5665
    %v5667 = vcombine.low %v5643, %v5649
    %v5669 = vunpack.c.l.s4 1983009808
    %v5670 = vunpack.c.0.s8 %v5669
    %v5671 = vlaneseq
    %v5672 = vshrl.u32 %v5671, 7
    %v5673 = vsub.s32 %v5670, %v5672
    %v5674 = vrot.slane %v5667, %v5673
    %v5693 = vunpack.c.l.b16 %v5601
    %v5694 = vunpack.c.l.b16 %v5602
    %v5695 = vunpack.c.l.b16 %v5603
    %v5696 = vunpack.c.l.b16 %v5604
    %v5697 = vunpack.c.l.b16 %v5605
    %v5698 = vunpack.c.l.b16 %v5606
    %v5699 = vunpack.c.l.b16 %v5607
    %v5700 = vunpack.c.l.b16 %v5608
    %v5701 = vunpack.c.l.b16 %v5609
    %v5702 = vunpack.c.l.b16 %v5610
    %v5703 = vunpack.c.l.b16 %v5611
    %v5704 = vunpack.c.l.b16 %v5612
    %v5705 = vunpack.c.l.b16 %v5613
    %v5706 = vunpack.c.l.b16 %v5614
    %v5707 = vunpack.c.l.b16 %v5615
    %v5708 = vunpack.c.l.b16 %v5616
    %v5709 = vpack.c.b16 %v5694, %v5693
    %v5710 = vpack.c.b16 %v5696, %v5695
    %v5711 = vpack.c.b16 %v5698, %v5697
    %v5712 = vpack.c.b16 %v5700, %v5699
    %v5713 = vpack.c.b16 %v5702, %v5701
    %v5714 = vpack.c.b16 %v5704, %v5703
    %v5715 = vpack.c.b16 %v5706, %v5705
    %v5716 = vpack.c.b16 %v5708, %v5707
    %5725 = vmatprep.subr.bf16.mxu0 0
    %5726 = vmatpush1.bf16.msra.mxu0 %v5709
    %5727 = vmatprep.subr.bf16.mxu0 0
    %5728 = vmatpush1.bf16.msra.mxu0 %v5710
    %5729 = vmatprep.subr.bf16.mxu0 0
    %5730 = vmatpush1.bf16.msra.mxu0 %v5711
    %5731 = vmatprep.subr.bf16.mxu0 0
    %5732 = vmatpush1.bf16.msra.mxu0 %v5712
    %5733 = vmatprep.subr.bf16.mxu0 0
    %5734 = vmatpush1.bf16.msra.mxu0 %v5713
    %5735 = vmatprep.subr.bf16.mxu0 0
    %5736 = vmatpush1.bf16.msra.mxu0 %v5714
    %5737 = vmatprep.subr.bf16.mxu0 0
    %5738 = vmatpush1.bf16.msra.mxu0 %v5715
    %5739 = vmatprep.subr.bf16.mxu0 0
    %5740 = vmatpush1.bf16.msra.mxu0 %v5716
    %5741 = vmatprep.subr.bf16.mxu0 0
    %5742 = vmatpush1.bf16.msra.mxu0 0
    %5743 = vmatprep.subr.bf16.mxu0 0
    %5744 = vmatpush1.bf16.msra.mxu0 0
    %5745 = vmatprep.subr.bf16.mxu0 0
    %5746 = vmatpush1.bf16.msra.mxu0 0
    %5747 = vmatprep.subr.bf16.mxu0 0
    %5748 = vmatpush1.bf16.msra.mxu0 0
    %5749 = vmatprep.subr.bf16.mxu0 0
    %5750 = vmatpush1.bf16.msra.mxu0 0
    %5751 = vmatprep.subr.bf16.mxu0 0
    %5752 = vmatpush1.bf16.msra.mxu0 0
    %5753 = vmatprep.subr.bf16.mxu0 0
    %5754 = vmatpush1.bf16.msra.mxu0 0
    %5755 = vmatprep.subr.bf16.mxu0 0
    %5756 = vmatpush1.bf16.msra.mxu0 0
    %5757 = vmatprep.mubr.bf16.mxu0 0
    %5758 = vmatmul.mubr.bf16.gmra.mrb[0].mxu0 %v5666
    %v5759 = vpop.f32.mrb[0].mxu0
    %v5760 = vadd.f32 0.0, %v5759
    %v5761 = vpop.f32.mrb[0].mxu0
    %v5762 = vpop.f32.mrb[0].mxu0
    %v5763 = vadd.f32 0.0, %v5762
    %v5764 = vpop.f32.mrb[0].mxu0
    %5765 = vmatprep.mubr.bf16.mxu0 0
    %5766 = vmatmul.mubr.bf16.gmra.mrb[0].mxu0 %v5674
    %v5767 = vpop.f32.mrb[0].mxu0
    %v5768 = vadd.f32 0.0, %v5767
    %v5769 = vpop.f32.mrb[0].mxu0
    %v5770 = vpop.f32.mrb[0].mxu0
    %v5771 = vpop.f32.mrb[0].mxu0
    %5772 = vdwg.mxu0
    %v5776 = vcombine.high %v5760, %v5760
    %v5777 = vcombine.high %v5763, %v5763
    %v5778 = vcombine.high %v5768, %v5768
    %v5782 = vadd.f32 %v5594, %v5760
    %v5783 = vadd.f32 %v5595, %v5776
    %v5784 = vadd.f32 %v5596, %v5763
    %v5785 = vadd.f32 %v5597, %v5777
    %v5786 = vadd.f32 %v5598, %v5768
    %v5787 = vadd.f32 %v5599, %v5778
    %s5788 = scalar_lea.vmem [#allocation14], 256
    %v5789 = vld [vmem:[%s5788] sm:$0xf]
    %v5790 = vld [vmem:[%s5788 + $0x4] sm:$0xf]
    %v5791 = vld [vmem:[%s5788 + $0x8] sm:$0xf]
    %v5792 = vld [vmem:[%s5788 + $0xc] sm:$0xf]
    %v5793 = vld [vmem:[%s5788 + $0x10] sm:$0xf]
    %v5794 = vld [vmem:[%s5788 + $0x14] sm:$0xf]
    %v5795 = vld [vmem:[%s5788 + $0x18] sm:$0xf]
    %v5796 = vld [vmem:[%s5788 + $0x1c] sm:$0xf]
    %v5797 = vld [vmem:[%s5788 + $0x20] sm:$0xf]
    %v5798 = vld [vmem:[%s5788 + $0x24] sm:$0xf]
    %v5799 = vld [vmem:[%s5788 + $0x28] sm:$0xf]
    %v5800 = vld [vmem:[%s5788 + $0x2c] sm:$0xf]
    %v5801 = vld [vmem:[%s5788 + $0x30] sm:$0xf]
    %v5802 = vld [vmem:[%s5788 + $0x34] sm:$0xf]
    %v5803 = vld [vmem:[%s5788 + $0x38] sm:$0xf]
    %v5804 = vld [vmem:[%s5788 + $0x3c] sm:$0xf]
    %v5805 = vcombine.low %v5084, %v5083
    %v5806 = vcombine.low %v5085, %v5100
    %v5808 = vunpack.c.l.s4 1983009808
    %v5809 = vunpack.c.0.s8 %v5808
    %v5810 = vlaneseq
    %v5811 = vshrl.u32 %v5810, 7
    %v5812 = vsub.s32 %v5809, %v5811
    %v5813 = vrot.slane %v5805, %v5812
    %v5815 = vunpack.c.l.s4 1983009808
    %v5816 = vunpack.c.0.s8 %v5815
    %v5817 = vlaneseq
    %v5818 = vshrl.u32 %v5817, 7
    %v5819 = vsub.s32 %v5816, %v5818
    %v5820 = vrot.slane %v5806, %v5819
    %v5821 = vcombine.low %v5813, %v5820
    %v5822 = vcombine.low %v5099, %v5101
    %v5824 = vunpack.c.l.s4 1983009808
    %v5825 = vunpack.c.0.s8 %v5824
    %v5826 = vlaneseq
    %v5827 = vshrl.u32 %v5826, 7
    %v5828 = vsub.s32 %v5825, %v5827
    %v5829 = vrot.slane %v5822, %v5828
    %v5848 = vunpack.c.l.b16 %v5789
    %v5849 = vunpack.c.l.b16 %v5790
    %v5850 = vunpack.c.l.b16 %v5791
    %v5851 = vunpack.c.l.b16 %v5792
    %v5852 = vunpack.c.l.b16 %v5793
    %v5853 = vunpack.c.l.b16 %v5794
    %v5854 = vunpack.c.l.b16 %v5795
    %v5855 = vunpack.c.l.b16 %v5796
    %v5856 = vunpack.c.l.b16 %v5797
    %v5857 = vunpack.c.l.b16 %v5798
    %v5858 = vunpack.c.l.b16 %v5799
    %v5859 = vunpack.c.l.b16 %v5800
    %v5860 = vunpack.c.l.b16 %v5801
    %v5861 = vunpack.c.l.b16 %v5802
    %v5862 = vunpack.c.l.b16 %v5803
    %v5863 = vunpack.c.l.b16 %v5804
    %v5864 = vpack.c.b16 %v5849, %v5848
    %v5865 = vpack.c.b16 %v5851, %v5850
    %v5866 = vpack.c.b16 %v5853, %v5852
    %v5867 = vpack.c.b16 %v5855, %v5854
    %v5868 = vpack.c.b16 %v5857, %v5856
    %v5869 = vpack.c.b16 %v5859, %v5858
    %v5870 = vpack.c.b16 %v5861, %v5860
    %v5871 = vpack.c.b16 %v5863, %v5862
    %5880 = vmatprep.subr.bf16.mxu0 0
    %5881 = vmatpush1.bf16.msra.mxu0 %v5864
    %5882 = vmatprep.subr.bf16.mxu0 0
    %5883 = vmatpush1.bf16.msra.mxu0 %v5865
    %5884 = vmatprep.subr.bf16.mxu0 0
    %5885 = vmatpush1.bf16.msra.mxu0 %v5866
    %5886 = vmatprep.subr.bf16.mxu0 0
    %5887 = vmatpush1.bf16.msra.mxu0 %v5867
    %5888 = vmatprep.subr.bf16.mxu0 0
    %5889 = vmatpush1.bf16.msra.mxu0 %v5868
    %5890 = vmatprep.subr.bf16.mxu0 0
    %5891 = vmatpush1.bf16.msra.mxu0 %v5869
    %5892 = vmatprep.subr.bf16.mxu0 0
    %5893 = vmatpush1.bf16.msra.mxu0 %v5870
    %5894 = vmatprep.subr.bf16.mxu0 0
    %5895 = vmatpush1.bf16.msra.mxu0 %v5871
    %5896 = vmatprep.subr.bf16.mxu0 0
    %5897 = vmatpush1.bf16.msra.mxu0 0
    %5898 = vmatprep.subr.bf16.mxu0 0
    %5899 = vmatpush1.bf16.msra.mxu0 0
    %5900 = vmatprep.subr.bf16.mxu0 0
    %5901 = vmatpush1.bf16.msra.mxu0 0
    %5902 = vmatprep.subr.bf16.mxu0 0
    %5903 = vmatpush1.bf16.msra.mxu0 0
    %5904 = vmatprep.subr.bf16.mxu0 0
    %5905 = vmatpush1.bf16.msra.mxu0 0
    %5906 = vmatprep.subr.bf16.mxu0 0
    %5907 = vmatpush1.bf16.msra.mxu0 0
    %5908 = vmatprep.subr.bf16.mxu0 0
    %5909 = vmatpush1.bf16.msra.mxu0 0
    %5910 = vmatprep.subr.bf16.mxu0 0
    %5911 = vmatpush1.bf16.msra.mxu0 0
    %5912 = vmatprep.mubr.bf16.mxu0 0
    %5913 = vmatmul.mubr.bf16.gmra.mrb[0].mxu0 %v5821
    %v5914 = vpop.f32.mrb[0].mxu0
    %v5915 = vadd.f32 0.0, %v5914
    %v5916 = vpop.f32.mrb[0].mxu0
    %v5917 = vpop.f32.mrb[0].mxu0
    %v5918 = vadd.f32 0.0, %v5917
    %v5919 = vpop.f32.mrb[0].mxu0
    %5920 = vmatprep.mubr.bf16.mxu0 0
    %5921 = vmatmul.mubr.bf16.gmra.mrb[0].mxu0 %v5829
    %v5922 = vpop.f32.mrb[0].mxu0
    %v5923 = vadd.f32 0.0, %v5922
    %v5924 = vpop.f32.mrb[0].mxu0
    %v5925 = vpop.f32.mrb[0].mxu0
    %v5926 = vpop.f32.mrb[0].mxu0
    %5927 = vdwg.mxu0
    %v5931 = vcombine.high %v5915, %v5915
    %v5932 = vcombine.high %v5918, %v5918
    %v5933 = vcombine.high %v5923, %v5923
    %v5937 = vadd.f32 %v5782, %v5915
    %v5938 = vadd.f32 %v5783, %v5931
    %v5939 = vadd.f32 %v5784, %v5918
    %v5940 = vadd.f32 %v5785, %v5932
    %v5941 = vadd.f32 %v5786, %v5923
    %v5942 = vadd.f32 %v5787, %v5933
    %v5943 = vld [vmem:[%s11] sm:$0x1]
    %v5945 = vlaneseq
    %v5946 = vshrl.u32 %v5945, 7
    %v5947 = vsub.s32 0, %v5946
    %v5948 = vrot.slane %v5943, %v5947
    %v5950 = vcombine.high %v5948, %v5948
    %v5952 = vadd.f32 %v5937, %v5948
    %v5953 = vadd.f32 %v5938, %v5950
    %v5954 = vadd.f32 %v5939, %v5948
    %v5955 = vadd.f32 %v5940, %v5948
    %v5956 = vadd.f32 %v5941, %v5950
    %v5957 = vadd.f32 %v5942, %v5948
    %v5958 = vmax.f32 %v5952, 0.0
    %v5959 = vmax.f32 %v5953, 0.0
    %v5960 = vmax.f32 %v5954, 0.0
    %v5961 = vmax.f32 %v5955, 0.0
    %v5962 = vmax.f32 %v5956, 0.0
    %v5963 = vmax.f32 %v5957, 0.0
    %v5968 = vcombine.low %v5958, %v5959
    %v5969 = vcombine.low %v5961, %v5962
    %v5972 = vpack.c.bf16 %v5960, %v5968
    %v5973 = vpack.c.bf16 %v5963, %v5969
    %v5974 = vld [vmem:[#allocation16] sm:$0xf]
    %v5975 = vld [vmem:[#allocation16 + $0x4] sm:$0xf]
    %v5976 = vld [vmem:[#allocation16 + $0x8] sm:$0xf]
    %v5977 = vld [vmem:[#allocation16 + $0xc] sm:$0xf]
    %v5978 = vld [vmem:[#allocation16 + $0x10] sm:$0xf]
    %v5979 = vld [vmem:[#allocation16 + $0x14] sm:$0xf]
    %v5980 = vld [vmem:[#allocation16 + $0x18] sm:$0xf]
    %v5981 = vld [vmem:[#allocation16 + $0x1c] sm:$0xf]
    %v5982 = vld [vmem:[#allocation16 + $0x20] sm:$0xf]
    %v5983 = vld [vmem:[#allocation16 + $0x24] sm:$0xf]
    %v5984 = vld [vmem:[#allocation16 + $0x28] sm:$0xf]
    %v5985 = vld [vmem:[#allocation16 + $0x2c] sm:$0xf]
    %v5986 = vld [vmem:[#allocation16 + $0x30] sm:$0xf]
    %v5987 = vld [vmem:[#allocation16 + $0x34] sm:$0xf]
    %v5988 = vld [vmem:[#allocation16 + $0x38] sm:$0xf]
    %v5989 = vld [vmem:[#allocation16 + $0x3c] sm:$0xf]
    %s5990 = scalar_lea.vmem [#allocation16], 64
    %v5991 = vld [vmem:[%s5990] sm:$0xf]
    %v5992 = vld [vmem:[%s5990 + $0x4] sm:$0xf]
    %v5993 = vld [vmem:[%s5990 + $0x8] sm:$0xf]
    %v5994 = vld [vmem:[%s5990 + $0xc] sm:$0xf]
    %v5995 = vld [vmem:[%s5990 + $0x10] sm:$0xf]
    %v5996 = vld [vmem:[%s5990 + $0x14] sm:$0xf]
    %v5997 = vld [vmem:[%s5990 + $0x18] sm:$0xf]
    %v5998 = vld [vmem:[%s5990 + $0x1c] sm:$0xf]
    %v5999 = vld [vmem:[%s5990 + $0x20] sm:$0xf]
    %v6000 = vld [vmem:[%s5990 + $0x24] sm:$0xf]
    %v6001 = vld [vmem:[%s5990 + $0x28] sm:$0xf]
    %v6002 = vld [vmem:[%s5990 + $0x2c] sm:$0xf]
    %v6003 = vld [vmem:[%s5990 + $0x30] sm:$0xf]
    %v6004 = vld [vmem:[%s5990 + $0x34] sm:$0xf]
    %v6005 = vld [vmem:[%s5990 + $0x38] sm:$0xf]
    %v6006 = vld [vmem:[%s5990 + $0x3c] sm:$0xf]
    %v6009 = vunpack.c.l.b16 %v5972
    %v6010 = vunpack.c.h.b16 %v5972
    %v6011 = vunpack.c.l.b16 %v5973
    %v6012 = vunpack.c.h.b16 %v5973
    %v6013 = vpack.c.b16 %v6009, %v6009
    %v6014 = vpack.c.b16 %v6010, %v6010
    %v6015 = vpack.c.b16 %v6011, %v6011
    %v6016 = vpack.c.b16 %v6012, %v6012
    %vm6017 = vsmask.f32 3328
    %vm6018 = vsmask.f32 7440
    %vm6019 = vmor %vm6017, %vm6018
    %v6021 = vshrl.u32 %v6013, 16
    %v6023 = vrot.slane %v6021, 4
    %v6024 = vshll.u32 %v6013, 16
    %v6026 = vrot.slane %v6024, 5
    %v6027 = vor.u32 %v6023, %v6026
    %v6028 = vrot.slane %v6027, 4
    %v6030 = vshll.u32 %v6014, 16
    %v6032 = vrot.slane %v6030, 5
    %v6033 = vsel %vm6019, %v6028, %v6032
    %v6035 = vshrl.u32 %v6015, 16
    %v6037 = vrot.slane %v6035, 4
    %v6038 = vshll.u32 %v6015, 16
    %v6040 = vrot.slane %v6038, 5
    %v6041 = vor.u32 %v6037, %v6040
    %v6042 = vrot.slane %v6041, 4
    %v6044 = vshll.u32 %v6016, 16
    %v6046 = vrot.slane %v6044, 5
    %v6047 = vsel %vm6019, %v6042, %v6046
    %v6048 = vunpack.c.l.b16 %v6033
    %v6049 = vunpack.c.l.b16 %v6047
    %v6050 = vpack.c.b16 %v6049, %v6048
    %v6068 = vunpack.c.l.b16 %v5991
    %v6069 = vunpack.c.l.b16 %v5992
    %v6070 = vunpack.c.l.b16 %v5993
    %v6071 = vunpack.c.l.b16 %v5994
    %v6072 = vunpack.c.l.b16 %v5995
    %v6073 = vunpack.c.l.b16 %v5996
    %v6074 = vunpack.c.l.b16 %v5997
    %v6075 = vunpack.c.l.b16 %v5998
    %v6076 = vunpack.c.l.b16 %v5999
    %v6077 = vunpack.c.l.b16 %v6000
    %v6078 = vunpack.c.l.b16 %v6001
    %v6079 = vunpack.c.l.b16 %v6002
    %v6080 = vunpack.c.l.b16 %v6003
    %v6081 = vunpack.c.l.b16 %v6004
    %v6082 = vunpack.c.l.b16 %v6005
    %v6083 = vunpack.c.l.b16 %v6006
    %v6084 = vpack.c.b16 %v6069, %v6068
    %v6085 = vpack.c.b16 %v6071, %v6070
    %v6086 = vpack.c.b16 %v6073, %v6072
    %v6087 = vpack.c.b16 %v6075, %v6074
    %v6088 = vpack.c.b16 %v6077, %v6076
    %v6089 = vpack.c.b16 %v6079, %v6078
    %v6090 = vpack.c.b16 %v6081, %v6080
    %v6091 = vpack.c.b16 %v6083, %v6082
    %6100 = vmatprep.subr.bf16.mxu0 0
    %6101 = vmatpush1.bf16.msra.mxu0 %v6084
    %6102 = vmatprep.subr.bf16.mxu0 0
    %6103 = vmatpush1.bf16.msra.mxu0 %v6085
    %6104 = vmatprep.subr.bf16.mxu0 0
    %6105 = vmatpush1.bf16.msra.mxu0 %v6086
    %6106 = vmatprep.subr.bf16.mxu0 0
    %6107 = vmatpush1.bf16.msra.mxu0 %v6087
    %6108 = vmatprep.subr.bf16.mxu0 0
    %6109 = vmatpush1.bf16.msra.mxu0 %v6088
    %6110 = vmatprep.subr.bf16.mxu0 0
    %6111 = vmatpush1.bf16.msra.mxu0 %v6089
    %6112 = vmatprep.subr.bf16.mxu0 0
    %6113 = vmatpush1.bf16.msra.mxu0 %v6090
    %6114 = vmatprep.subr.bf16.mxu0 0
    %6115 = vmatpush1.bf16.msra.mxu0 %v6091
    %6116 = vmatprep.subr.bf16.mxu0 0
    %6117 = vmatpush1.bf16.msra.mxu0 0
    %6118 = vmatprep.subr.bf16.mxu0 0
    %6119 = vmatpush1.bf16.msra.mxu0 0
    %6120 = vmatprep.subr.bf16.mxu0 0
    %6121 = vmatpush1.bf16.msra.mxu0 0
    %6122 = vmatprep.subr.bf16.mxu0 0
    %6123 = vmatpush1.bf16.msra.mxu0 0
    %6124 = vmatprep.subr.bf16.mxu0 0
    %6125 = vmatpush1.bf16.msra.mxu0 0
    %6126 = vmatprep.subr.bf16.mxu0 0
    %6127 = vmatpush1.bf16.msra.mxu0 0
    %6128 = vmatprep.subr.bf16.mxu0 0
    %6129 = vmatpush1.bf16.msra.mxu0 0
    %6130 = vmatprep.subr.bf16.mxu0 0
    %6131 = vmatpush1.bf16.msra.mxu0 0
    %6132 = vmatprep.mubr.bf16.mxu0 0
    %6133 = vmatmul.mubr.bf16.gmra.mrb[0].mxu0 %v6050
    %v6134 = vpop.f32.mrb[0].mxu0
    %v6135 = vadd.f32 0.0, %v6134
    %v6136 = vpop.f32.mrb[0].mxu0
    %v6137 = vpop.f32.mrb[0].mxu0
    %v6138 = vadd.f32 0.0, %v6137
    %v6139 = vpop.f32.mrb[0].mxu0
    %6140 = vdwg.mxu0
    %v6141 = vpack.c.b16 %v6011, %v6009
    %v6159 = vunpack.c.l.b16 %v5974
    %v6160 = vunpack.c.l.b16 %v5975
    %v6161 = vunpack.c.l.b16 %v5976
    %v6162 = vunpack.c.l.b16 %v5977
    %v6163 = vunpack.c.l.b16 %v5978
    %v6164 = vunpack.c.l.b16 %v5979
    %v6165 = vunpack.c.l.b16 %v5980
    %v6166 = vunpack.c.l.b16 %v5981
    %v6167 = vunpack.c.l.b16 %v5982
    %v6168 = vunpack.c.l.b16 %v5983
    %v6169 = vunpack.c.l.b16 %v5984
    %v6170 = vunpack.c.l.b16 %v5985
    %v6171 = vunpack.c.l.b16 %v5986
    %v6172 = vunpack.c.l.b16 %v5987
    %v6173 = vunpack.c.l.b16 %v5988
    %v6174 = vunpack.c.l.b16 %v5989
    %v6175 = vpack.c.b16 %v6160, %v6159
    %v6176 = vpack.c.b16 %v6162, %v6161
    %v6177 = vpack.c.b16 %v6164, %v6163
    %v6178 = vpack.c.b16 %v6166, %v6165
    %v6179 = vpack.c.b16 %v6168, %v6167
    %v6180 = vpack.c.b16 %v6170, %v6169
    %v6181 = vpack.c.b16 %v6172, %v6171
    %v6182 = vpack.c.b16 %v6174, %v6173
    %6191 = vmatprep.subr.bf16.mxu0 0
    %6192 = vmatpush1.bf16.msra.mxu0 %v6175
    %6193 = vmatprep.subr.bf16.mxu0 0
    %6194 = vmatpush1.bf16.msra.mxu0 %v6176
    %6195 = vmatprep.subr.bf16.mxu0 0
    %6196 = vmatpush1.bf16.msra.mxu0 %v6177
    %6197 = vmatprep.subr.bf16.mxu0 0
    %6198 = vmatpush1.bf16.msra.mxu0 %v6178
    %6199 = vmatprep.subr.bf16.mxu0 0
    %6200 = vmatpush1.bf16.msra.mxu0 %v6179
    %6201 = vmatprep.subr.bf16.mxu0 0
    %6202 = vmatpush1.bf16.msra.mxu0 %v6180
    %6203 = vmatprep.subr.bf16.mxu0 0
    %6204 = vmatpush1.bf16.msra.mxu0 %v6181
    %6205 = vmatprep.subr.bf16.mxu0 0
    %6206 = vmatpush1.bf16.msra.mxu0 %v6182
    %6207 = vmatprep.subr.bf16.mxu0 0
    %6208 = vmatpush1.bf16.msra.mxu0 0
    %6209 = vmatprep.subr.bf16.mxu0 0
    %6210 = vmatpush1.bf16.msra.mxu0 0
    %6211 = vmatprep.subr.bf16.mxu0 0
    %6212 = vmatpush1.bf16.msra.mxu0 0
    %6213 = vmatprep.subr.bf16.mxu0 0
    %6214 = vmatpush1.bf16.msra.mxu0 0
    %6215 = vmatprep.subr.bf16.mxu0 0
    %6216 = vmatpush1.bf16.msra.mxu0 0
    %6217 = vmatprep.subr.bf16.mxu0 0
    %6218 = vmatpush1.bf16.msra.mxu0 0
    %6219 = vmatprep.subr.bf16.mxu0 0
    %6220 = vmatpush1.bf16.msra.mxu0 0
    %6221 = vmatprep.subr.bf16.mxu0 0
    %6222 = vmatpush1.bf16.msra.mxu0 0
    %6223 = vmatprep.mubr.bf16.mxu0 0
    %6224 = vmatmul.mubr.bf16.gmra.mrb[0].mxu0 %v6141
    %v6225 = vpop.f32.mrb[0].mxu0
    %v6226 = vadd.f32 %v6135, %v6225
    %v6227 = vpop.f32.mrb[0].mxu0
    %v6228 = vpop.f32.mrb[0].mxu0
    %v6229 = vadd.f32 %v6138, %v6228
    %v6230 = vpop.f32.mrb[0].mxu0
    %6231 = vdwg.mxu0
    %s6232 = scalar_lea.vmem [#allocation16], 128
    %v6233 = vld [vmem:[%s6232] sm:$0xf]
    %v6234 = vld [vmem:[%s6232 + $0x4] sm:$0xf]
    %v6235 = vld [vmem:[%s6232 + $0x8] sm:$0xf]
    %v6236 = vld [vmem:[%s6232 + $0xc] sm:$0xf]
    %v6237 = vld [vmem:[%s6232 + $0x10] sm:$0xf]
    %v6238 = vld [vmem:[%s6232 + $0x14] sm:$0xf]
    %v6239 = vld [vmem:[%s6232 + $0x18] sm:$0xf]
    %v6240 = vld [vmem:[%s6232 + $0x1c] sm:$0xf]
    %v6241 = vld [vmem:[%s6232 + $0x20] sm:$0xf]
    %v6242 = vld [vmem:[%s6232 + $0x24] sm:$0xf]
    %v6243 = vld [vmem:[%s6232 + $0x28] sm:$0xf]
    %v6244 = vld [vmem:[%s6232 + $0x2c] sm:$0xf]
    %v6245 = vld [vmem:[%s6232 + $0x30] sm:$0xf]
    %v6246 = vld [vmem:[%s6232 + $0x34] sm:$0xf]
    %v6247 = vld [vmem:[%s6232 + $0x38] sm:$0xf]
    %v6248 = vld [vmem:[%s6232 + $0x3c] sm:$0xf]
    %vm6249 = vcmask 1042432
    %vm6250 = vcmask 1046532
    %vm6251 = vmor %vm6249, %vm6250
    %v6252 = vrot.slane %v6013, 5
    %v6253 = vrot.slane %v6252, 4
    %v6254 = vrot.slane %v6014, 5
    %v6255 = vsel %vm6251, %v6253, %v6254
    %v6256 = vrot.slane %v6015, 5
    %v6257 = vrot.slane %v6256, 4
    %v6258 = vrot.slane %v6016, 5
    %v6259 = vsel %vm6251, %v6257, %v6258
    %v6260 = vunpack.c.l.b16 %v6255
    %v6261 = vunpack.c.l.b16 %v6259
    %v6262 = vpack.c.b16 %v6261, %v6260
    %v6280 = vunpack.c.l.b16 %v6233
    %v6281 = vunpack.c.l.b16 %v6234
    %v6282 = vunpack.c.l.b16 %v6235
    %v6283 = vunpack.c.l.b16 %v6236
    %v6284 = vunpack.c.l.b16 %v6237
    %v6285 = vunpack.c.l.b16 %v6238
    %v6286 = vunpack.c.l.b16 %v6239
    %v6287 = vunpack.c.l.b16 %v6240
    %v6288 = vunpack.c.l.b16 %v6241
    %v6289 = vunpack.c.l.b16 %v6242
    %v6290 = vunpack.c.l.b16 %v6243
    %v6291 = vunpack.c.l.b16 %v6244
    %v6292 = vunpack.c.l.b16 %v6245
    %v6293 = vunpack.c.l.b16 %v6246
    %v6294 = vunpack.c.l.b16 %v6247
    %v6295 = vunpack.c.l.b16 %v6248
    %v6296 = vpack.c.b16 %v6281, %v6280
    %v6297 = vpack.c.b16 %v6283, %v6282
    %v6298 = vpack.c.b16 %v6285, %v6284
    %v6299 = vpack.c.b16 %v6287, %v6286
    %v6300 = vpack.c.b16 %v6289, %v6288
    %v6301 = vpack.c.b16 %v6291, %v6290
    %v6302 = vpack.c.b16 %v6293, %v6292
    %v6303 = vpack.c.b16 %v6295, %v6294
    %6312 = vmatprep.subr.bf16.mxu0 0
    %6313 = vmatpush1.bf16.msra.mxu0 %v6296
    %6314 = vmatprep.subr.bf16.mxu0 0
    %6315 = vmatpush1.bf16.msra.mxu0 %v6297
    %6316 = vmatprep.subr.bf16.mxu0 0
    %6317 = vmatpush1.bf16.msra.mxu0 %v6298
    %6318 = vmatprep.subr.bf16.mxu0 0
    %6319 = vmatpush1.bf16.msra.mxu0 %v6299
    %6320 = vmatprep.subr.bf16.mxu0 0
    %6321 = vmatpush1.bf16.msra.mxu0 %v6300
    %6322 = vmatprep.subr.bf16.mxu0 0
    %6323 = vmatpush1.bf16.msra.mxu0 %v6301
    %6324 = vmatprep.subr.bf16.mxu0 0
    %6325 = vmatpush1.bf16.msra.mxu0 %v6302
    %6326 = vmatprep.subr.bf16.mxu0 0
    %6327 = vmatpush1.bf16.msra.mxu0 %v6303
    %6328 = vmatprep.subr.bf16.mxu0 0
    %6329 = vmatpush1.bf16.msra.mxu0 0
    %6330 = vmatprep.subr.bf16.mxu0 0
    %6331 = vmatpush1.bf16.msra.mxu0 0
    %6332 = vmatprep.subr.bf16.mxu0 0
    %6333 = vmatpush1.bf16.msra.mxu0 0
    %6334 = vmatprep.subr.bf16.mxu0 0
    %6335 = vmatpush1.bf16.msra.mxu0 0
    %6336 = vmatprep.subr.bf16.mxu0 0
    %6337 = vmatpush1.bf16.msra.mxu0 0
    %6338 = vmatprep.subr.bf16.mxu0 0
    %6339 = vmatpush1.bf16.msra.mxu0 0
    %6340 = vmatprep.subr.bf16.mxu0 0
    %6341 = vmatpush1.bf16.msra.mxu0 0
    %6342 = vmatprep.subr.bf16.mxu0 0
    %6343 = vmatpush1.bf16.msra.mxu0 0
    %6344 = vmatprep.mubr.bf16.mxu0 0
    %6345 = vmatmul.mubr.bf16.gmra.mrb[0].mxu0 %v6262
    %v6346 = vpop.f32.mrb[0].mxu0
    %v6347 = vadd.f32 0.0, %v6346
    %v6348 = vpop.f32.mrb[0].mxu0
    %v6349 = vpop.f32.mrb[0].mxu0
    %v6350 = vadd.f32 0.0, %v6349
    %v6351 = vpop.f32.mrb[0].mxu0
    %6352 = vdwg.mxu0
    %v6353 = vadd.f32 %v6226, %v6347
    %v6354 = vadd.f32 %v6229, %v6350
    %s6355 = scalar_lea.vmem [#allocation16], 192
    %v6356 = vld [vmem:[%s6355] sm:$0xf]
    %v6357 = vld [vmem:[%s6355 + $0x4] sm:$0xf]
    %v6358 = vld [vmem:[%s6355 + $0x8] sm:$0xf]
    %v6359 = vld [vmem:[%s6355 + $0xc] sm:$0xf]
    %v6360 = vld [vmem:[%s6355 + $0x10] sm:$0xf]
    %v6361 = vld [vmem:[%s6355 + $0x14] sm:$0xf]
    %v6362 = vld [vmem:[%s6355 + $0x18] sm:$0xf]
    %v6363 = vld [vmem:[%s6355 + $0x1c] sm:$0xf]
    %v6364 = vld [vmem:[%s6355 + $0x20] sm:$0xf]
    %v6365 = vld [vmem:[%s6355 + $0x24] sm:$0xf]
    %v6366 = vld [vmem:[%s6355 + $0x28] sm:$0xf]
    %v6367 = vld [vmem:[%s6355 + $0x2c] sm:$0xf]
    %v6368 = vld [vmem:[%s6355 + $0x30] sm:$0xf]
    %v6369 = vld [vmem:[%s6355 + $0x34] sm:$0xf]
    %v6370 = vld [vmem:[%s6355 + $0x38] sm:$0xf]
    %v6371 = vld [vmem:[%s6355 + $0x3c] sm:$0xf]
    %vm6372 = vsmask.f32 2304
    %vm6373 = vsmask.f32 6416
    %vm6374 = vmor %vm6372, %vm6373
    %v6375 = vrot.slane %v6021, 5
    %v6376 = vrot.slane %v6024, 6
    %v6377 = vor.u32 %v6375, %v6376
    %v6378 = vrot.slane %v6377, 4
    %v6379 = vshrl.u32 %v6014, 16
    %v6381 = vrot.slane %v6379, 5
    %v6382 = vrot.slane %v6030, 6
    %v6383 = vor.u32 %v6381, %v6382
    %v6384 = vsel %vm6374, %v6378, %v6383
    %v6385 = vrot.slane %v6035, 5
    %v6386 = vrot.slane %v6038, 6
    %v6387 = vor.u32 %v6385, %v6386
    %v6388 = vrot.slane %v6387, 4
    %v6389 = vshrl.u32 %v6016, 16
    %v6391 = vrot.slane %v6389, 5
    %v6392 = vrot.slane %v6044, 6
    %v6393 = vor.u32 %v6391, %v6392
    %v6394 = vsel %vm6374, %v6388, %v6393
    %v6395 = vunpack.c.l.b16 %v6384
    %v6396 = vunpack.c.l.b16 %v6394
    %v6397 = vpack.c.b16 %v6396, %v6395
    %v6415 = vunpack.c.l.b16 %v6356
    %v6416 = vunpack.c.l.b16 %v6357
    %v6417 = vunpack.c.l.b16 %v6358
    %v6418 = vunpack.c.l.b16 %v6359
    %v6419 = vunpack.c.l.b16 %v6360
    %v6420 = vunpack.c.l.b16 %v6361
    %v6421 = vunpack.c.l.b16 %v6362
    %v6422 = vunpack.c.l.b16 %v6363
    %v6423 = vunpack.c.l.b16 %v6364
    %v6424 = vunpack.c.l.b16 %v6365
    %v6425 = vunpack.c.l.b16 %v6366
    %v6426 = vunpack.c.l.b16 %v6367
    %v6427 = vunpack.c.l.b16 %v6368
    %v6428 = vunpack.c.l.b16 %v6369
    %v6429 = vunpack.c.l.b16 %v6370
    %v6430 = vunpack.c.l.b16 %v6371
    %v6431 = vpack.c.b16 %v6416, %v6415
    %v6432 = vpack.c.b16 %v6418, %v6417
    %v6433 = vpack.c.b16 %v6420, %v6419
    %v6434 = vpack.c.b16 %v6422, %v6421
    %v6435 = vpack.c.b16 %v6424, %v6423
    %v6436 = vpack.c.b16 %v6426, %v6425
    %v6437 = vpack.c.b16 %v6428, %v6427
    %v6438 = vpack.c.b16 %v6430, %v6429
    %6447 = vmatprep.subr.bf16.mxu0 0
    %6448 = vmatpush1.bf16.msra.mxu0 %v6431
    %6449 = vmatprep.subr.bf16.mxu0 0
    %6450 = vmatpush1.bf16.msra.mxu0 %v6432
    %6451 = vmatprep.subr.bf16.mxu0 0
    %6452 = vmatpush1.bf16.msra.mxu0 %v6433
    %6453 = vmatprep.subr.bf16.mxu0 0
    %6454 = vmatpush1.bf16.msra.mxu0 %v6434
    %6455 = vmatprep.subr.bf16.mxu0 0
    %6456 = vmatpush1.bf16.msra.mxu0 %v6435
    %6457 = vmatprep.subr.bf16.mxu0 0
    %6458 = vmatpush1.bf16.msra.mxu0 %v6436
    %6459 = vmatprep.subr.bf16.mxu0 0
    %6460 = vmatpush1.bf16.msra.mxu0 %v6437
    %6461 = vmatprep.subr.bf16.mxu0 0
    %6462 = vmatpush1.bf16.msra.mxu0 %v6438
    %6463 = vmatprep.subr.bf16.mxu0 0
    %6464 = vmatpush1.bf16.msra.mxu0 0
    %6465 = vmatprep.subr.bf16.mxu0 0
    %6466 = vmatpush1.bf16.msra.mxu0 0
    %6467 = vmatprep.subr.bf16.mxu0 0
    %6468 = vmatpush1.bf16.msra.mxu0 0
    %6469 = vmatprep.subr.bf16.mxu0 0
    %6470 = vmatpush1.bf16.msra.mxu0 0
    %6471 = vmatprep.subr.bf16.mxu0 0
    %6472 = vmatpush1.bf16.msra.mxu0 0
    %6473 = vmatprep.subr.bf16.mxu0 0
    %6474 = vmatpush1.bf16.msra.mxu0 0
    %6475 = vmatprep.subr.bf16.mxu0 0
    %6476 = vmatpush1.bf16.msra.mxu0 0
    %6477 = vmatprep.subr.bf16.mxu0 0
    %6478 = vmatpush1.bf16.msra.mxu0 0
    %6479 = vmatprep.mubr.bf16.mxu0 0
    %6480 = vmatmul.mubr.bf16.gmra.mrb[0].mxu0 %v6397
    %v6481 = vpop.f32.mrb[0].mxu0
    %v6482 = vadd.f32 0.0, %v6481
    %v6483 = vpop.f32.mrb[0].mxu0
    %v6484 = vpop.f32.mrb[0].mxu0
    %v6485 = vadd.f32 0.0, %v6484
    %v6486 = vpop.f32.mrb[0].mxu0
    %6487 = vdwg.mxu0
    %v6488 = vadd.f32 %v6353, %v6482
    %v6489 = vadd.f32 %v6354, %v6485
    %s6490 = scalar_lea.vmem [#allocation16], 256
    %v6491 = vld [vmem:[%s6490] sm:$0xf]
    %v6492 = vld [vmem:[%s6490 + $0x4] sm:$0xf]
    %v6493 = vld [vmem:[%s6490 + $0x8] sm:$0xf]
    %v6494 = vld [vmem:[%s6490 + $0xc] sm:$0xf]
    %v6495 = vld [vmem:[%s6490 + $0x10] sm:$0xf]
    %v6496 = vld [vmem:[%s6490 + $0x14] sm:$0xf]
    %v6497 = vld [vmem:[%s6490 + $0x18] sm:$0xf]
    %v6498 = vld [vmem:[%s6490 + $0x1c] sm:$0xf]
    %v6499 = vld [vmem:[%s6490 + $0x20] sm:$0xf]
    %v6500 = vld [vmem:[%s6490 + $0x24] sm:$0xf]
    %v6501 = vld [vmem:[%s6490 + $0x28] sm:$0xf]
    %v6502 = vld [vmem:[%s6490 + $0x2c] sm:$0xf]
    %v6503 = vld [vmem:[%s6490 + $0x30] sm:$0xf]
    %v6504 = vld [vmem:[%s6490 + $0x34] sm:$0xf]
    %v6505 = vld [vmem:[%s6490 + $0x38] sm:$0xf]
    %v6506 = vld [vmem:[%s6490 + $0x3c] sm:$0xf]
    %vm6507 = vcmask 1041408
    %vm6508 = vcmask 1045508
    %vm6509 = vmor %vm6507, %vm6508
    %v6510 = vrot.slane %v6013, 6
    %v6511 = vrot.slane %v6510, 4
    %v6512 = vrot.slane %v6014, 6
    %v6513 = vsel %vm6509, %v6511, %v6512
    %v6514 = vrot.slane %v6015, 6
    %v6515 = vrot.slane %v6514, 4
    %v6516 = vrot.slane %v6016, 6
    %v6517 = vsel %vm6509, %v6515, %v6516
    %v6518 = vunpack.c.l.b16 %v6513
    %v6519 = vunpack.c.l.b16 %v6517
    %v6520 = vpack.c.b16 %v6519, %v6518
    %v6538 = vunpack.c.l.b16 %v6491
    %v6539 = vunpack.c.l.b16 %v6492
    %v6540 = vunpack.c.l.b16 %v6493
    %v6541 = vunpack.c.l.b16 %v6494
    %v6542 = vunpack.c.l.b16 %v6495
    %v6543 = vunpack.c.l.b16 %v6496
    %v6544 = vunpack.c.l.b16 %v6497
    %v6545 = vunpack.c.l.b16 %v6498
    %v6546 = vunpack.c.l.b16 %v6499
    %v6547 = vunpack.c.l.b16 %v6500
    %v6548 = vunpack.c.l.b16 %v6501
    %v6549 = vunpack.c.l.b16 %v6502
    %v6550 = vunpack.c.l.b16 %v6503
    %v6551 = vunpack.c.l.b16 %v6504
    %v6552 = vunpack.c.l.b16 %v6505
    %v6553 = vunpack.c.l.b16 %v6506
    %v6554 = vpack.c.b16 %v6539, %v6538
    %v6555 = vpack.c.b16 %v6541, %v6540
    %v6556 = vpack.c.b16 %v6543, %v6542
    %v6557 = vpack.c.b16 %v6545, %v6544
    %v6558 = vpack.c.b16 %v6547, %v6546
    %v6559 = vpack.c.b16 %v6549, %v6548
    %v6560 = vpack.c.b16 %v6551, %v6550
    %v6561 = vpack.c.b16 %v6553, %v6552
    %6570 = vmatprep.subr.bf16.mxu0 0
    %6571 = vmatpush1.bf16.msra.mxu0 %v6554
    %6572 = vmatprep.subr.bf16.mxu0 0
    %6573 = vmatpush1.bf16.msra.mxu0 %v6555
    %6574 = vmatprep.subr.bf16.mxu0 0
    %6575 = vmatpush1.bf16.msra.mxu0 %v6556
    %6576 = vmatprep.subr.bf16.mxu0 0
    %6577 = vmatpush1.bf16.msra.mxu0 %v6557
    %6578 = vmatprep.subr.bf16.mxu0 0
    %6579 = vmatpush1.bf16.msra.mxu0 %v6558
    %6580 = vmatprep.subr.bf16.mxu0 0
    %6581 = vmatpush1.bf16.msra.mxu0 %v6559
    %6582 = vmatprep.subr.bf16.mxu0 0
    %6583 = vmatpush1.bf16.msra.mxu0 %v6560
    %6584 = vmatprep.subr.bf16.mxu0 0
    %6585 = vmatpush1.bf16.msra.mxu0 %v6561
    %6586 = vmatprep.subr.bf16.mxu0 0
    %6587 = vmatpush1.bf16.msra.mxu0 0
    %6588 = vmatprep.subr.bf16.mxu0 0
    %6589 = vmatpush1.bf16.msra.mxu0 0
    %6590 = vmatprep.subr.bf16.mxu0 0
    %6591 = vmatpush1.bf16.msra.mxu0 0
    %6592 = vmatprep.subr.bf16.mxu0 0
    %6593 = vmatpush1.bf16.msra.mxu0 0
    %6594 = vmatprep.subr.bf16.mxu0 0
    %6595 = vmatpush1.bf16.msra.mxu0 0
    %6596 = vmatprep.subr.bf16.mxu0 0
    %6597 = vmatpush1.bf16.msra.mxu0 0
    %6598 = vmatprep.subr.bf16.mxu0 0
    %6599 = vmatpush1.bf16.msra.mxu0 0
    %6600 = vmatprep.subr.bf16.mxu0 0
    %6601 = vmatpush1.bf16.msra.mxu0 0
    %6602 = vmatprep.mubr.bf16.mxu0 0
    %6603 = vmatmul.mubr.bf16.gmra.mrb[0].mxu0 %v6520
    %v6604 = vpop.f32.mrb[0].mxu0
    %v6605 = vadd.f32 0.0, %v6604
    %v6606 = vpop.f32.mrb[0].mxu0
    %v6607 = vpop.f32.mrb[0].mxu0
    %v6608 = vadd.f32 0.0, %v6607
    %v6609 = vpop.f32.mrb[0].mxu0
    %6610 = vdwg.mxu0
    %v6611 = vadd.f32 %v6488, %v6605
    %v6612 = vadd.f32 %v6489, %v6608
    %v6613 = vld [vmem:[%s13] sm:$0x1]
    %v6615 = vlaneseq
    %v6616 = vshrl.u32 %v6615, 7
    %v6617 = vsub.s32 0, %v6616
    %v6618 = vrot.slane %v6613, %v6617
    %v6620 = vadd.f32 %v6611, %v6618
    %v6621 = vadd.f32 %v6612, %v6618
    %v6622 = vmax.f32 %v6620, 0.0
    %v6623 = vmax.f32 %v6621, 0.0
    %v6624 = vrot.slane %v6622, 4
    %v6625 = vmax.f32 %v6622, %v6624
    %v6626 = vrot.slane %v6625, 2
    %v6627 = vmax.f32 %v6625, %v6626
    %v6628 = vrot.slane %v6627, 1
    %v6629 = vmax.f32 %v6627, %v6628
    %v6630 = vrot.slane %v6623, 4
    %v6631 = vmax.f32 %v6623, %v6630
    %v6632 = vrot.slane %v6631, 2
    %v6633 = vmax.f32 %v6631, %v6632
    %v6634 = vrot.slane %v6633, 1
    %v6635 = vmax.f32 %v6633, %v6634
    %vm6638 = vcmask 1041409
    %v6639 = vsel %vm6638, %v1963, %v1955
    %v6643 = vsel %vm6638, %v5036, %v5028
    %v6647 = vsel %vm6638, %v6635, %v6629
    %v6649 = vpack.c.bf16 %v6639, %v6639
    %v6650 = vpack.c.bf16 %v6643, %v6643
    %v6651 = vpack.c.bf16 %v6647, %v6647
    %v6652 = vld [vmem:[#allocation17] sm:$0xf]
    %v6653 = vld [vmem:[#allocation17 + $0x4] sm:$0xf]
    %v6654 = vld [vmem:[#allocation17 + $0x8] sm:$0xf]
    %v6655 = vld [vmem:[#allocation17 + $0xc] sm:$0xf]
    %v6656 = vld [vmem:[#allocation17 + $0x10] sm:$0xf]
    %v6657 = vld [vmem:[#allocation17 + $0x14] sm:$0xf]
    %v6658 = vld [vmem:[#allocation17 + $0x18] sm:$0xf]
    %v6659 = vld [vmem:[#allocation17 + $0x1c] sm:$0xf]
    %v6660 = vld [vmem:[#allocation17 + $0x20] sm:$0xf]
    %v6661 = vld [vmem:[#allocation17 + $0x24] sm:$0xf]
    %v6662 = vld [vmem:[#allocation17 + $0x28] sm:$0xf]
    %v6663 = vld [vmem:[#allocation17 + $0x2c] sm:$0xf]
    %v6664 = vld [vmem:[#allocation17 + $0x30] sm:$0xf]
    %v6665 = vld [vmem:[#allocation17 + $0x34] sm:$0xf]
    %v6666 = vld [vmem:[#allocation17 + $0x38] sm:$0xf]
    %v6667 = vld [vmem:[#allocation17 + $0x3c] sm:$0xf]
    %v6668 = vld [vmem:[#allocation17 + $0x40] sm:$0xf]
    %v6669 = vld [vmem:[#allocation17 + $0x44] sm:$0xf]
    %v6670 = vld [vmem:[#allocation17 + $0x48] sm:$0xf]
    %v6671 = vld [vmem:[#allocation17 + $0x4c] sm:$0xf]
    %v6672 = vld [vmem:[#allocation17 + $0x50] sm:$0xf]
    %v6673 = vld [vmem:[#allocation17 + $0x54] sm:$0xf]
    %v6674 = vld [vmem:[#allocation17 + $0x58] sm:$0xf]
    %v6675 = vld [vmem:[#allocation17 + $0x5c] sm:$0xf]
    %v6676 = vld [vmem:[#allocation17 + $0x60] sm:$0xf]
    %v6677 = vld [vmem:[#allocation17 + $0x64] sm:$0xf]
    %v6678 = vld [vmem:[#allocation17 + $0x68] sm:$0xf]
    %v6679 = vld [vmem:[#allocation17 + $0x6c] sm:$0xf]
    %v6680 = vld [vmem:[#allocation17 + $0x70] sm:$0xf]
    %v6681 = vld [vmem:[#allocation17 + $0x74] sm:$0xf]
    %v6682 = vld [vmem:[#allocation17 + $0x78] sm:$0xf]
    %v6683 = vld [vmem:[#allocation17 + $0x7c] sm:$0xf]
    %v6684 = vld [vmem:[#allocation17 + $0x80] sm:$0xf]
    %v6685 = vld [vmem:[#allocation17 + $0x84] sm:$0xf]
    %v6686 = vld [vmem:[#allocation17 + $0x88] sm:$0xf]
    %v6687 = vld [vmem:[#allocation17 + $0x8c] sm:$0xf]
    %v6688 = vld [vmem:[#allocation17 + $0x90] sm:$0xf]
    %v6689 = vld [vmem:[#allocation17 + $0x94] sm:$0xf]
    %v6690 = vld [vmem:[#allocation17 + $0x98] sm:$0xf]
    %v6691 = vld [vmem:[#allocation17 + $0x9c] sm:$0xf]
    %v6692 = vld [vmem:[#allocation17 + $0xa0] sm:$0xf]
    %v6693 = vld [vmem:[#allocation17 + $0xa4] sm:$0xf]
    %v6694 = vld [vmem:[#allocation17 + $0xa8] sm:$0xf]
    %v6695 = vld [vmem:[#allocation17 + $0xac] sm:$0xf]
    %v6696 = vld [vmem:[#allocation17 + $0xb0] sm:$0xf]
    %v6697 = vld [vmem:[#allocation17 + $0xb4] sm:$0xf]
    %v6698 = vld [vmem:[#allocation17 + $0xb8] sm:$0xf]
    %v6699 = vld [vmem:[#allocation17 + $0xbc] sm:$0xf]
    %v6700 = vld [vmem:[%s15] sm:$0x1]
    %v6702 = vlaneseq
    %v6703 = vshrl.u32 %v6702, 7
    %v6704 = vsub.s32 0, %v6703
    %v6705 = vrot.slane %v6700, %v6704
    %v6755 = vunpack.c.l.b16 %v6652
    %v6756 = vunpack.c.l.b16 %v6653
    %v6757 = vunpack.c.l.b16 %v6654
    %v6758 = vunpack.c.l.b16 %v6655
    %v6759 = vunpack.c.l.b16 %v6656
    %v6760 = vunpack.c.l.b16 %v6657
    %v6761 = vunpack.c.l.b16 %v6658
    %v6762 = vunpack.c.l.b16 %v6659
    %v6763 = vunpack.c.l.b16 %v6660
    %v6764 = vunpack.c.l.b16 %v6661
    %v6765 = vunpack.c.l.b16 %v6662
    %v6766 = vunpack.c.l.b16 %v6663
    %v6767 = vunpack.c.l.b16 %v6664
    %v6768 = vunpack.c.l.b16 %v6665
    %v6769 = vunpack.c.l.b16 %v6666
    %v6770 = vunpack.c.l.b16 %v6667
    %v6771 = vunpack.c.l.b16 %v6668
    %v6772 = vunpack.c.l.b16 %v6669
    %v6773 = vunpack.c.l.b16 %v6670
    %v6774 = vunpack.c.l.b16 %v6671
    %v6775 = vunpack.c.l.b16 %v6672
    %v6776 = vunpack.c.l.b16 %v6673
    %v6777 = vunpack.c.l.b16 %v6674
    %v6778 = vunpack.c.l.b16 %v6675
    %v6779 = vunpack.c.l.b16 %v6676
    %v6780 = vunpack.c.l.b16 %v6677
    %v6781 = vunpack.c.l.b16 %v6678
    %v6782 = vunpack.c.l.b16 %v6679
    %v6783 = vunpack.c.l.b16 %v6680
    %v6784 = vunpack.c.l.b16 %v6681
    %v6785 = vunpack.c.l.b16 %v6682
    %v6786 = vunpack.c.l.b16 %v6683
    %v6787 = vunpack.c.l.b16 %v6684
    %v6788 = vunpack.c.l.b16 %v6685
    %v6789 = vunpack.c.l.b16 %v6686
    %v6790 = vunpack.c.l.b16 %v6687
    %v6791 = vunpack.c.l.b16 %v6688
    %v6792 = vunpack.c.l.b16 %v6689
    %v6793 = vunpack.c.l.b16 %v6690
    %v6794 = vunpack.c.l.b16 %v6691
    %v6795 = vunpack.c.l.b16 %v6692
    %v6796 = vunpack.c.l.b16 %v6693
    %v6797 = vunpack.c.l.b16 %v6694
    %v6798 = vunpack.c.l.b16 %v6695
    %v6799 = vunpack.c.l.b16 %v6696
    %v6800 = vunpack.c.l.b16 %v6697
    %v6801 = vunpack.c.l.b16 %v6698
    %v6802 = vunpack.c.l.b16 %v6699
    %v6803 = vpack.c.b16 %v6756, %v6755
    %v6804 = vpack.c.b16 %v6758, %v6757
    %v6805 = vpack.c.b16 %v6760, %v6759
    %v6806 = vpack.c.b16 %v6762, %v6761
    %v6807 = vpack.c.b16 %v6764, %v6763
    %v6808 = vpack.c.b16 %v6766, %v6765
    %v6809 = vpack.c.b16 %v6768, %v6767
    %v6810 = vpack.c.b16 %v6770, %v6769
    %v6811 = vpack.c.b16 %v6772, %v6771
    %v6812 = vpack.c.b16 %v6774, %v6773
    %v6813 = vpack.c.b16 %v6776, %v6775
    %v6814 = vpack.c.b16 %v6778, %v6777
    %v6815 = vpack.c.b16 %v6780, %v6779
    %v6816 = vpack.c.b16 %v6782, %v6781
    %v6817 = vpack.c.b16 %v6784, %v6783
    %v6818 = vpack.c.b16 %v6786, %v6785
    %v6819 = vpack.c.b16 %v6788, %v6787
    %v6820 = vpack.c.b16 %v6790, %v6789
    %v6821 = vpack.c.b16 %v6792, %v6791
    %v6822 = vpack.c.b16 %v6794, %v6793
    %v6823 = vpack.c.b16 %v6796, %v6795
    %v6824 = vpack.c.b16 %v6798, %v6797
    %v6825 = vpack.c.b16 %v6800, %v6799
    %v6826 = vpack.c.b16 %v6802, %v6801
    %6851 = vmatprep.subr.bf16.mxu0 0
    %6852 = vmatpush1.bf16.msra.mxu0 %v6803
    %6853 = vmatprep.subr.bf16.mxu0 0
    %6854 = vmatpush1.bf16.msra.mxu0 %v6804
    %6855 = vmatprep.subr.bf16.mxu0 0
    %6856 = vmatpush1.bf16.msra.mxu0 %v6805
    %6857 = vmatprep.subr.bf16.mxu0 0
    %6858 = vmatpush1.bf16.msra.mxu0 %v6806
    %6859 = vmatprep.subr.bf16.mxu0 0
    %6860 = vmatpush1.bf16.msra.mxu0 %v6807
    %6861 = vmatprep.subr.bf16.mxu0 0
    %6862 = vmatpush1.bf16.msra.mxu0 %v6808
    %6863 = vmatprep.subr.bf16.mxu0 0
    %6864 = vmatpush1.bf16.msra.mxu0 %v6809
    %6865 = vmatprep.subr.bf16.mxu0 0
    %6866 = vmatpush1.bf16.msra.mxu0 %v6810
    %6867 = vmatprep.subr.bf16.mxu0 0
    %6868 = vmatpush1.bf16.msra.mxu0 %v6811
    %6869 = vmatprep.subr.bf16.mxu0 0
    %6870 = vmatpush1.bf16.msra.mxu0 %v6812
    %6871 = vmatprep.subr.bf16.mxu0 0
    %6872 = vmatpush1.bf16.msra.mxu0 %v6813
    %6873 = vmatprep.subr.bf16.mxu0 0
    %6874 = vmatpush1.bf16.msra.mxu0 %v6814
    %6875 = vmatprep.subr.bf16.mxu0 0
    %6876 = vmatpush1.bf16.msra.mxu0 %v6815
    %6877 = vmatprep.subr.bf16.mxu0 0
    %6878 = vmatpush1.bf16.msra.mxu0 %v6816
    %6879 = vmatprep.subr.bf16.mxu0 0
    %6880 = vmatpush1.bf16.msra.mxu0 %v6817
    %6881 = vmatprep.subr.bf16.mxu0 0
    %6882 = vmatpush1.bf16.msra.mxu0 %v6818
    %6883 = vmatprep.mubr.bf16.mxu0 %v6650
    %6884 = vmatmul.mubr.bf16.gmra.mrb[0].mxu0 %v6649
    %v6885 = vpop.f32.mrb[0].mxu0
    %v6886 = vadd.f32 %v6705, %v6885
    %v6887 = vpop.f32.mrb[0].mxu0
    %v6888 = vpop.f32.mrb[0].mxu0
    %v6889 = vpop.f32.mrb[0].mxu0
    %6890 = vdwg.mxu0
    %6891 = vmatprep.subr.bf16.mxu0 0
    %6892 = vmatpush1.bf16.msra.mxu0 %v6819
    %6893 = vmatprep.subr.bf16.mxu0 0
    %6894 = vmatpush1.bf16.msra.mxu0 %v6820
    %6895 = vmatprep.subr.bf16.mxu0 0
    %6896 = vmatpush1.bf16.msra.mxu0 %v6821
    %6897 = vmatprep.subr.bf16.mxu0 0
    %6898 = vmatpush1.bf16.msra.mxu0 %v6822
    %6899 = vmatprep.subr.bf16.mxu0 0
    %6900 = vmatpush1.bf16.msra.mxu0 %v6823
    %6901 = vmatprep.subr.bf16.mxu0 0
    %6902 = vmatpush1.bf16.msra.mxu0 %v6824
    %6903 = vmatprep.subr.bf16.mxu0 0
    %6904 = vmatpush1.bf16.msra.mxu0 %v6825
    %6905 = vmatprep.subr.bf16.mxu0 0
    %6906 = vmatpush1.bf16.msra.mxu0 %v6826
    %6907 = vmatprep.subr.bf16.mxu0 0
    %6908 = vmatpush1.bf16.msra.mxu0 0
    %6909 = vmatprep.subr.bf16.mxu0 0
    %6910 = vmatpush1.bf16.msra.mxu0 0
    %6911 = vmatprep.subr.bf16.mxu0 0
    %6912 = vmatpush1.bf16.msra.mxu0 0
    %6913 = vmatprep.subr.bf16.mxu0 0
    %6914 = vmatpush1.bf16.msra.mxu0 0
    %6915 = vmatprep.subr.bf16.mxu0 0
    %6916 = vmatpush1.bf16.msra.mxu0 0
    %6917 = vmatprep.subr.bf16.mxu0 0
    %6918 = vmatpush1.bf16.msra.mxu0 0
    %6919 = vmatprep.subr.bf16.mxu0 0
    %6920 = vmatpush1.bf16.msra.mxu0 0
    %6921 = vmatprep.subr.bf16.mxu0 0
    %6922 = vmatpush1.bf16.msra.mxu0 0
    %6923 = vmatprep.mubr.bf16.mxu0 0
    %6924 = vmatmul.mubr.bf16.gmra.mrb[0].mxu0 %v6651
    %v6925 = vpop.f32.mrb[0].mxu0
    %v6926 = vadd.f32 %v6886, %v6925
    %v6927 = vpop.f32.mrb[0].mxu0
    %v6928 = vpop.f32.mrb[0].mxu0
    %v6929 = vpop.f32.mrb[0].mxu0
    %6930 = vdwg.mxu0
    %v6931 = vxor.u32 %v6926, 2147483648
    %v6932 = vmul.f32 %v6931, 1.442695
    %v6933 = vpow.pop %v6932
    %v6934 = vadd.f32 %v6933, 1.0
    %v6935 = vrcp.pop %v6934
    %v6936 = vmul.f32 1.0, %v6935
    %6937 = vst [vmem:[#allocation19] sm:$0x3] %v6936
    // Predicated region
    $region101: #{tpu_custom_call.1} parent=1 // pred_check
      _
    $region102: #{tpu_custom_call.1} parent=1 // pred_check_branch
      %6939 = sbr.rel (0) target = $region104
    $region103: #{tpu_custom_call.1} parent=1 // pred_region
      %s6941 = ssub.s32 32, 32
      %6942 = vsyncadd [#allocation7], %s6941
      %s6944 = sshll.u32 [#allocation19], 4
      %s6945 = int_to_ptr.vmem [resolvable:$true] %s6944
      %6947 = dma.vmem_to_hbm [thread:$0]  %s6945, 32, %s16, [#allocation7]
    $region104: #{tpu_custom_call.1} parent=1 // pred_fallthru
      _
    // Predicated region
    $region105: #{tpu_custom_call.1} parent=1 // pred_check
      _
    $region106: #{tpu_custom_call.1} parent=1 // pred_check_branch
      %6949 = sbr.rel (0) target = $region108
    $region107: #{tpu_custom_call.1} parent=1 // pred_region
      %6950 = dma.done [#allocation7], 32
    $region108: #{tpu_custom_call.1} parent=1 // pred_fallthru
      _
    %6951 = vsyncpa [#allocation6], 1
    %6952 = vsyncpa [#allocation9], 1
    %6953 = vsyncpa [#allocation12], 1
    %6954 = vsyncpa [#allocation15], 1
    %6955 = vsyncpa [#allocation18], 1
    %6956 = vsyncpa [#allocation7], 1

</llo_original>
